<compile_context>
chip_gen: v7x
topology: tpu7x:2x2x1
jax: 0.10.0
libtpu: 0.0.40
codegen_flags: <defaults>
</compile_context>

<pallas_src>
import jax
import jax.numpy as jnp
from jax import lax
from jax.experimental import pallas as pl
from jax.experimental.pallas import tpu as pltpu

INPUT_DIM = 16
HIDDEN_DIM = 32            # transformer d_model; must equal num_nodes (module's transpose trick)
NUM_LAYERS = 3             # -> NUM_LAYERS - 1 == 2 GraphConvolution layers
DIM_FF = 2048              # PyTorch TransformerEncoderLayer default dim_feedforward
LN_EPS = 1e-5              # PyTorch LayerNorm default eps
NUM_NODES = HIDDEN_DIM
TOTAL_FEAT = INPUT_DIM + (NUM_LAYERS - 1) * HIDDEN_DIM   # 80 (width of the JK concat)

FF_CHUNK = 256             # feed-forward processed in chunks of this many hidden units
FF_K = HIDDEN_DIM + 8      # 40: augmented contraction dim (col HIDDEN_DIM carries linear1.bias)

# ---- f32 parameter-slab layout (one operand, one DMA; all offsets 8-row aligned) ----------
R_G0W = 0                  # [16, 32]  GCN0 weight (transposed)
R_G1W = 16                 # [32, 80]  GCN1 weight (transposed) pre-multiplied by placement P2
R_WA  = 48                 # [32, 32]  fused attention weight  Wo @ Wv
R_P0  = 80                 # [16, 80]  placement of x   into cat cols  0:16
R_P1  = 96                 # [32, 80]  placement of h1  into cat cols 16:48
R_VEC = 128                # [32, 8]   columns: 0=ba 1=n1w 2=n1b 3=n2w 4=n2b 5=b2
R_G0B = 160                # [1, 32]   GCN0 bias (row)
R_G1B = 168                # [1, 80]   GCN1 bias pre-placed into cols 48:80 (row)
SLAB_ROWS = 176


def _placement(rows, col_offset):
    """0/1 matrix P[r, c] = (c == r + col_offset); `v @ P` drops v's columns into columns
    [col_offset, col_offset + rows) of a TOTAL_FEAT-wide tensor (MXU-based concat)."""
    r = jnp.arange(rows)[:, None]
    c = jnp.arange(TOTAL_FEAT)[None, :]
    return (c == r + col_offset).astype(jnp.float32)


# ---------------------------------------------------------------------------
# Fused kernel: adj build -> GCN x2 -> JK concat -> TransformerEncoderLayer
# ---------------------------------------------------------------------------
def _jk_color_kernel(edges_ref, x_ref, slab_ref, w1_ref, w2_ref, o_ref):
    f32, bf16 = jnp.float32, jnp.bfloat16
    n = NUM_NODES
    num_e = edges_ref.shape[1]

    # ---- dense adjacency from edge_index, fused in-kernel (replaces XLA scatter-add) ----
    # adj[i, j] = #edges (src==i, dst==j); duplicates accumulate, matching to_dense_adj.
    src = edges_ref[0:1, :]                                    # [1, E]
    dst = edges_ref[1:2, :]                                    # [1, E]
    node = lax.broadcasted_iota(jnp.int32, (n, num_e), 0)      # node id along sublanes
    s_t = (node == src).astype(f32)                            # [N, E]  s_t[i,e] = (src[e]==i)
    d_t = (node == dst).astype(f32)                            # [N, E]
    adj = lax.dot_general(s_t, d_t, (((1,), (1,)), ((), ())),  # contract over edges (q@k.T form)
                          preferred_element_type=f32)          # [N, N]
    deg = jnp.sum(adj, axis=1, keepdims=True)                  # [N, 1] row degree
    # torch divides by deg unguarded (isolated node -> inf/NaN); the clamp keeps the kernel
    # finite and is bit-identical whenever deg >= 1 (the driver adds self loops).
    adj_n = adj / jnp.maximum(deg, 1.0)

    # ---- GraphConvolution layers:  h = (adj_n @ h_prev) @ W^T + b  (+ relu except last) ----
    x = x_ref[...]                                             # [N, 16]
    g0w = slab_ref[R_G0W:R_G0W + INPUT_DIM, 0:HIDDEN_DIM]      # [16, 32]
    g0b = slab_ref[R_G0B:R_G0B + 1, 0:HIDDEN_DIM]              # [1, 32]
    h1 = jnp.dot(jnp.dot(adj_n, x, preferred_element_type=f32), g0w,
                 preferred_element_type=f32) + g0b
    h1 = jnp.maximum(h1, 0.0)                                  # relu; eval-mode dropout == id

    # second GCN layer with the JK placement folded into its weights at prep time, so h2
    # lands directly in cat columns 48:80 (one fewer in-kernel matmul).
    g1w_wide = slab_ref[R_G1W:R_G1W + HIDDEN_DIM, :]           # [32, 80]
    g1b_wide = slab_ref[R_G1B:R_G1B + 1, :]                    # [1, 80]
    h2_wide = jnp.dot(jnp.dot(adj_n, h1, preferred_element_type=f32), g1w_wide,
                      preferred_element_type=f32) + g1b_wide   # [N, 80]

    # ---- jumping-knowledge concat: cat = [x | h1 | h2] via precomputed placement matmuls ----
    p0 = slab_ref[R_P0:R_P0 + INPUT_DIM, :]                    # [16, 80]
    p1 = slab_ref[R_P1:R_P1 + HIDDEN_DIM, :]                   # [32, 80]
    cat = (jnp.dot(x, p0, preferred_element_type=f32)
           + jnp.dot(h1, p1, preferred_element_type=f32)
           + h2_wide)                                          # [N, 80]

    # ---- TransformerEncoderLayer, computed directly in the [d_model = N, batch] layout ----
    # seq_len == 1 (the module's unsqueeze(0)) => softmax over one key == 1 => MHA reduces to
    # out_proj(V); wa = Wo @ Wv and ba = Wo @ bv + bo are pre-fused at prep time.
    wa = slab_ref[R_WA:R_WA + HIDDEN_DIM, 0:HIDDEN_DIM]        # [32, 32]
    vecs = slab_ref[R_VEC:R_VEC + HIDDEN_DIM, 0:8]             # [32, 8]
    ba  = vecs[:, 0:1]
    n1w = vecs[:, 1:2]
    n1b = vecs[:, 2:3]
    n2w = vecs[:, 3:4]
    n2b = vecs[:, 4:5]
    b2  = vecs[:, 5:6]

    attn = jnp.dot(wa, cat, preferred_element_type=f32) + ba   # [N, 80]

    h = cat + attn                                             # residual 1
    mu = jnp.mean(h, axis=0, keepdims=True)                    # LayerNorm over d_model (sublanes)
    var = jnp.mean(jnp.square(h - mu), axis=0, keepdims=True)
    h = (h - mu) * lax.rsqrt(var + LN_EPS) * n1w + n1b         # [N, 80], f32

    # feed-forward: bf16 MXU inputs, f32 accumulation, f32 element-wise work.
    # linear1.bias rides as column HIDDEN_DIM of w1 against an appended ones-row of h_aug.
    ones_pad = (lax.broadcasted_iota(jnp.int32, (FF_K - HIDDEN_DIM, TOTAL_FEAT), 0)
                == 0).astype(f32)                              # row 0 = 1, rest = 0
    h_aug = jnp.concatenate([h, ones_pad], axis=0).astype(bf16)  # [40, 80] bf16

    ff = jnp.zeros((HIDDEN_DIM, TOTAL_FEAT), f32)
    for c in range(0, DIM_FF, FF_CHUNK):                       # full static unroll (8 chunks)
        z = jnp.dot(w1_ref[c:c + FF_CHUNK, :], h_aug,
                    preferred_element_type=f32)                # [FF_CHUNK, 80] f32 (bias incl.)
        z = jnp.maximum(z, 0.0).astype(bf16)                   # relu in f32, cast for MXU only
        ff = ff + jnp.dot(w2_ref[:, c:c + FF_CHUNK], z,
                          preferred_element_type=f32)          # [32, 80] f32
    ff = ff + b2

    h2t = h + ff                                               # residual 2
    mu2 = jnp.mean(h2t, axis=0, keepdims=True)
    var2 = jnp.mean(jnp.square(h2t - mu2), axis=0, keepdims=True)
    out = (h2t - mu2) * lax.rsqrt(var2 + LN_EPS) * n2w + n2b

    # Already in [num_nodes, total_feat] order -> single store, no output transpose.
    o_ref[...] = out


# ---------------------------------------------------------------------------
# Parameters (PyTorch-native layout) + one-time re-layout into kernel operands
# ---------------------------------------------------------------------------
def init_params(key):
    ks = iter(jax.random.split(key, 12))
    D, dff = HIDDEN_DIM, DIM_FF
    params = {"gcn": []}
    dims = [INPUT_DIM] + [HIDDEN_DIM] * (NUM_LAYERS - 1)
    for li in range(NUM_LAYERS - 1):
        fin, fout = dims[li], dims[li + 1]
        params["gcn"].append({
            "W": jax.random.normal(next(ks), (fout, fin), jnp.float32) * 0.05,  # nn.Linear [out,in]
            "b": jax.random.normal(next(ks), (fout,), jnp.float32) * 0.05,
        })
    # MultiheadAttention (nhead=4 irrelevant: seq_len == 1 => softmax == 1 => only V/out_proj).
    params["tf"] = {
        "wv": jax.random.normal(next(ks), (D, D), jnp.float32) * 0.05,    # in_proj V slice
        "bv": jax.random.normal(next(ks), (D,), jnp.float32) * 0.05,
        "wo": jax.random.normal(next(ks), (D, D), jnp.float32) * 0.05,    # out_proj.weight
        "bo": jax.random.normal(next(ks), (D,), jnp.float32) * 0.05,
        "n1w": jnp.ones((D,), jnp.float32), "n1b": jnp.zeros((D,), jnp.float32),
        "w1": jax.random.normal(next(ks), (dff, D), jnp.float32) * 0.05,  # linear1.weight
        "b1": jax.random.normal(next(ks), (dff,), jnp.float32) * 0.05,
        "w2": jax.random.normal(next(ks), (D, dff), jnp.float32) * 0.05,  # linear2.weight
        "b2": jax.random.normal(next(ks), (D,), jnp.float32) * 0.05,
        "n2w": jnp.ones((D,), jnp.float32), "n2b": jnp.zeros((D,), jnp.float32),
    }
    # TODO(synk): PositionalEncoding is constructed in __init__ but never used in the
    # reference forward(), so it is intentionally omitted here.
    return params


def prepare_kernel_params(params):
    """One-time re-layout of PyTorch-native parameters into 3 packed kernel operands:
    an f32 slab of all small params, and bf16 linear1(+bias column) / linear2 weights."""
    g0, g1 = params["gcn"]
    tf = params["tf"]

    wa = tf["wo"] @ tf["wv"]                        # [D, D]   fused seq_len==1 attention
    ba = tf["wo"] @ tf["bv"] + tf["bo"]             # [D]
    p0 = _placement(INPUT_DIM, 0)                   # x   -> cat cols  0:16
    p1 = _placement(HIDDEN_DIM, INPUT_DIM)          # h1  -> cat cols 16:48
    p2 = _placement(HIDDEN_DIM, INPUT_DIM + HIDDEN_DIM)   # h2 -> cat cols 48:80 (folded into W)

    slab = jnp.zeros((SLAB_ROWS, TOTAL_FEAT), jnp.float32)
    slab = slab.at[R_G0W:R_G0W + INPUT_DIM, 0:HIDDEN_DIM].set(g0["W"].T)
    slab = slab.at[R_G1W:R_G1W + HIDDEN_DIM, :].set(g1["W"].T @ p2)
    slab = slab.at[R_WA:R_WA + HIDDEN_DIM, 0:HIDDEN_DIM].set(wa)
    slab = slab.at[R_P0:R_P0 + INPUT_DIM, :].set(p0)
    slab = slab.at[R_P1:R_P1 + HIDDEN_DIM, :].set(p1)
    slab = slab.at[R_VEC:R_VEC + HIDDEN_DIM, 0].set(ba)
    slab = slab.at[R_VEC:R_VEC + HIDDEN_DIM, 1].set(tf["n1w"])
    slab = slab.at[R_VEC:R_VEC + HIDDEN_DIM, 2].set(tf["n1b"])
    slab = slab.at[R_VEC:R_VEC + HIDDEN_DIM, 3].set(tf["n2w"])
    slab = slab.at[R_VEC:R_VEC + HIDDEN_DIM, 4].set(tf["n2b"])
    slab = slab.at[R_VEC:R_VEC + HIDDEN_DIM, 5].set(tf["b2"])
    slab = slab.at[R_G0B, 0:HIDDEN_DIM].set(g0["b"])
    slab = slab.at[R_G1B, :].set(g1["b"] @ p2)

    # linear1 weight + bias packed as bf16 [dff, FF_K] (bias in column HIDDEN_DIM).
    w1aug = jnp.zeros((DIM_FF, FF_K), jnp.float32)
    w1aug = w1aug.at[:, 0:HIDDEN_DIM].set(tf["w1"])
    w1aug = w1aug.at[:, HIDDEN_DIM].set(tf["b1"])
    w1aug = w1aug.astype(jnp.bfloat16)
    w2b = tf["w2"].astype(jnp.bfloat16)             # [D, dff] bf16

    return slab, w1aug, w2b


# ---------------------------------------------------------------------------
# Forward
# ---------------------------------------------------------------------------
@jax.jit
def jk_color_forward(kparams, x, edge_index):
    """x: [num_nodes, input_dim] f32; edge_index: [2, E] int (torch to_dense_adj convention)."""
    n = x.shape[0]
    assert n == HIDDEN_DIM, "module's transpose trick requires num_nodes == hidden_dim"
    slab, w1aug, w2b = kparams

    vmem = pl.BlockSpec(memory_space=pltpu.MemorySpace.VMEM)
    operands = (edge_index.astype(jnp.int32), x, slab, w1aug, w2b)
    return pl.pallas_call(
        _jk_color_kernel,
        out_shape=jax.ShapeDtypeStruct((n, TOTAL_FEAT), jnp.float32),
        in_specs=[vmem] * len(operands),
        out_specs=vmem,
    )(*operands)


def reference_forward(params, x, edge_index):
    """Pure-JAX (non-Pallas) mirror of the PyTorch forward in eval mode, for checking."""
    hp = lax.Precision.HIGHEST
    n = x.shape[0]
    adj = jnp.zeros((n, n), jnp.float32).at[edge_index[0], edge_index[1]].add(1.0)
    deg = jnp.sum(adj, axis=1, keepdims=True)
    outs, h = [x], x
    for i, lp in enumerate(params["gcn"]):
        h = jnp.dot(adj, h, precision=hp) / deg
        h = jnp.dot(h, lp["W"].T, precision=hp) + lp["b"]
        if i < len(params["gcn"]) - 1:
            h = jnp.maximum(h, 0.0)
        outs.append(h)
    s = jnp.concatenate(outs, axis=1).T            # [total_feat, d_model]; seq dim (==1) squeezed
    tf = params["tf"]
    v = jnp.dot(s, tf["wv"].T, precision=hp) + tf["bv"]
    attn = jnp.dot(v, tf["wo"].T, precision=hp) + tf["bo"]

    def ln(y, w, b):
        mu = jnp.mean(y, axis=-1, keepdims=True)
        var = jnp.mean((y - mu) ** 2, axis=-1, keepdims=True)
        return (y - mu) / jnp.sqrt(var + LN_EPS) * w + b

    h1 = ln(s + attn, tf["n1w"], tf["n1b"])
    ffv = jnp.maximum(jnp.dot(h1, tf["w1"].T, precision=hp) + tf["b1"], 0.0)
    ffv = jnp.dot(ffv, tf["w2"].T, precision=hp) + tf["b2"]
    return ln(h1 + ffv, tf["n2w"], tf["n2b"]).T


if __name__ == "__main__":
    key = jax.random.PRNGKey(0)
    k_param, k_x, k_e = jax.random.split(key, 3)

    params = init_params(k_param)
    kparams = prepare_kernel_params(params)

    # Node features: [num_nodes, input_dim]
    x = jax.random.normal(k_x, (NUM_NODES, INPUT_DIM), jnp.float32)

    # edge_index [2, E]: self loops + ring + a few random edges (degree >= 1 everywhere,
    # so the 1/deg normalization matches torch exactly).
    nodes = jnp.arange(NUM_NODES, dtype=jnp.int32)
    src = jnp.concatenate([nodes, nodes,
                           jax.random.randint(k_e, (NUM_NODES,), 0, NUM_NODES, jnp.int32)])
    dst = jnp.concatenate([nodes, (nodes + 1) % NUM_NODES,
                           jax.random.randint(jax.random.fold_in(k_e, 1),
                                              (NUM_NODES,), 0, NUM_NODES, jnp.int32)])
    edge_index = jnp.stack([src, dst], axis=0)     # [2, 96]

    out = jax.block_until_ready(jk_color_forward(kparams, x, edge_index))

    expected_shape = (NUM_NODES, TOTAL_FEAT)
    assert out.shape == expected_shape, (out.shape, expected_shape)
    assert bool(jnp.all(jnp.isfinite(out)))

    # Compare against a pure-JAX f32 mirror of the PyTorch forward.  Tolerance covers bf16
    # rounding of the FFN weights (f32 accumulation keeps the error ~1e-3 scale) and any
    # reduced-precision f32 MXU passes; real bugs show up as O(1) errors.
    ref = jax.block_until_ready(reference_forward(params, x, edge_index))
    max_diff = float(jnp.max(jnp.abs(out - ref)))
    assert bool(jnp.allclose(out, ref, rtol=5e-2, atol=5e-2)), max_diff

    print("KERNEL_OK")
</pallas_src>

<mosaic_0001>
module attributes {stable_mosaic.version = 11 : i64} {
  func.func @_jk_color_kernel(%arg0: memref<2x96xi32, #tpu.memory_space<vmem>>, %arg1: memref<32x16xf32, #tpu.memory_space<vmem>>, %arg2: memref<176x80xf32, #tpu.memory_space<vmem>>, %arg3: memref<2048x40xbf16, #tpu.memory_space<vmem>>, %arg4: memref<32x2048xbf16, #tpu.memory_space<vmem>>, %arg5: memref<32x80xf32, #tpu.memory_space<vmem>>) attributes {dimension_semantics = [], scalar_prefetch = 0 : i64, scratch_operands = 0 : i64, tpu.core_type = #tpu.core_type<tc>} {
    %c0 = arith.constant 0 : index
    %c0_0 = arith.constant 0 : index
    %0 = vector.load %arg0[%c0, %c0_0] : memref<2x96xi32, #tpu.memory_space<vmem>>, vector<1x96xi32>
    %c1 = arith.constant 1 : index
    %c0_1 = arith.constant 0 : index
    %1 = vector.load %arg0[%c1, %c0_1] : memref<2x96xi32, #tpu.memory_space<vmem>>, vector<1x96xi32>
    %2 = tpu.iota {dimensions = array<i32: 0>} : vector<32x96xi32>
    %3 = vector.broadcast %0 : vector<1x96xi32> to vector<32x96xi32>
    %4 = arith.cmpi eq, %2, %3 : vector<32x96xi32>
    %5 = arith.extui %4 : vector<32x96xi1> to vector<32x96xi32>
    %6 = arith.sitofp %5 : vector<32x96xi32> to vector<32x96xf32>
    %7 = vector.broadcast %1 : vector<1x96xi32> to vector<32x96xi32>
    %8 = arith.cmpi eq, %2, %7 : vector<32x96xi32>
    %9 = arith.extui %8 : vector<32x96xi1> to vector<32x96xi32>
    %10 = arith.sitofp %9 : vector<32x96xi32> to vector<32x96xf32>
    %cst = arith.constant dense<0.000000e+00> : vector<32x32xf32>
    %11 = tpu.matmul %6, %10, %cst {dimension_numbers = #tpu.dot_dimension_numbers<[1], [1], [0], [0], [0, 0, 1, 0], [], []>} : vector<32x96xf32>, vector<32x96xf32>, vector<32x32xf32> -> vector<32x32xf32>
    %cst_2 = arith.constant dense<0.000000e+00> : vector<32xf32>
    %12 = vector.multi_reduction <add>, %11, %cst_2 [1] : vector<32x32xf32> to vector<32xf32>
    %13 = vector.shape_cast %12 : vector<32xf32> to vector<32x1xf32>
    %cst_3 = arith.constant 1.000000e+00 : f32
    %14 = vector.broadcast %cst_3 : f32 to vector<32x1xf32>
    %15 = arith.maximumf %13, %14 : vector<32x1xf32>
    %16 = vector.broadcast %15 : vector<32x1xf32> to vector<32x32xf32>
    %17 = arith.divf %11, %16 : vector<32x32xf32>
    %c0_4 = arith.constant 0 : index
    %c0_5 = arith.constant 0 : index
    %18 = vector.load %arg1[%c0_4, %c0_5] : memref<32x16xf32, #tpu.memory_space<vmem>>, vector<32x16xf32>
    %c0_6 = arith.constant 0 : index
    %c0_7 = arith.constant 0 : index
    %19 = vector.load %arg2[%c0_6, %c0_7] : memref<176x80xf32, #tpu.memory_space<vmem>>, vector<16x32xf32>
    %c160 = arith.constant 160 : index
    %c0_8 = arith.constant 0 : index
    %20 = vector.load %arg2[%c160, %c0_8] : memref<176x80xf32, #tpu.memory_space<vmem>>, vector<1x32xf32>
    %cst_9 = arith.constant dense<0.000000e+00> : vector<32x16xf32>
    %21 = tpu.matmul %17, %18, %cst_9 {dimension_numbers = #tpu.dot_dimension_numbers<[1], [0], [0], [1], [0, 0, 1, 1], [], []>} : vector<32x32xf32>, vector<32x16xf32>, vector<32x16xf32> -> vector<32x16xf32>
    %cst_10 = arith.constant dense<0.000000e+00> : vector<32x32xf32>
    %22 = tpu.matmul %21, %19, %cst_10 {dimension_numbers = #tpu.dot_dimension_numbers<[1], [0], [0], [1], [0, 0, 1, 1], [], []>} : vector<32x16xf32>, vector<16x32xf32>, vector<32x32xf32> -> vector<32x32xf32>
    %23 = vector.broadcast %20 : vector<1x32xf32> to vector<32x32xf32>
    %24 = arith.addf %22, %23 : vector<32x32xf32>
    %cst_11 = arith.constant 0.000000e+00 : f32
    %25 = vector.broadcast %cst_11 : f32 to vector<32x32xf32>
    %26 = arith.maximumf %24, %25 : vector<32x32xf32>
    %c16 = arith.constant 16 : index
    %c0_12 = arith.constant 0 : index
    %27 = vector.load %arg2[%c16, %c0_12] : memref<176x80xf32, #tpu.memory_space<vmem>>, vector<32x80xf32>
    %c168 = arith.constant 168 : index
    %c0_13 = arith.constant 0 : index
    %28 = vector.load %arg2[%c168, %c0_13] : memref<176x80xf32, #tpu.memory_space<vmem>>, vector<1x80xf32>
    %cst_14 = arith.constant dense<0.000000e+00> : vector<32x32xf32>
    %29 = tpu.matmul %17, %26, %cst_14 {dimension_numbers = #tpu.dot_dimension_numbers<[1], [0], [0], [1], [0, 0, 1, 1], [], []>} : vector<32x32xf32>, vector<32x32xf32>, vector<32x32xf32> -> vector<32x32xf32>
    %cst_15 = arith.constant dense<0.000000e+00> : vector<32x80xf32>
    %30 = tpu.matmul %29, %27, %cst_15 {dimension_numbers = #tpu.dot_dimension_numbers<[1], [0], [0], [1], [0, 0, 1, 1], [], []>} : vector<32x32xf32>, vector<32x80xf32>, vector<32x80xf32> -> vector<32x80xf32>
    %31 = vector.broadcast %28 : vector<1x80xf32> to vector<32x80xf32>
    %32 = arith.addf %30, %31 : vector<32x80xf32>
    %c80 = arith.constant 80 : index
    %c0_16 = arith.constant 0 : index
    %33 = vector.load %arg2[%c80, %c0_16] : memref<176x80xf32, #tpu.memory_space<vmem>>, vector<16x80xf32>
    %c96 = arith.constant 96 : index
    %c0_17 = arith.constant 0 : index
    %34 = vector.load %arg2[%c96, %c0_17] : memref<176x80xf32, #tpu.memory_space<vmem>>, vector<32x80xf32>
    %cst_18 = arith.constant dense<0.000000e+00> : vector<32x80xf32>
    %35 = tpu.matmul %18, %33, %cst_18 {dimension_numbers = #tpu.dot_dimension_numbers<[1], [0], [0], [1], [0, 0, 1, 1], [], []>} : vector<32x16xf32>, vector<16x80xf32>, vector<32x80xf32> -> vector<32x80xf32>
    %cst_19 = arith.constant dense<0.000000e+00> : vector<32x80xf32>
    %36 = tpu.matmul %26, %34, %cst_19 {dimension_numbers = #tpu.dot_dimension_numbers<[1], [0], [0], [1], [0, 0, 1, 1], [], []>} : vector<32x32xf32>, vector<32x80xf32>, vector<32x80xf32> -> vector<32x80xf32>
    %37 = arith.addf %35, %36 : vector<32x80xf32>
    %38 = arith.addf %37, %32 : vector<32x80xf32>
    %c48 = arith.constant 48 : index
    %c0_20 = arith.constant 0 : index
    %39 = vector.load %arg2[%c48, %c0_20] : memref<176x80xf32, #tpu.memory_space<vmem>>, vector<32x32xf32>
    %c128 = arith.constant 128 : index
    %c0_21 = arith.constant 0 : index
    %40 = vector.load %arg2[%c128, %c0_21] : memref<176x80xf32, #tpu.memory_space<vmem>>, vector<32x8xf32>
    %41 = vector.extract_strided_slice %40 {offsets = [0, 0], sizes = [32, 1], strides = [1, 1]} : vector<32x8xf32> to vector<32x1xf32>
    %42 = vector.extract_strided_slice %40 {offsets = [0, 1], sizes = [32, 1], strides = [1, 1]} : vector<32x8xf32> to vector<32x1xf32>
    %43 = vector.extract_strided_slice %40 {offsets = [0, 2], sizes = [32, 1], strides = [1, 1]} : vector<32x8xf32> to vector<32x1xf32>
    %44 = vector.extract_strided_slice %40 {offsets = [0, 3], sizes = [32, 1], strides = [1, 1]} : vector<32x8xf32> to vector<32x1xf32>
    %45 = vector.extract_strided_slice %40 {offsets = [0, 4], sizes = [32, 1], strides = [1, 1]} : vector<32x8xf32> to vector<32x1xf32>
    %46 = vector.extract_strided_slice %40 {offsets = [0, 5], sizes = [32, 1], strides = [1, 1]} : vector<32x8xf32> to vector<32x1xf32>
    %cst_22 = arith.constant dense<0.000000e+00> : vector<32x80xf32>
    %47 = tpu.matmul %39, %38, %cst_22 {dimension_numbers = #tpu.dot_dimension_numbers<[1], [0], [0], [1], [0, 0, 1, 1], [], []>} : vector<32x32xf32>, vector<32x80xf32>, vector<32x80xf32> -> vector<32x80xf32>
    %48 = vector.broadcast %41 : vector<32x1xf32> to vector<32x80xf32>
    %49 = arith.addf %47, %48 : vector<32x80xf32>
    %50 = arith.addf %38, %49 : vector<32x80xf32>
    %cst_23 = arith.constant dense<0.000000e+00> : vector<80xf32>
    %51 = vector.multi_reduction <add>, %50, %cst_23 [0] : vector<32x80xf32> to vector<80xf32>
    %52 = vector.shape_cast %51 : vector<80xf32> to vector<1x80xf32>
    %cst_24 = arith.constant 3.200000e+01 : f32
    %53 = vector.broadcast %cst_24 : f32 to vector<1x80xf32>
    %54 = arith.divf %52, %53 : vector<1x80xf32>
    %55 = vector.broadcast %54 : vector<1x80xf32> to vector<32x80xf32>
    %56 = arith.subf %50, %55 : vector<32x80xf32>
    %57 = arith.mulf %56, %56 : vector<32x80xf32>
    %cst_25 = arith.constant dense<0.000000e+00> : vector<80xf32>
    %58 = vector.multi_reduction <add>, %57, %cst_25 [0] : vector<32x80xf32> to vector<80xf32>
    %59 = vector.shape_cast %58 : vector<80xf32> to vector<1x80xf32>
    %cst_26 = arith.constant 3.200000e+01 : f32
    %60 = vector.broadcast %cst_26 : f32 to vector<1x80xf32>
    %61 = arith.divf %59, %60 : vector<1x80xf32>
    %62 = vector.broadcast %54 : vector<1x80xf32> to vector<32x80xf32>
    %63 = arith.subf %50, %62 : vector<32x80xf32>
    %cst_27 = arith.constant 9.99999974E-6 : f32
    %64 = vector.broadcast %cst_27 : f32 to vector<1x80xf32>
    %65 = arith.addf %61, %64 : vector<1x80xf32>
    %66 = math.rsqrt %65 : vector<1x80xf32>
    %67 = vector.broadcast %66 : vector<1x80xf32> to vector<32x80xf32>
    %68 = arith.mulf %63, %67 : vector<32x80xf32>
    %69 = vector.broadcast %42 : vector<32x1xf32> to vector<32x80xf32>
    %70 = arith.mulf %68, %69 : vector<32x80xf32>
    %71 = vector.broadcast %43 : vector<32x1xf32> to vector<32x80xf32>
    %72 = arith.addf %70, %71 : vector<32x80xf32>
    %73 = tpu.iota {dimensions = array<i32: 0>} : vector<8x80xi32>
    %c0_i32 = arith.constant 0 : i32
    %74 = vector.broadcast %c0_i32 : i32 to vector<8x80xi32>
    %75 = arith.cmpi eq, %73, %74 : vector<8x80xi32>
    %76 = arith.extui %75 : vector<8x80xi1> to vector<8x80xi32>
    %77 = arith.sitofp %76 : vector<8x80xi32> to vector<8x80xf32>
    %78 = tpu.concatenate %72, %77 in 0 : vector<32x80xf32>, vector<8x80xf32> -> vector<40x80xf32>
    %79 = arith.truncf %78 : vector<40x80xf32> to vector<40x80xbf16>
    %cst_28 = arith.constant 0.000000e+00 : f32
    %80 = vector.broadcast %cst_28 : f32 to vector<32x80xf32>
    %c0_29 = arith.constant 0 : index
    %c0_30 = arith.constant 0 : index
    %81 = vector.load %arg3[%c0_29, %c0_30] : memref<2048x40xbf16, #tpu.memory_space<vmem>>, vector<256x40xbf16>
    %cst_31 = arith.constant dense<0.000000e+00> : vector<256x80xf32>
    %82 = tpu.matmul %81, %79, %cst_31 {dimension_numbers = #tpu.dot_dimension_numbers<[1], [0], [0], [1], [0, 0, 1, 1], [], []>} : vector<256x40xbf16>, vector<40x80xbf16>, vector<256x80xf32> -> vector<256x80xf32>
    %cst_32 = arith.constant 0.000000e+00 : f32
    %83 = vector.broadcast %cst_32 : f32 to vector<256x80xf32>
    %84 = arith.maximumf %82, %83 : vector<256x80xf32>
    %85 = arith.truncf %84 : vector<256x80xf32> to vector<256x80xbf16>
    %c0_33 = arith.constant 0 : index
    %c0_34 = arith.constant 0 : index
    %86 = vector.load %arg4[%c0_33, %c0_34] : memref<32x2048xbf16, #tpu.memory_space<vmem>>, vector<32x256xbf16>
    %cst_35 = arith.constant dense<0.000000e+00> : vector<32x80xf32>
    %87 = tpu.matmul %86, %85, %cst_35 {dimension_numbers = #tpu.dot_dimension_numbers<[1], [0], [0], [1], [0, 0, 1, 1], [], []>} : vector<32x256xbf16>, vector<256x80xbf16>, vector<32x80xf32> -> vector<32x80xf32>
    %88 = arith.addf %80, %87 : vector<32x80xf32>
    %c256 = arith.constant 256 : index
    %c0_36 = arith.constant 0 : index
    %89 = vector.load %arg3[%c256, %c0_36] : memref<2048x40xbf16, #tpu.memory_space<vmem>>, vector<256x40xbf16>
    %cst_37 = arith.constant dense<0.000000e+00> : vector<256x80xf32>
    %90 = tpu.matmul %89, %79, %cst_37 {dimension_numbers = #tpu.dot_dimension_numbers<[1], [0], [0], [1], [0, 0, 1, 1], [], []>} : vector<256x40xbf16>, vector<40x80xbf16>, vector<256x80xf32> -> vector<256x80xf32>
    %cst_38 = arith.constant 0.000000e+00 : f32
    %91 = vector.broadcast %cst_38 : f32 to vector<256x80xf32>
    %92 = arith.maximumf %90, %91 : vector<256x80xf32>
    %93 = arith.truncf %92 : vector<256x80xf32> to vector<256x80xbf16>
    %c0_39 = arith.constant 0 : index
    %c256_40 = arith.constant 256 : index
    %94 = vector.load %arg4[%c0_39, %c256_40] : memref<32x2048xbf16, #tpu.memory_space<vmem>>, vector<32x256xbf16>
    %cst_41 = arith.constant dense<0.000000e+00> : vector<32x80xf32>
    %95 = tpu.matmul %94, %93, %cst_41 {dimension_numbers = #tpu.dot_dimension_numbers<[1], [0], [0], [1], [0, 0, 1, 1], [], []>} : vector<32x256xbf16>, vector<256x80xbf16>, vector<32x80xf32> -> vector<32x80xf32>
    %96 = arith.addf %88, %95 : vector<32x80xf32>
    %c512 = arith.constant 512 : index
    %c0_42 = arith.constant 0 : index
    %97 = vector.load %arg3[%c512, %c0_42] : memref<2048x40xbf16, #tpu.memory_space<vmem>>, vector<256x40xbf16>
    %cst_43 = arith.constant dense<0.000000e+00> : vector<256x80xf32>
    %98 = tpu.matmul %97, %79, %cst_43 {dimension_numbers = #tpu.dot_dimension_numbers<[1], [0], [0], [1], [0, 0, 1, 1], [], []>} : vector<256x40xbf16>, vector<40x80xbf16>, vector<256x80xf32> -> vector<256x80xf32>
    %cst_44 = arith.constant 0.000000e+00 : f32
    %99 = vector.broadcast %cst_44 : f32 to vector<256x80xf32>
    %100 = arith.maximumf %98, %99 : vector<256x80xf32>
    %101 = arith.truncf %100 : vector<256x80xf32> to vector<256x80xbf16>
    %c0_45 = arith.constant 0 : index
    %c512_46 = arith.constant 512 : index
    %102 = vector.load %arg4[%c0_45, %c512_46] : memref<32x2048xbf16, #tpu.memory_space<vmem>>, vector<32x256xbf16>
    %cst_47 = arith.constant dense<0.000000e+00> : vector<32x80xf32>
    %103 = tpu.matmul %102, %101, %cst_47 {dimension_numbers = #tpu.dot_dimension_numbers<[1], [0], [0], [1], [0, 0, 1, 1], [], []>} : vector<32x256xbf16>, vector<256x80xbf16>, vector<32x80xf32> -> vector<32x80xf32>
    %104 = arith.addf %96, %103 : vector<32x80xf32>
    %c768 = arith.constant 768 : index
    %c0_48 = arith.constant 0 : index
    %105 = vector.load %arg3[%c768, %c0_48] : memref<2048x40xbf16, #tpu.memory_space<vmem>>, vector<256x40xbf16>
    %cst_49 = arith.constant dense<0.000000e+00> : vector<256x80xf32>
    %106 = tpu.matmul %105, %79, %cst_49 {dimension_numbers = #tpu.dot_dimension_numbers<[1], [0], [0], [1], [0, 0, 1, 1], [], []>} : vector<256x40xbf16>, vector<40x80xbf16>, vector<256x80xf32> -> vector<256x80xf32>
    %cst_50 = arith.constant 0.000000e+00 : f32
    %107 = vector.broadcast %cst_50 : f32 to vector<256x80xf32>
    %108 = arith.maximumf %106, %107 : vector<256x80xf32>
    %109 = arith.truncf %108 : vector<256x80xf32> to vector<256x80xbf16>
    %c0_51 = arith.constant 0 : index
    %c768_52 = arith.constant 768 : index
    %110 = vector.load %arg4[%c0_51, %c768_52] : memref<32x2048xbf16, #tpu.memory_space<vmem>>, vector<32x256xbf16>
    %cst_53 = arith.constant dense<0.000000e+00> : vector<32x80xf32>
    %111 = tpu.matmul %110, %109, %cst_53 {dimension_numbers = #tpu.dot_dimension_numbers<[1], [0], [0], [1], [0, 0, 1, 1], [], []>} : vector<32x256xbf16>, vector<256x80xbf16>, vector<32x80xf32> -> vector<32x80xf32>
    %112 = arith.addf %104, %111 : vector<32x80xf32>
    %c1024 = arith.constant 1024 : index
    %c0_54 = arith.constant 0 : index
    %113 = vector.load %arg3[%c1024, %c0_54] : memref<2048x40xbf16, #tpu.memory_space<vmem>>, vector<256x40xbf16>
    %cst_55 = arith.constant dense<0.000000e+00> : vector<256x80xf32>
    %114 = tpu.matmul %113, %79, %cst_55 {dimension_numbers = #tpu.dot_dimension_numbers<[1], [0], [0], [1], [0, 0, 1, 1], [], []>} : vector<256x40xbf16>, vector<40x80xbf16>, vector<256x80xf32> -> vector<256x80xf32>
    %cst_56 = arith.constant 0.000000e+00 : f32
    %115 = vector.broadcast %cst_56 : f32 to vector<256x80xf32>
    %116 = arith.maximumf %114, %115 : vector<256x80xf32>
    %117 = arith.truncf %116 : vector<256x80xf32> to vector<256x80xbf16>
    %c0_57 = arith.constant 0 : index
    %c1024_58 = arith.constant 1024 : index
    %118 = vector.load %arg4[%c0_57, %c1024_58] : memref<32x2048xbf16, #tpu.memory_space<vmem>>, vector<32x256xbf16>
    %cst_59 = arith.constant dense<0.000000e+00> : vector<32x80xf32>
    %119 = tpu.matmul %118, %117, %cst_59 {dimension_numbers = #tpu.dot_dimension_numbers<[1], [0], [0], [1], [0, 0, 1, 1], [], []>} : vector<32x256xbf16>, vector<256x80xbf16>, vector<32x80xf32> -> vector<32x80xf32>
    %120 = arith.addf %112, %119 : vector<32x80xf32>
    %c1280 = arith.constant 1280 : index
    %c0_60 = arith.constant 0 : index
    %121 = vector.load %arg3[%c1280, %c0_60] : memref<2048x40xbf16, #tpu.memory_space<vmem>>, vector<256x40xbf16>
    %cst_61 = arith.constant dense<0.000000e+00> : vector<256x80xf32>
    %122 = tpu.matmul %121, %79, %cst_61 {dimension_numbers = #tpu.dot_dimension_numbers<[1], [0], [0], [1], [0, 0, 1, 1], [], []>} : vector<256x40xbf16>, vector<40x80xbf16>, vector<256x80xf32> -> vector<256x80xf32>
    %cst_62 = arith.constant 0.000000e+00 : f32
    %123 = vector.broadcast %cst_62 : f32 to vector<256x80xf32>
    %124 = arith.maximumf %122, %123 : vector<256x80xf32>
    %125 = arith.truncf %124 : vector<256x80xf32> to vector<256x80xbf16>
    %c0_63 = arith.constant 0 : index
    %c1280_64 = arith.constant 1280 : index
    %126 = vector.load %arg4[%c0_63, %c1280_64] : memref<32x2048xbf16, #tpu.memory_space<vmem>>, vector<32x256xbf16>
    %cst_65 = arith.constant dense<0.000000e+00> : vector<32x80xf32>
    %127 = tpu.matmul %126, %125, %cst_65 {dimension_numbers = #tpu.dot_dimension_numbers<[1], [0], [0], [1], [0, 0, 1, 1], [], []>} : vector<32x256xbf16>, vector<256x80xbf16>, vector<32x80xf32> -> vector<32x80xf32>
    %128 = arith.addf %120, %127 : vector<32x80xf32>
    %c1536 = arith.constant 1536 : index
    %c0_66 = arith.constant 0 : index
    %129 = vector.load %arg3[%c1536, %c0_66] : memref<2048x40xbf16, #tpu.memory_space<vmem>>, vector<256x40xbf16>
    %cst_67 = arith.constant dense<0.000000e+00> : vector<256x80xf32>
    %130 = tpu.matmul %129, %79, %cst_67 {dimension_numbers = #tpu.dot_dimension_numbers<[1], [0], [0], [1], [0, 0, 1, 1], [], []>} : vector<256x40xbf16>, vector<40x80xbf16>, vector<256x80xf32> -> vector<256x80xf32>
    %cst_68 = arith.constant 0.000000e+00 : f32
    %131 = vector.broadcast %cst_68 : f32 to vector<256x80xf32>
    %132 = arith.maximumf %130, %131 : vector<256x80xf32>
    %133 = arith.truncf %132 : vector<256x80xf32> to vector<256x80xbf16>
    %c0_69 = arith.constant 0 : index
    %c1536_70 = arith.constant 1536 : index
    %134 = vector.load %arg4[%c0_69, %c1536_70] : memref<32x2048xbf16, #tpu.memory_space<vmem>>, vector<32x256xbf16>
    %cst_71 = arith.constant dense<0.000000e+00> : vector<32x80xf32>
    %135 = tpu.matmul %134, %133, %cst_71 {dimension_numbers = #tpu.dot_dimension_numbers<[1], [0], [0], [1], [0, 0, 1, 1], [], []>} : vector<32x256xbf16>, vector<256x80xbf16>, vector<32x80xf32> -> vector<32x80xf32>
    %136 = arith.addf %128, %135 : vector<32x80xf32>
    %c1792 = arith.constant 1792 : index
    %c0_72 = arith.constant 0 : index
    %137 = vector.load %arg3[%c1792, %c0_72] : memref<2048x40xbf16, #tpu.memory_space<vmem>>, vector<256x40xbf16>
    %cst_73 = arith.constant dense<0.000000e+00> : vector<256x80xf32>
    %138 = tpu.matmul %137, %79, %cst_73 {dimension_numbers = #tpu.dot_dimension_numbers<[1], [0], [0], [1], [0, 0, 1, 1], [], []>} : vector<256x40xbf16>, vector<40x80xbf16>, vector<256x80xf32> -> vector<256x80xf32>
    %cst_74 = arith.constant 0.000000e+00 : f32
    %139 = vector.broadcast %cst_74 : f32 to vector<256x80xf32>
    %140 = arith.maximumf %138, %139 : vector<256x80xf32>
    %141 = arith.truncf %140 : vector<256x80xf32> to vector<256x80xbf16>
    %c0_75 = arith.constant 0 : index
    %c1792_76 = arith.constant 1792 : index
    %142 = vector.load %arg4[%c0_75, %c1792_76] : memref<32x2048xbf16, #tpu.memory_space<vmem>>, vector<32x256xbf16>
    %cst_77 = arith.constant dense<0.000000e+00> : vector<32x80xf32>
    %143 = tpu.matmul %142, %141, %cst_77 {dimension_numbers = #tpu.dot_dimension_numbers<[1], [0], [0], [1], [0, 0, 1, 1], [], []>} : vector<32x256xbf16>, vector<256x80xbf16>, vector<32x80xf32> -> vector<32x80xf32>
    %144 = arith.addf %136, %143 : vector<32x80xf32>
    %145 = vector.broadcast %46 : vector<32x1xf32> to vector<32x80xf32>
    %146 = arith.addf %144, %145 : vector<32x80xf32>
    %147 = arith.addf %72, %146 : vector<32x80xf32>
    %cst_78 = arith.constant dense<0.000000e+00> : vector<80xf32>
    %148 = vector.multi_reduction <add>, %147, %cst_78 [0] : vector<32x80xf32> to vector<80xf32>
    %149 = vector.shape_cast %148 : vector<80xf32> to vector<1x80xf32>
    %cst_79 = arith.constant 3.200000e+01 : f32
    %150 = vector.broadcast %cst_79 : f32 to vector<1x80xf32>
    %151 = arith.divf %149, %150 : vector<1x80xf32>
    %152 = vector.broadcast %151 : vector<1x80xf32> to vector<32x80xf32>
    %153 = arith.subf %147, %152 : vector<32x80xf32>
    %154 = arith.mulf %153, %153 : vector<32x80xf32>
    %cst_80 = arith.constant dense<0.000000e+00> : vector<80xf32>
    %155 = vector.multi_reduction <add>, %154, %cst_80 [0] : vector<32x80xf32> to vector<80xf32>
    %156 = vector.shape_cast %155 : vector<80xf32> to vector<1x80xf32>
    %cst_81 = arith.constant 3.200000e+01 : f32
    %157 = vector.broadcast %cst_81 : f32 to vector<1x80xf32>
    %158 = arith.divf %156, %157 : vector<1x80xf32>
    %159 = vector.broadcast %151 : vector<1x80xf32> to vector<32x80xf32>
    %160 = arith.subf %147, %159 : vector<32x80xf32>
    %cst_82 = arith.constant 9.99999974E-6 : f32
    %161 = vector.broadcast %cst_82 : f32 to vector<1x80xf32>
    %162 = arith.addf %158, %161 : vector<1x80xf32>
    %163 = math.rsqrt %162 : vector<1x80xf32>
    %164 = vector.broadcast %163 : vector<1x80xf32> to vector<32x80xf32>
    %165 = arith.mulf %160, %164 : vector<32x80xf32>
    %166 = vector.broadcast %44 : vector<32x1xf32> to vector<32x80xf32>
    %167 = arith.mulf %165, %166 : vector<32x80xf32>
    %168 = vector.broadcast %45 : vector<32x1xf32> to vector<32x80xf32>
    %169 = arith.addf %167, %168 : vector<32x80xf32>
    %c0_83 = arith.constant 0 : index
    %c0_84 = arith.constant 0 : index
    %170 = vector.load %arg5[%c0_83, %c0_84] : memref<32x80xf32, #tpu.memory_space<vmem>>, vector<32x80xf32>
    tpu.vector_store %arg5[%c0_83, %c0_84], %169 {strides = array<i32>} : memref<32x80xf32, #tpu.memory_space<vmem>>, vector<32x80xf32>,
    return
  }
}

</mosaic_0001>

<llo_original>
// kernel: jk_color_forward.1
$region0: #{jk_color_forward.1}
  #allocation0 [shape = 'u32[]', space=smem, size = 0x4, offset = 0x4, fixed_abs, tag = 'smem constant byte address 0x4 - core index']
  #allocation1 [shape = 'u32[144,128]{1,0:T(1,128)}', space=vmem, size = 0x12000, scoped, tag = 'internal scratch']
  %s0 = inlined_call_operand.vmem [shape: s32[2,96], index: 0, kind: input, shape index: {}]
  %s1 = inlined_call_operand.vmem [shape: f32[32,16], index: 1, kind: input, shape index: {}]
  %s2 = inlined_call_operand.vmem [shape: f32[176,80], index: 2, kind: input, shape index: {}]
  %s3 = inlined_call_operand.vmem [shape: bf16[2048,40], index: 3, kind: input, shape index: {}]
  %s4 = inlined_call_operand.vmem [shape: bf16[32,2048], index: 4, kind: input, shape index: {}]
  %s5 = inlined_call_operand.hbm [shape: f32[32,80], index: 5, kind: output, shape index: {}]
  %s6 = sld [smem:[#allocation0]]
  $region30: #{jk_color_forward.1} parent=0
    _
  %s8 = ssub.s32 1, %s6
  %s9 = scalar_select 0, %s8, %s6
  $region1: #{jk_color_forward.1} parent=0
    #allocation2 [shape = 'u8[16384]{0}', space=vmem, size = 0x4000, scoped, tag = 'output window, operand 0, single buffered']
    #allocation3 [shape = 's32[1]{0}', space=sflag, size = 0x4, scoped, tag = 'scoped memory for jk_color_forward.1']
    %10 = vsyncpa [#allocation3], 0
    // Predicated region
    $region2: #{jk_color_forward.1} parent=1 // pred_check
      _
    $region3: #{jk_color_forward.1} parent=1 // pred_check_branch
      %12 = sbr.rel (0) target = $region5
    $region4: #{jk_color_forward.1} parent=1 // pred_region
      _
    $region5: #{jk_color_forward.1} parent=1 // pred_fallthru
      _
    // Predicated region
    $region6: #{jk_color_forward.1} parent=1 // pred_check
      _
    $region7: #{jk_color_forward.1} parent=1 // pred_check_branch
      %14 = sbr.rel (0) target = $region9
    $region8: #{jk_color_forward.1} parent=1 // pred_region
      _
    $region9: #{jk_color_forward.1} parent=1 // pred_fallthru
      _
    // Predicated region
    $region10: #{jk_color_forward.1} parent=1 // pred_check
      _
    $region11: #{jk_color_forward.1} parent=1 // pred_check_branch
      %16 = sbr.rel (0) target = $region13
    $region12: #{jk_color_forward.1} parent=1 // pred_region
      _
    $region13: #{jk_color_forward.1} parent=1 // pred_fallthru
      _
    // Predicated region
    $region14: #{jk_color_forward.1} parent=1 // pred_check
      _
    $region15: #{jk_color_forward.1} parent=1 // pred_check_branch
      %18 = sbr.rel (0) target = $region17
    $region16: #{jk_color_forward.1} parent=1 // pred_region
      _
    $region17: #{jk_color_forward.1} parent=1 // pred_fallthru
      _
    // Predicated region
    $region18: #{jk_color_forward.1} parent=1 // pred_check
      _
    $region19: #{jk_color_forward.1} parent=1 // pred_check_branch
      %20 = sbr.rel (0) target = $region21
    $region20: #{jk_color_forward.1} parent=1 // pred_region
      _
    $region21: #{jk_color_forward.1} parent=1 // pred_fallthru
      _
    %v22 = vld [vmem:[%s0] sm:$0x1]
    %v23 = vld [vmem:[%s0 + $0x1] sm:$0x1]
    %v24 = vlaneseq
    %v25 = vshrl.u32 %v24, 7
    %v26 = vadd.s32 %v25, 8
    %v27 = vadd.s32 %v25, 16
    %v28 = vadd.s32 %v25, 24
    %v29 = vlaneseq
    %v30 = vshrl.u32 %v29, 7
    %v31 = vsub.s32 0, %v30
    %v32 = vrot.slane %v22, %v31
    %vm33 = vcmp.eq.s32.totalorder %v25, %v32
    %vm34 = vcmp.eq.s32.totalorder %v26, %v32
    %vm35 = vcmp.eq.s32.totalorder %v27, %v32
    %vm36 = vcmp.eq.s32.totalorder %v28, %v32
    %v37 = vsel %vm33, 1, 0
    %v38 = vsel %vm34, 1, 0
    %v39 = vsel %vm35, 1, 0
    %v40 = vsel %vm36, 1, 0
    %v41 = vcvt.s32.f32 %v37
    %v42 = vcvt.s32.f32 %v38
    %v43 = vcvt.s32.f32 %v39
    %v44 = vcvt.s32.f32 %v40
    %v45 = vlaneseq
    %v46 = vshrl.u32 %v45, 7
    %v47 = vsub.s32 0, %v46
    %v48 = vrot.slane %v23, %v47
    %vm49 = vcmp.eq.s32.totalorder %v25, %v48
    %vm50 = vcmp.eq.s32.totalorder %v26, %v48
    %vm51 = vcmp.eq.s32.totalorder %v27, %v48
    %vm52 = vcmp.eq.s32.totalorder %v28, %v48
    %v53 = vsel %vm49, 1, 0
    %v54 = vsel %vm50, 1, 0
    %v55 = vsel %vm51, 1, 0
    %v56 = vsel %vm52, 1, 0
    %v57 = vcvt.s32.f32 %v53
    %v58 = vcvt.s32.f32 %v54
    %v59 = vcvt.s32.f32 %v55
    %v60 = vcvt.s32.f32 %v56
    %vm61 = vcmask 785408
    %v63 = vsel %vm61, %v41, 0
    %v66 = vsel %vm61, %v42, 0
    %v69 = vsel %vm61, %v43, 0
    %v72 = vsel %vm61, %v44, 0
    %v75 = vsel %vm61, %v57, 0
    %v78 = vsel %vm61, %v58, 0
    %v81 = vsel %vm61, %v59, 0
    %v84 = vsel %vm61, %v60, 0
    %86 = vmatprep.subr.mxu0 0.0
    %87 = vmatpush1.xpose.msra.mxu0 %v75
    %88 = vmatprep.subr.mxu0 0.0
    %89 = vmatpush1.xpose.msra.mxu0 %v78
    %90 = vmatprep.subr.mxu0 0.0
    %91 = vmatpush1.xpose.msra.mxu0 %v81
    %92 = vmatprep.subr.mxu0 0.0
    %93 = vmatpush1.xpose.msra.mxu0 %v84
    %94 = vmatprep.subr.mxu0 0.0
    %95 = vmatpush1.xpose.msra.mxu0 0.0
    %96 = vmatprep.subr.mxu0 0.0
    %97 = vmatpush1.xpose.msra.mxu0 0.0
    %98 = vmatprep.subr.mxu0 0.0
    %99 = vmatpush1.xpose.msra.mxu0 0.0
    %100 = vmatprep.subr.mxu0 0.0
    %101 = vmatpush1.xpose.msra.mxu0 0.0
    %102 = vmatprep.subr.mxu0 0.0
    %103 = vmatpush1.xpose.msra.mxu0 0.0
    %104 = vmatprep.subr.mxu0 0.0
    %105 = vmatpush1.xpose.msra.mxu0 0.0
    %106 = vmatprep.subr.mxu0 0.0
    %107 = vmatpush1.xpose.msra.mxu0 0.0
    %108 = vmatprep.subr.mxu0 0.0
    %109 = vmatpush1.xpose.msra.mxu0 0.0
    %110 = vmatprep.subr.mxu0 0.0
    %111 = vmatpush1.xpose.msra.mxu0 0.0
    %112 = vmatprep.subr.mxu0 0.0
    %113 = vmatpush1.xpose.msra.mxu0 0.0
    %114 = vmatprep.subr.mxu0 0.0
    %115 = vmatpush1.xpose.msra.mxu0 0.0
    %116 = vmatprep.subr.mxu0 0.0
    %117 = vmatpush1.xpose.msra.mxu0 0.0
    %118 = vmatprep.subr.mxu0 0.0
    %119 = vmatpush1.xpose.msra.mxu0 0.0
    %120 = vmatprep.subr.mxu0 0.0
    %121 = vmatpush1.xpose.msra.mxu0 0.0
    %122 = vmatprep.subr.mxu0 0.0
    %123 = vmatpush1.xpose.msra.mxu0 0.0
    %124 = vmatprep.subr.mxu0 0.0
    %125 = vmatpush1.xpose.msra.mxu0 0.0
    %126 = vmatprep.subr.mxu0 0.0
    %127 = vmatpush1.xpose.msra.mxu0 0.0
    %128 = vmatprep.subr.mxu0 0.0
    %129 = vmatpush1.xpose.msra.mxu0 0.0
    %130 = vmatprep.subr.mxu0 0.0
    %131 = vmatpush1.xpose.msra.mxu0 0.0
    %132 = vmatprep.subr.mxu0 0.0
    %133 = vmatpush1.xpose.msra.mxu0 0.0
    %134 = vmatprep.subr.mxu0 0.0
    %135 = vmatpush1.xpose.msra.mxu0 0.0
    %136 = vmatprep.subr.mxu0 0.0
    %137 = vmatpush1.xpose.msra.mxu0 0.0
    %138 = vmatprep.subr.mxu0 0.0
    %139 = vmatpush1.xpose.msra.mxu0 0.0
    %140 = vmatprep.subr.mxu0 0.0
    %141 = vmatpush1.xpose.msra.mxu0 0.0
    %142 = vmatprep.subr.mxu0 0.0
    %143 = vmatpush1.xpose.msra.mxu0 0.0
    %144 = vmatprep.subr.mxu0 0.0
    %145 = vmatpush1.xpose.msra.mxu0 0.0
    %146 = vmatprep.subr.mxu0 0.0
    %147 = vmatpush1.xpose.msra.mxu0 0.0
    %148 = vmatprep.subr.mxu0 0.0
    %149 = vmatpush1.xpose.msra.mxu0 0.0
    %150 = vmatprep.mubr.f32.mxu0 0.0
    %151 = vmatmul.mubr.f32.gmra.mrb[0].mxu0 %v63
    %v152 = vpop.f32.mrb[0].mxu0
    %v153 = vadd.f32 0.0, %v152
    %v154 = vpop.f32.mrb[0].mxu0
    %155 = vmatprep.mubr.f32.mxu0 0.0
    %156 = vmatmul.mubr.f32.gmra.mrb[0].mxu0 %v66
    %v157 = vpop.f32.mrb[0].mxu0
    %v158 = vadd.f32 0.0, %v157
    %v159 = vpop.f32.mrb[0].mxu0
    %160 = vmatprep.mubr.f32.mxu0 0.0
    %161 = vmatmul.mubr.f32.gmra.mrb[0].mxu0 %v69
    %v162 = vpop.f32.mrb[0].mxu0
    %v163 = vadd.f32 0.0, %v162
    %v164 = vpop.f32.mrb[0].mxu0
    %165 = vmatprep.mubr.f32.mxu0 0.0
    %166 = vmatmul.mubr.f32.gmra.mrb[0].mxu0 %v72
    %v167 = vpop.f32.mrb[0].mxu0
    %v168 = vadd.f32 0.0, %v167
    %v169 = vpop.f32.mrb[0].mxu0
    %170 = vdwg.mxu0
    %vm171 = vcmask 261120
    %v172 = vsel %vm171, %v153, 0.0
    %173 = vadd.xlane.f32.xlu0 %v172
    %v174 = vpop.xlane.xlu0 %173
    %v175 = vsel %vm171, %v158, 0.0
    %176 = vadd.xlane.f32.xlu0 %v175
    %v177 = vpop.xlane.xlu0 %176
    %v178 = vsel %vm171, %v163, 0.0
    %179 = vadd.xlane.f32.xlu0 %v178
    %v180 = vpop.xlane.xlu0 %179
    %v181 = vsel %vm171, %v168, 0.0
    %182 = vadd.xlane.f32.xlu0 %v181
    %v183 = vpop.xlane.xlu0 %182
    %v184 = vmax.f32 %v174, 1.0
    %v185 = vmax.f32 %v177, 1.0
    %v186 = vmax.f32 %v180, 1.0
    %v187 = vmax.f32 %v183, 1.0
    %v188 = vrcp.pop %v184
    %v189 = vmul.f32 %v153, %v188
    %v190 = vrcp.pop %v185
    %v191 = vmul.f32 %v158, %v190
    %v192 = vrcp.pop %v186
    %v193 = vmul.f32 %v163, %v192
    %v194 = vrcp.pop %v187
    %v195 = vmul.f32 %v168, %v194
    %v196 = vld [vmem:[%s1] sm:$0xff]
    %v197 = vld [vmem:[%s1 + $0x8] sm:$0xff]
    %v198 = vld [vmem:[%s1 + $0x10] sm:$0xff]
    %v199 = vld [vmem:[%s1 + $0x18] sm:$0xff]
    %v200 = vld [vmem:[%s2] sm:$0xff]
    %v201 = vld [vmem:[%s2 + $0x8] sm:$0xff]
    %v202 = vld [vmem:[%s2 + $0xa0] sm:$0x1]
    %v204 = vsel %vm171, %v189, 0
    %v207 = vsel %vm171, %v191, 0
    %v210 = vsel %vm171, %v193, 0
    %v213 = vsel %vm171, %v195, 0
    %215 = vmatprep.subr.mxu0 0.0
    %216 = vmatpush1.msra.mxu0 %v196
    %217 = vmatprep.subr.mxu0 0.0
    %218 = vmatpush1.msra.mxu0 %v197
    %219 = vmatprep.subr.mxu0 0.0
    %220 = vmatpush1.msra.mxu0 %v198
    %221 = vmatprep.subr.mxu0 0.0
    %222 = vmatpush1.msra.mxu0 %v199
    %223 = vmatprep.subr.mxu0 0.0
    %224 = vmatpush1.msra.mxu0 0.0
    %225 = vmatprep.subr.mxu0 0.0
    %226 = vmatpush1.msra.mxu0 0.0
    %227 = vmatprep.subr.mxu0 0.0
    %228 = vmatpush1.msra.mxu0 0.0
    %229 = vmatprep.subr.mxu0 0.0
    %230 = vmatpush1.msra.mxu0 0.0
    %231 = vmatprep.subr.mxu0 0.0
    %232 = vmatpush1.msra.mxu0 0.0
    %233 = vmatprep.subr.mxu0 0.0
    %234 = vmatpush1.msra.mxu0 0.0
    %235 = vmatprep.subr.mxu0 0.0
    %236 = vmatpush1.msra.mxu0 0.0
    %237 = vmatprep.subr.mxu0 0.0
    %238 = vmatpush1.msra.mxu0 0.0
    %239 = vmatprep.subr.mxu0 0.0
    %240 = vmatpush1.msra.mxu0 0.0
    %241 = vmatprep.subr.mxu0 0.0
    %242 = vmatpush1.msra.mxu0 0.0
    %243 = vmatprep.subr.mxu0 0.0
    %244 = vmatpush1.msra.mxu0 0.0
    %245 = vmatprep.subr.mxu0 0.0
    %246 = vmatpush1.msra.mxu0 0.0
    %247 = vmatprep.subr.mxu0 0.0
    %248 = vmatpush1.msra.mxu0 0.0
    %249 = vmatprep.subr.mxu0 0.0
    %250 = vmatpush1.msra.mxu0 0.0
    %251 = vmatprep.subr.mxu0 0.0
    %252 = vmatpush1.msra.mxu0 0.0
    %253 = vmatprep.subr.mxu0 0.0
    %254 = vmatpush1.msra.mxu0 0.0
    %255 = vmatprep.subr.mxu0 0.0
    %256 = vmatpush1.msra.mxu0 0.0
    %257 = vmatprep.subr.mxu0 0.0
    %258 = vmatpush1.msra.mxu0 0.0
    %259 = vmatprep.subr.mxu0 0.0
    %260 = vmatpush1.msra.mxu0 0.0
    %261 = vmatprep.subr.mxu0 0.0
    %262 = vmatpush1.msra.mxu0 0.0
    %263 = vmatprep.subr.mxu0 0.0
    %264 = vmatpush1.msra.mxu0 0.0
    %265 = vmatprep.subr.mxu0 0.0
    %266 = vmatpush1.msra.mxu0 0.0
    %267 = vmatprep.subr.mxu0 0.0
    %268 = vmatpush1.msra.mxu0 0.0
    %269 = vmatprep.subr.mxu0 0.0
    %270 = vmatpush1.msra.mxu0 0.0
    %271 = vmatprep.subr.mxu0 0.0
    %272 = vmatpush1.msra.mxu0 0.0
    %273 = vmatprep.subr.mxu0 0.0
    %274 = vmatpush1.msra.mxu0 0.0
    %275 = vmatprep.subr.mxu0 0.0
    %276 = vmatpush1.msra.mxu0 0.0
    %277 = vmatprep.subr.mxu0 0.0
    %278 = vmatpush1.msra.mxu0 0.0
    %279 = vmatprep.mubr.f32.mxu0 0.0
    %280 = vmatmul.mubr.f32.gmra.mrb[0].mxu0 %v204
    %v281 = vpop.f32.mrb[0].mxu0
    %v282 = vadd.f32 0.0, %v281
    %v283 = vpop.f32.mrb[0].mxu0
    %284 = vmatprep.mubr.f32.mxu0 0.0
    %285 = vmatmul.mubr.f32.gmra.mrb[0].mxu0 %v207
    %v286 = vpop.f32.mrb[0].mxu0
    %v287 = vadd.f32 0.0, %v286
    %v288 = vpop.f32.mrb[0].mxu0
    %289 = vmatprep.mubr.f32.mxu0 0.0
    %290 = vmatmul.mubr.f32.gmra.mrb[0].mxu0 %v210
    %v291 = vpop.f32.mrb[0].mxu0
    %v292 = vadd.f32 0.0, %v291
    %v293 = vpop.f32.mrb[0].mxu0
    %294 = vmatprep.mubr.f32.mxu0 0.0
    %295 = vmatmul.mubr.f32.gmra.mrb[0].mxu0 %v213
    %v296 = vpop.f32.mrb[0].mxu0
    %v297 = vadd.f32 0.0, %v296
    %v298 = vpop.f32.mrb[0].mxu0
    %299 = vdwg.mxu0
    %v300 = vlaneseq
    %v301 = vshrl.u32 %v300, 7
    %v302 = vsub.s32 0, %v301
    %v303 = vrot.slane %v202, %v302
    %vm304 = vcmask 130048
    %v306 = vsel %vm304, %v282, 0
    %v309 = vsel %vm304, %v287, 0
    %v312 = vsel %vm304, %v292, 0
    %v315 = vsel %vm304, %v297, 0
    %317 = vmatprep.subr.mxu0 0.0
    %318 = vmatpush1.msra.mxu0 %v200
    %319 = vmatprep.subr.mxu0 0.0
    %320 = vmatpush1.msra.mxu0 %v201
    %321 = vmatprep.subr.mxu0 0.0
    %322 = vmatpush1.msra.mxu0 0.0
    %323 = vmatprep.subr.mxu0 0.0
    %324 = vmatpush1.msra.mxu0 0.0
    %325 = vmatprep.subr.mxu0 0.0
    %326 = vmatpush1.msra.mxu0 0.0
    %327 = vmatprep.subr.mxu0 0.0
    %328 = vmatpush1.msra.mxu0 0.0
    %329 = vmatprep.subr.mxu0 0.0
    %330 = vmatpush1.msra.mxu0 0.0
    %331 = vmatprep.subr.mxu0 0.0
    %332 = vmatpush1.msra.mxu0 0.0
    %333 = vmatprep.subr.mxu0 0.0
    %334 = vmatpush1.msra.mxu0 0.0
    %335 = vmatprep.subr.mxu0 0.0
    %336 = vmatpush1.msra.mxu0 0.0
    %337 = vmatprep.subr.mxu0 0.0
    %338 = vmatpush1.msra.mxu0 0.0
    %339 = vmatprep.subr.mxu0 0.0
    %340 = vmatpush1.msra.mxu0 0.0
    %341 = vmatprep.subr.mxu0 0.0
    %342 = vmatpush1.msra.mxu0 0.0
    %343 = vmatprep.subr.mxu0 0.0
    %344 = vmatpush1.msra.mxu0 0.0
    %345 = vmatprep.subr.mxu0 0.0
    %346 = vmatpush1.msra.mxu0 0.0
    %347 = vmatprep.subr.mxu0 0.0
    %348 = vmatpush1.msra.mxu0 0.0
    %349 = vmatprep.subr.mxu0 0.0
    %350 = vmatpush1.msra.mxu0 0.0
    %351 = vmatprep.subr.mxu0 0.0
    %352 = vmatpush1.msra.mxu0 0.0
    %353 = vmatprep.subr.mxu0 0.0
    %354 = vmatpush1.msra.mxu0 0.0
    %355 = vmatprep.subr.mxu0 0.0
    %356 = vmatpush1.msra.mxu0 0.0
    %357 = vmatprep.subr.mxu0 0.0
    %358 = vmatpush1.msra.mxu0 0.0
    %359 = vmatprep.subr.mxu0 0.0
    %360 = vmatpush1.msra.mxu0 0.0
    %361 = vmatprep.subr.mxu0 0.0
    %362 = vmatpush1.msra.mxu0 0.0
    %363 = vmatprep.subr.mxu0 0.0
    %364 = vmatpush1.msra.mxu0 0.0
    %365 = vmatprep.subr.mxu0 0.0
    %366 = vmatpush1.msra.mxu0 0.0
    %367 = vmatprep.subr.mxu0 0.0
    %368 = vmatpush1.msra.mxu0 0.0
    %369 = vmatprep.subr.mxu0 0.0
    %370 = vmatpush1.msra.mxu0 0.0
    %371 = vmatprep.subr.mxu0 0.0
    %372 = vmatpush1.msra.mxu0 0.0
    %373 = vmatprep.subr.mxu0 0.0
    %374 = vmatpush1.msra.mxu0 0.0
    %375 = vmatprep.subr.mxu0 0.0
    %376 = vmatpush1.msra.mxu0 0.0
    %377 = vmatprep.subr.mxu0 0.0
    %378 = vmatpush1.msra.mxu0 0.0
    %379 = vmatprep.subr.mxu0 0.0
    %380 = vmatpush1.msra.mxu0 0.0
    %381 = vmatprep.mubr.f32.mxu0 0.0
    %382 = vmatmul.mubr.f32.gmra.mrb[0].mxu0 %v306
    %v383 = vpop.f32.mrb[0].mxu0
    %v384 = vadd.f32 %v303, %v383
    %v385 = vpop.f32.mrb[0].mxu0
    %386 = vmatprep.mubr.f32.mxu0 0.0
    %387 = vmatmul.mubr.f32.gmra.mrb[0].mxu0 %v309
    %v388 = vpop.f32.mrb[0].mxu0
    %v389 = vadd.f32 %v303, %v388
    %v390 = vpop.f32.mrb[0].mxu0
    %391 = vmatprep.mubr.f32.mxu0 0.0
    %392 = vmatmul.mubr.f32.gmra.mrb[0].mxu0 %v312
    %v393 = vpop.f32.mrb[0].mxu0
    %v394 = vadd.f32 %v303, %v393
    %v395 = vpop.f32.mrb[0].mxu0
    %396 = vmatprep.mubr.f32.mxu0 0.0
    %397 = vmatmul.mubr.f32.gmra.mrb[0].mxu0 %v315
    %v398 = vpop.f32.mrb[0].mxu0
    %v399 = vadd.f32 %v303, %v398
    %v400 = vpop.f32.mrb[0].mxu0
    %401 = vdwg.mxu0
    %v402 = vmax.f32 %v384, 0.0
    %v403 = vmax.f32 %v389, 0.0
    %v404 = vmax.f32 %v394, 0.0
    %v405 = vmax.f32 %v399, 0.0
    %v406 = vld [vmem:[%s2 + $0x10] sm:$0xff]
    %v407 = vld [vmem:[%s2 + $0x18] sm:$0xff]
    %v408 = vld [vmem:[%s2 + $0x20] sm:$0xff]
    %v409 = vld [vmem:[%s2 + $0x28] sm:$0xff]
    %v410 = vld [vmem:[%s2 + $0xa8] sm:$0x1]
    %411 = vmatprep.subr.mxu0 0.0
    %412 = vmatpush1.msra.mxu0 %v402
    %413 = vmatprep.subr.mxu0 0.0
    %414 = vmatpush1.msra.mxu0 %v403
    %415 = vmatprep.subr.mxu0 0.0
    %416 = vmatpush1.msra.mxu0 %v404
    %417 = vmatprep.subr.mxu0 0.0
    %418 = vmatpush1.msra.mxu0 %v405
    %419 = vmatprep.subr.mxu0 0.0
    %420 = vmatpush1.msra.mxu0 0.0
    %421 = vmatprep.subr.mxu0 0.0
    %422 = vmatpush1.msra.mxu0 0.0
    %423 = vmatprep.subr.mxu0 0.0
    %424 = vmatpush1.msra.mxu0 0.0
    %425 = vmatprep.subr.mxu0 0.0
    %426 = vmatpush1.msra.mxu0 0.0
    %427 = vmatprep.subr.mxu0 0.0
    %428 = vmatpush1.msra.mxu0 0.0
    %429 = vmatprep.subr.mxu0 0.0
    %430 = vmatpush1.msra.mxu0 0.0
    %431 = vmatprep.subr.mxu0 0.0
    %432 = vmatpush1.msra.mxu0 0.0
    %433 = vmatprep.subr.mxu0 0.0
    %434 = vmatpush1.msra.mxu0 0.0
    %435 = vmatprep.subr.mxu0 0.0
    %436 = vmatpush1.msra.mxu0 0.0
    %437 = vmatprep.subr.mxu0 0.0
    %438 = vmatpush1.msra.mxu0 0.0
    %439 = vmatprep.subr.mxu0 0.0
    %440 = vmatpush1.msra.mxu0 0.0
    %441 = vmatprep.subr.mxu0 0.0
    %442 = vmatpush1.msra.mxu0 0.0
    %443 = vmatprep.subr.mxu0 0.0
    %444 = vmatpush1.msra.mxu0 0.0
    %445 = vmatprep.subr.mxu0 0.0
    %446 = vmatpush1.msra.mxu0 0.0
    %447 = vmatprep.subr.mxu0 0.0
    %448 = vmatpush1.msra.mxu0 0.0
    %449 = vmatprep.subr.mxu0 0.0
    %450 = vmatpush1.msra.mxu0 0.0
    %451 = vmatprep.subr.mxu0 0.0
    %452 = vmatpush1.msra.mxu0 0.0
    %453 = vmatprep.subr.mxu0 0.0
    %454 = vmatpush1.msra.mxu0 0.0
    %455 = vmatprep.subr.mxu0 0.0
    %456 = vmatpush1.msra.mxu0 0.0
    %457 = vmatprep.subr.mxu0 0.0
    %458 = vmatpush1.msra.mxu0 0.0
    %459 = vmatprep.subr.mxu0 0.0
    %460 = vmatpush1.msra.mxu0 0.0
    %461 = vmatprep.subr.mxu0 0.0
    %462 = vmatpush1.msra.mxu0 0.0
    %463 = vmatprep.subr.mxu0 0.0
    %464 = vmatpush1.msra.mxu0 0.0
    %465 = vmatprep.subr.mxu0 0.0
    %466 = vmatpush1.msra.mxu0 0.0
    %467 = vmatprep.subr.mxu0 0.0
    %468 = vmatpush1.msra.mxu0 0.0
    %469 = vmatprep.subr.mxu0 0.0
    %470 = vmatpush1.msra.mxu0 0.0
    %471 = vmatprep.subr.mxu0 0.0
    %472 = vmatpush1.msra.mxu0 0.0
    %473 = vmatprep.subr.mxu0 0.0
    %474 = vmatpush1.msra.mxu0 0.0
    %475 = vmatprep.mubr.f32.mxu0 0.0
    %476 = vmatmul.mubr.f32.gmra.mrb[0].mxu0 %v204
    %v477 = vpop.f32.mrb[0].mxu0
    %v478 = vadd.f32 0.0, %v477
    %v479 = vpop.f32.mrb[0].mxu0
    %480 = vmatprep.mubr.f32.mxu0 0.0
    %481 = vmatmul.mubr.f32.gmra.mrb[0].mxu0 %v207
    %v482 = vpop.f32.mrb[0].mxu0
    %v483 = vadd.f32 0.0, %v482
    %v484 = vpop.f32.mrb[0].mxu0
    %485 = vmatprep.mubr.f32.mxu0 0.0
    %486 = vmatmul.mubr.f32.gmra.mrb[0].mxu0 %v210
    %v487 = vpop.f32.mrb[0].mxu0
    %v488 = vadd.f32 0.0, %v487
    %v489 = vpop.f32.mrb[0].mxu0
    %490 = vmatprep.mubr.f32.mxu0 0.0
    %491 = vmatmul.mubr.f32.gmra.mrb[0].mxu0 %v213
    %v492 = vpop.f32.mrb[0].mxu0
    %v493 = vadd.f32 0.0, %v492
    %v494 = vpop.f32.mrb[0].mxu0
    %495 = vdwg.mxu0
    %v496 = vlaneseq
    %v497 = vshrl.u32 %v496, 7
    %v498 = vsub.s32 0, %v497
    %v499 = vrot.slane %v410, %v498
    %v501 = vsel %vm171, %v478, 0
    %v504 = vsel %vm171, %v483, 0
    %v507 = vsel %vm171, %v488, 0
    %v510 = vsel %vm171, %v493, 0
    %512 = vmatprep.subr.mxu0 0.0
    %513 = vmatpush1.msra.mxu0 %v406
    %514 = vmatprep.subr.mxu0 0.0
    %515 = vmatpush1.msra.mxu0 %v407
    %516 = vmatprep.subr.mxu0 0.0
    %517 = vmatpush1.msra.mxu0 %v408
    %518 = vmatprep.subr.mxu0 0.0
    %519 = vmatpush1.msra.mxu0 %v409
    %520 = vmatprep.subr.mxu0 0.0
    %521 = vmatpush1.msra.mxu0 0.0
    %522 = vmatprep.subr.mxu0 0.0
    %523 = vmatpush1.msra.mxu0 0.0
    %524 = vmatprep.subr.mxu0 0.0
    %525 = vmatpush1.msra.mxu0 0.0
    %526 = vmatprep.subr.mxu0 0.0
    %527 = vmatpush1.msra.mxu0 0.0
    %528 = vmatprep.subr.mxu0 0.0
    %529 = vmatpush1.msra.mxu0 0.0
    %530 = vmatprep.subr.mxu0 0.0
    %531 = vmatpush1.msra.mxu0 0.0
    %532 = vmatprep.subr.mxu0 0.0
    %533 = vmatpush1.msra.mxu0 0.0
    %534 = vmatprep.subr.mxu0 0.0
    %535 = vmatpush1.msra.mxu0 0.0
    %536 = vmatprep.subr.mxu0 0.0
    %537 = vmatpush1.msra.mxu0 0.0
    %538 = vmatprep.subr.mxu0 0.0
    %539 = vmatpush1.msra.mxu0 0.0
    %540 = vmatprep.subr.mxu0 0.0
    %541 = vmatpush1.msra.mxu0 0.0
    %542 = vmatprep.subr.mxu0 0.0
    %543 = vmatpush1.msra.mxu0 0.0
    %544 = vmatprep.subr.mxu0 0.0
    %545 = vmatpush1.msra.mxu0 0.0
    %546 = vmatprep.subr.mxu0 0.0
    %547 = vmatpush1.msra.mxu0 0.0
    %548 = vmatprep.subr.mxu0 0.0
    %549 = vmatpush1.msra.mxu0 0.0
    %550 = vmatprep.subr.mxu0 0.0
    %551 = vmatpush1.msra.mxu0 0.0
    %552 = vmatprep.subr.mxu0 0.0
    %553 = vmatpush1.msra.mxu0 0.0
    %554 = vmatprep.subr.mxu0 0.0
    %555 = vmatpush1.msra.mxu0 0.0
    %556 = vmatprep.subr.mxu0 0.0
    %557 = vmatpush1.msra.mxu0 0.0
    %558 = vmatprep.subr.mxu0 0.0
    %559 = vmatpush1.msra.mxu0 0.0
    %560 = vmatprep.subr.mxu0 0.0
    %561 = vmatpush1.msra.mxu0 0.0
    %562 = vmatprep.subr.mxu0 0.0
    %563 = vmatpush1.msra.mxu0 0.0
    %564 = vmatprep.subr.mxu0 0.0
    %565 = vmatpush1.msra.mxu0 0.0
    %566 = vmatprep.subr.mxu0 0.0
    %567 = vmatpush1.msra.mxu0 0.0
    %568 = vmatprep.subr.mxu0 0.0
    %569 = vmatpush1.msra.mxu0 0.0
    %570 = vmatprep.subr.mxu0 0.0
    %571 = vmatpush1.msra.mxu0 0.0
    %572 = vmatprep.subr.mxu0 0.0
    %573 = vmatpush1.msra.mxu0 0.0
    %574 = vmatprep.subr.mxu0 0.0
    %575 = vmatpush1.msra.mxu0 0.0
    %576 = vmatprep.mubr.f32.mxu0 0.0
    %577 = vmatmul.mubr.f32.gmra.mrb[0].mxu0 %v501
    %v578 = vpop.f32.mrb[0].mxu0
    %v579 = vadd.f32 %v499, %v578
    %v580 = vpop.f32.mrb[0].mxu0
    %581 = vmatprep.mubr.f32.mxu0 0.0
    %582 = vmatmul.mubr.f32.gmra.mrb[0].mxu0 %v504
    %v583 = vpop.f32.mrb[0].mxu0
    %v584 = vadd.f32 %v499, %v583
    %v585 = vpop.f32.mrb[0].mxu0
    %586 = vmatprep.mubr.f32.mxu0 0.0
    %587 = vmatmul.mubr.f32.gmra.mrb[0].mxu0 %v507
    %v588 = vpop.f32.mrb[0].mxu0
    %v589 = vadd.f32 %v499, %v588
    %v590 = vpop.f32.mrb[0].mxu0
    %591 = vmatprep.mubr.f32.mxu0 0.0
    %592 = vmatmul.mubr.f32.gmra.mrb[0].mxu0 %v510
    %v593 = vpop.f32.mrb[0].mxu0
    %v594 = vadd.f32 %v499, %v593
    %v595 = vpop.f32.mrb[0].mxu0
    %596 = vdwg.mxu0
    %v597 = vld [vmem:[%s2 + $0x50] sm:$0xff]
    %v598 = vld [vmem:[%s2 + $0x58] sm:$0xff]
    %v599 = vld [vmem:[%s2 + $0x60] sm:$0xff]
    %v600 = vld [vmem:[%s2 + $0x68] sm:$0xff]
    %v601 = vld [vmem:[%s2 + $0x70] sm:$0xff]
    %v602 = vld [vmem:[%s2 + $0x78] sm:$0xff]
    %v604 = vsel %vm171, %v402, 0
    %v607 = vsel %vm171, %v403, 0
    %v610 = vsel %vm171, %v404, 0
    %v613 = vsel %vm171, %v405, 0
    %615 = vmatprep.subr.mxu0 0.0
    %616 = vmatpush1.msra.mxu0 %v599
    %617 = vmatprep.subr.mxu0 0.0
    %618 = vmatpush1.msra.mxu0 %v600
    %619 = vmatprep.subr.mxu0 0.0
    %620 = vmatpush1.msra.mxu0 %v601
    %621 = vmatprep.subr.mxu0 0.0
    %622 = vmatpush1.msra.mxu0 %v602
    %623 = vmatprep.subr.mxu0 0.0
    %624 = vmatpush1.msra.mxu0 0.0
    %625 = vmatprep.subr.mxu0 0.0
    %626 = vmatpush1.msra.mxu0 0.0
    %627 = vmatprep.subr.mxu0 0.0
    %628 = vmatpush1.msra.mxu0 0.0
    %629 = vmatprep.subr.mxu0 0.0
    %630 = vmatpush1.msra.mxu0 0.0
    %631 = vmatprep.subr.mxu0 0.0
    %632 = vmatpush1.msra.mxu0 0.0
    %633 = vmatprep.subr.mxu0 0.0
    %634 = vmatpush1.msra.mxu0 0.0
    %635 = vmatprep.subr.mxu0 0.0
    %636 = vmatpush1.msra.mxu0 0.0
    %637 = vmatprep.subr.mxu0 0.0
    %638 = vmatpush1.msra.mxu0 0.0
    %639 = vmatprep.subr.mxu0 0.0
    %640 = vmatpush1.msra.mxu0 0.0
    %641 = vmatprep.subr.mxu0 0.0
    %642 = vmatpush1.msra.mxu0 0.0
    %643 = vmatprep.subr.mxu0 0.0
    %644 = vmatpush1.msra.mxu0 0.0
    %645 = vmatprep.subr.mxu0 0.0
    %646 = vmatpush1.msra.mxu0 0.0
    %647 = vmatprep.subr.mxu0 0.0
    %648 = vmatpush1.msra.mxu0 0.0
    %649 = vmatprep.subr.mxu0 0.0
    %650 = vmatpush1.msra.mxu0 0.0
    %651 = vmatprep.subr.mxu0 0.0
    %652 = vmatpush1.msra.mxu0 0.0
    %653 = vmatprep.subr.mxu0 0.0
    %654 = vmatpush1.msra.mxu0 0.0
    %655 = vmatprep.subr.mxu0 0.0
    %656 = vmatpush1.msra.mxu0 0.0
    %657 = vmatprep.subr.mxu0 0.0
    %658 = vmatpush1.msra.mxu0 0.0
    %659 = vmatprep.subr.mxu0 0.0
    %660 = vmatpush1.msra.mxu0 0.0
    %661 = vmatprep.subr.mxu0 0.0
    %662 = vmatpush1.msra.mxu0 0.0
    %663 = vmatprep.subr.mxu0 0.0
    %664 = vmatpush1.msra.mxu0 0.0
    %665 = vmatprep.subr.mxu0 0.0
    %666 = vmatpush1.msra.mxu0 0.0
    %667 = vmatprep.subr.mxu0 0.0
    %668 = vmatpush1.msra.mxu0 0.0
    %669 = vmatprep.subr.mxu0 0.0
    %670 = vmatpush1.msra.mxu0 0.0
    %671 = vmatprep.subr.mxu0 0.0
    %672 = vmatpush1.msra.mxu0 0.0
    %673 = vmatprep.subr.mxu0 0.0
    %674 = vmatpush1.msra.mxu0 0.0
    %675 = vmatprep.subr.mxu0 0.0
    %676 = vmatpush1.msra.mxu0 0.0
    %677 = vmatprep.subr.mxu0 0.0
    %678 = vmatpush1.msra.mxu0 0.0
    %679 = vmatprep.mubr.f32.mxu0 0.0
    %680 = vmatmul.mubr.f32.gmra.mrb[0].mxu0 %v604
    %v681 = vpop.f32.mrb[0].mxu0
    %v682 = vadd.f32 0.0, %v681
    %v683 = vpop.f32.mrb[0].mxu0
    %684 = vmatprep.mubr.f32.mxu0 0.0
    %685 = vmatmul.mubr.f32.gmra.mrb[0].mxu0 %v607
    %v686 = vpop.f32.mrb[0].mxu0
    %v687 = vadd.f32 0.0, %v686
    %v688 = vpop.f32.mrb[0].mxu0
    %689 = vmatprep.mubr.f32.mxu0 0.0
    %690 = vmatmul.mubr.f32.gmra.mrb[0].mxu0 %v610
    %v691 = vpop.f32.mrb[0].mxu0
    %v692 = vadd.f32 0.0, %v691
    %v693 = vpop.f32.mrb[0].mxu0
    %694 = vmatprep.mubr.f32.mxu0 0.0
    %695 = vmatmul.mubr.f32.gmra.mrb[0].mxu0 %v613
    %v696 = vpop.f32.mrb[0].mxu0
    %v697 = vadd.f32 0.0, %v696
    %v698 = vpop.f32.mrb[0].mxu0
    %699 = vdwg.mxu0
    %v701 = vsel %vm304, %v196, 0
    %v704 = vsel %vm304, %v197, 0
    %v707 = vsel %vm304, %v198, 0
    %v710 = vsel %vm304, %v199, 0
    %712 = vmatprep.subr.mxu0 0.0
    %713 = vmatpush1.msra.mxu0 %v597
    %714 = vmatprep.subr.mxu0 0.0
    %715 = vmatpush1.msra.mxu0 %v598
    %716 = vmatprep.subr.mxu0 0.0
    %717 = vmatpush1.msra.mxu0 0.0
    %718 = vmatprep.subr.mxu0 0.0
    %719 = vmatpush1.msra.mxu0 0.0
    %720 = vmatprep.subr.mxu0 0.0
    %721 = vmatpush1.msra.mxu0 0.0
    %722 = vmatprep.subr.mxu0 0.0
    %723 = vmatpush1.msra.mxu0 0.0
    %724 = vmatprep.subr.mxu0 0.0
    %725 = vmatpush1.msra.mxu0 0.0
    %726 = vmatprep.subr.mxu0 0.0
    %727 = vmatpush1.msra.mxu0 0.0
    %728 = vmatprep.subr.mxu0 0.0
    %729 = vmatpush1.msra.mxu0 0.0
    %730 = vmatprep.subr.mxu0 0.0
    %731 = vmatpush1.msra.mxu0 0.0
    %732 = vmatprep.subr.mxu0 0.0
    %733 = vmatpush1.msra.mxu0 0.0
    %734 = vmatprep.subr.mxu0 0.0
    %735 = vmatpush1.msra.mxu0 0.0
    %736 = vmatprep.subr.mxu0 0.0
    %737 = vmatpush1.msra.mxu0 0.0
    %738 = vmatprep.subr.mxu0 0.0
    %739 = vmatpush1.msra.mxu0 0.0
    %740 = vmatprep.subr.mxu0 0.0
    %741 = vmatpush1.msra.mxu0 0.0
    %742 = vmatprep.subr.mxu0 0.0
    %743 = vmatpush1.msra.mxu0 0.0
    %744 = vmatprep.subr.mxu0 0.0
    %745 = vmatpush1.msra.mxu0 0.0
    %746 = vmatprep.subr.mxu0 0.0
    %747 = vmatpush1.msra.mxu0 0.0
    %748 = vmatprep.subr.mxu0 0.0
    %749 = vmatpush1.msra.mxu0 0.0
    %750 = vmatprep.subr.mxu0 0.0
    %751 = vmatpush1.msra.mxu0 0.0
    %752 = vmatprep.subr.mxu0 0.0
    %753 = vmatpush1.msra.mxu0 0.0
    %754 = vmatprep.subr.mxu0 0.0
    %755 = vmatpush1.msra.mxu0 0.0
    %756 = vmatprep.subr.mxu0 0.0
    %757 = vmatpush1.msra.mxu0 0.0
    %758 = vmatprep.subr.mxu0 0.0
    %759 = vmatpush1.msra.mxu0 0.0
    %760 = vmatprep.subr.mxu0 0.0
    %761 = vmatpush1.msra.mxu0 0.0
    %762 = vmatprep.subr.mxu0 0.0
    %763 = vmatpush1.msra.mxu0 0.0
    %764 = vmatprep.subr.mxu0 0.0
    %765 = vmatpush1.msra.mxu0 0.0
    %766 = vmatprep.subr.mxu0 0.0
    %767 = vmatpush1.msra.mxu0 0.0
    %768 = vmatprep.subr.mxu0 0.0
    %769 = vmatpush1.msra.mxu0 0.0
    %770 = vmatprep.subr.mxu0 0.0
    %771 = vmatpush1.msra.mxu0 0.0
    %772 = vmatprep.subr.mxu0 0.0
    %773 = vmatpush1.msra.mxu0 0.0
    %774 = vmatprep.subr.mxu0 0.0
    %775 = vmatpush1.msra.mxu0 0.0
    %776 = vmatprep.mubr.f32.mxu0 0.0
    %777 = vmatmul.mubr.f32.gmra.mrb[0].mxu0 %v701
    %v778 = vpop.f32.mrb[0].mxu0
    %v779 = vadd.f32 %v682, %v778
    %v780 = vpop.f32.mrb[0].mxu0
    %781 = vmatprep.mubr.f32.mxu0 0.0
    %782 = vmatmul.mubr.f32.gmra.mrb[0].mxu0 %v704
    %v783 = vpop.f32.mrb[0].mxu0
    %v784 = vadd.f32 %v687, %v783
    %v785 = vpop.f32.mrb[0].mxu0
    %786 = vmatprep.mubr.f32.mxu0 0.0
    %787 = vmatmul.mubr.f32.gmra.mrb[0].mxu0 %v707
    %v788 = vpop.f32.mrb[0].mxu0
    %v789 = vadd.f32 %v692, %v788
    %v790 = vpop.f32.mrb[0].mxu0
    %791 = vmatprep.mubr.f32.mxu0 0.0
    %792 = vmatmul.mubr.f32.gmra.mrb[0].mxu0 %v710
    %v793 = vpop.f32.mrb[0].mxu0
    %v794 = vadd.f32 %v697, %v793
    %v795 = vpop.f32.mrb[0].mxu0
    %796 = vdwg.mxu0
    %v797 = vadd.f32 %v779, %v579
    %v798 = vadd.f32 %v784, %v584
    %v799 = vadd.f32 %v789, %v589
    %v800 = vadd.f32 %v794, %v594
    %v801 = vld [vmem:[%s2 + $0x30] sm:$0xff]
    %v802 = vld [vmem:[%s2 + $0x38] sm:$0xff]
    %v803 = vld [vmem:[%s2 + $0x40] sm:$0xff]
    %v804 = vld [vmem:[%s2 + $0x48] sm:$0xff]
    %v805 = vld [vmem:[%s2 + $0x80] sm:$0xff]
    %v806 = vld [vmem:[%s2 + $0x88] sm:$0xff]
    %v807 = vld [vmem:[%s2 + $0x90] sm:$0xff]
    %v808 = vld [vmem:[%s2 + $0x98] sm:$0xff]
    %810 = vset.pattern.permute.xlu0 0
    %811 = vperm.xlu0 %810, %v805
    %v812 = vpop.permute.xlu0 %811
    %815 = vset.pattern.permute.xlu0 0
    %816 = vperm.xlu0 %815, %v806
    %v817 = vpop.permute.xlu0 %816
    %820 = vset.pattern.permute.xlu0 0
    %821 = vperm.xlu0 %820, %v807
    %v822 = vpop.permute.xlu0 %821
    %825 = vset.pattern.permute.xlu0 0
    %826 = vperm.xlu0 %825, %v808
    %v827 = vpop.permute.xlu0 %826
    %v830 = vsel %vm171, %v801, 0
    %v833 = vsel %vm171, %v802, 0
    %v836 = vsel %vm171, %v803, 0
    %v839 = vsel %vm171, %v804, 0
    %841 = vmatprep.subr.mxu0 0.0
    %842 = vmatpush1.msra.mxu0 %v797
    %843 = vmatprep.subr.mxu0 0.0
    %844 = vmatpush1.msra.mxu0 %v798
    %845 = vmatprep.subr.mxu0 0.0
    %846 = vmatpush1.msra.mxu0 %v799
    %847 = vmatprep.subr.mxu0 0.0
    %848 = vmatpush1.msra.mxu0 %v800
    %849 = vmatprep.subr.mxu0 0.0
    %850 = vmatpush1.msra.mxu0 0.0
    %851 = vmatprep.subr.mxu0 0.0
    %852 = vmatpush1.msra.mxu0 0.0
    %853 = vmatprep.subr.mxu0 0.0
    %854 = vmatpush1.msra.mxu0 0.0
    %855 = vmatprep.subr.mxu0 0.0
    %856 = vmatpush1.msra.mxu0 0.0
    %857 = vmatprep.subr.mxu0 0.0
    %858 = vmatpush1.msra.mxu0 0.0
    %859 = vmatprep.subr.mxu0 0.0
    %860 = vmatpush1.msra.mxu0 0.0
    %861 = vmatprep.subr.mxu0 0.0
    %862 = vmatpush1.msra.mxu0 0.0
    %863 = vmatprep.subr.mxu0 0.0
    %864 = vmatpush1.msra.mxu0 0.0
    %865 = vmatprep.subr.mxu0 0.0
    %866 = vmatpush1.msra.mxu0 0.0
    %867 = vmatprep.subr.mxu0 0.0
    %868 = vmatpush1.msra.mxu0 0.0
    %869 = vmatprep.subr.mxu0 0.0
    %870 = vmatpush1.msra.mxu0 0.0
    %871 = vmatprep.subr.mxu0 0.0
    %872 = vmatpush1.msra.mxu0 0.0
    %873 = vmatprep.subr.mxu0 0.0
    %874 = vmatpush1.msra.mxu0 0.0
    %875 = vmatprep.subr.mxu0 0.0
    %876 = vmatpush1.msra.mxu0 0.0
    %877 = vmatprep.subr.mxu0 0.0
    %878 = vmatpush1.msra.mxu0 0.0
    %879 = vmatprep.subr.mxu0 0.0
    %880 = vmatpush1.msra.mxu0 0.0
    %881 = vmatprep.subr.mxu0 0.0
    %882 = vmatpush1.msra.mxu0 0.0
    %883 = vmatprep.subr.mxu0 0.0
    %884 = vmatpush1.msra.mxu0 0.0
    %885 = vmatprep.subr.mxu0 0.0
    %886 = vmatpush1.msra.mxu0 0.0
    %887 = vmatprep.subr.mxu0 0.0
    %888 = vmatpush1.msra.mxu0 0.0
    %889 = vmatprep.subr.mxu0 0.0
    %890 = vmatpush1.msra.mxu0 0.0
    %891 = vmatprep.subr.mxu0 0.0
    %892 = vmatpush1.msra.mxu0 0.0
    %893 = vmatprep.subr.mxu0 0.0
    %894 = vmatpush1.msra.mxu0 0.0
    %895 = vmatprep.subr.mxu0 0.0
    %896 = vmatpush1.msra.mxu0 0.0
    %897 = vmatprep.subr.mxu0 0.0
    %898 = vmatpush1.msra.mxu0 0.0
    %899 = vmatprep.subr.mxu0 0.0
    %900 = vmatpush1.msra.mxu0 0.0
    %901 = vmatprep.subr.mxu0 0.0
    %902 = vmatpush1.msra.mxu0 0.0
    %903 = vmatprep.subr.mxu0 0.0
    %904 = vmatpush1.msra.mxu0 0.0
    %905 = vmatprep.mubr.f32.mxu0 0.0
    %906 = vmatmul.mubr.f32.gmra.mrb[0].mxu0 %v830
    %v907 = vpop.f32.mrb[0].mxu0
    %v908 = vadd.f32 %v812, %v907
    %v909 = vpop.f32.mrb[0].mxu0
    %910 = vmatprep.mubr.f32.mxu0 0.0
    %911 = vmatmul.mubr.f32.gmra.mrb[0].mxu0 %v833
    %v912 = vpop.f32.mrb[0].mxu0
    %v913 = vadd.f32 %v817, %v912
    %v914 = vpop.f32.mrb[0].mxu0
    %915 = vmatprep.mubr.f32.mxu0 0.0
    %916 = vmatmul.mubr.f32.gmra.mrb[0].mxu0 %v836
    %v917 = vpop.f32.mrb[0].mxu0
    %v918 = vadd.f32 %v822, %v917
    %v919 = vpop.f32.mrb[0].mxu0
    %920 = vmatprep.mubr.f32.mxu0 0.0
    %921 = vmatmul.mubr.f32.gmra.mrb[0].mxu0 %v839
    %v922 = vpop.f32.mrb[0].mxu0
    %v923 = vadd.f32 %v827, %v922
    %v924 = vpop.f32.mrb[0].mxu0
    %925 = vdwg.mxu0
    %v926 = vadd.f32 %v797, %v908
    %v927 = vadd.f32 %v798, %v913
    %v928 = vadd.f32 %v799, %v918
    %v929 = vadd.f32 %v800, %v923
    %vm930 = vcmask 654336
    %v931 = vsel %vm930, %v926, 0.0
    %v932 = vsel %vm930, %v927, 0.0
    %v933 = vadd.f32 %v931, %v932
    %v934 = vsel %vm930, %v928, 0.0
    %v935 = vadd.f32 %v933, %v934
    %v936 = vsel %vm930, %v929, 0.0
    %v937 = vadd.f32 %v935, %v936
    %v938 = vrot.slane %v937, 4
    %v939 = vadd.f32 %v937, %v938
    %v940 = vrot.slane %v939, 2
    %v941 = vadd.f32 %v939, %v940
    %v942 = vrot.slane %v941, 1
    %v943 = vadd.f32 %v941, %v942
    %v944 = vrcp.pop 32.0
    %v945 = vmul.f32 %v943, %v944
    %v946 = vsub.f32 %v926, %v945
    %v947 = vsub.f32 %v927, %v945
    %v948 = vsub.f32 %v928, %v945
    %v949 = vsub.f32 %v929, %v945
    %v950 = vmul.f32 %v946, %v946
    %v951 = vmul.f32 %v947, %v947
    %v952 = vmul.f32 %v948, %v948
    %v953 = vmul.f32 %v949, %v949
    %v954 = vsel %vm930, %v950, 0.0
    %v955 = vsel %vm930, %v951, 0.0
    %v956 = vadd.f32 %v954, %v955
    %v957 = vsel %vm930, %v952, 0.0
    %v958 = vadd.f32 %v956, %v957
    %v959 = vsel %vm930, %v953, 0.0
    %v960 = vadd.f32 %v958, %v959
    %v961 = vrot.slane %v960, 4
    %v962 = vadd.f32 %v960, %v961
    %v963 = vrot.slane %v962, 2
    %v964 = vadd.f32 %v962, %v963
    %v965 = vrot.slane %v964, 1
    %v966 = vadd.f32 %v964, %v965
    %v967 = vmul.f32 %v966, %v944
    %v968 = vadd.f32 %v967, 1e-05
    %v969 = vrsqrt.pop %v968
    %v970 = vmul.f32 %v946, %v969
    %v971 = vmul.f32 %v947, %v969
    %v972 = vmul.f32 %v948, %v969
    %v973 = vmul.f32 %v949, %v969
    %974 = vset.pattern.permute.xlu0 1
    %975 = vperm.xlu0 %974, %v805
    %v976 = vpop.permute.xlu0 %975
    %978 = vset.pattern.permute.xlu0 1
    %979 = vperm.xlu0 %978, %v806
    %v980 = vpop.permute.xlu0 %979
    %982 = vset.pattern.permute.xlu0 1
    %983 = vperm.xlu0 %982, %v807
    %v984 = vpop.permute.xlu0 %983
    %986 = vset.pattern.permute.xlu0 1
    %987 = vperm.xlu0 %986, %v808
    %v988 = vpop.permute.xlu0 %987
    %v990 = vmul.f32 %v970, %v976
    %v991 = vmul.f32 %v971, %v980
    %v992 = vmul.f32 %v972, %v984
    %v993 = vmul.f32 %v973, %v988
    %994 = vset.pattern.permute.xlu0 2
    %995 = vperm.xlu0 %994, %v805
    %v996 = vpop.permute.xlu0 %995
    %998 = vset.pattern.permute.xlu0 2
    %999 = vperm.xlu0 %998, %v806
    %v1000 = vpop.permute.xlu0 %999
    %1002 = vset.pattern.permute.xlu0 2
    %1003 = vperm.xlu0 %1002, %v807
    %v1004 = vpop.permute.xlu0 %1003
    %1006 = vset.pattern.permute.xlu0 2
    %1007 = vperm.xlu0 %1006, %v808
    %v1008 = vpop.permute.xlu0 %1007
    %v1010 = vadd.f32 %v990, %v996
    %v1011 = vadd.f32 %v991, %v1000
    %v1012 = vadd.f32 %v992, %v1004
    %v1013 = vadd.f32 %v993, %v1008
    %vm1014 = vcmp.eq.s32.totalorder %v25, 0
    %v1015 = vsel %vm1014, 1, 0
    %v1016 = vcvt.s32.f32 %v1015
    %v1017 = vpack.c.bf16 %v1011, %v1010
    %v1018 = vpack.c.bf16 %v1013, %v1012
    %v1019 = vpack.c.bf16 %v1016, %v1016
    %v1020 = vld [vmem:[%s3] sm:$0xf]
    %v1021 = vld [vmem:[%s3 + $0x4] sm:$0xf]
    %v1022 = vld [vmem:[%s3 + $0x8] sm:$0xf]
    %v1023 = vld [vmem:[%s3 + $0xc] sm:$0xf]
    %v1024 = vld [vmem:[%s3 + $0x10] sm:$0xf]
    %v1025 = vld [vmem:[%s3 + $0x14] sm:$0xf]
    %v1026 = vld [vmem:[%s3 + $0x18] sm:$0xf]
    %v1027 = vld [vmem:[%s3 + $0x1c] sm:$0xf]
    %v1028 = vld [vmem:[%s3 + $0x20] sm:$0xf]
    %v1029 = vld [vmem:[%s3 + $0x24] sm:$0xf]
    %v1030 = vld [vmem:[%s3 + $0x28] sm:$0xf]
    %v1031 = vld [vmem:[%s3 + $0x2c] sm:$0xf]
    %v1032 = vld [vmem:[%s3 + $0x30] sm:$0xf]
    %v1033 = vld [vmem:[%s3 + $0x34] sm:$0xf]
    %v1034 = vld [vmem:[%s3 + $0x38] sm:$0xf]
    %v1035 = vld [vmem:[%s3 + $0x3c] sm:$0xf]
    %v1036 = vld [vmem:[%s3 + $0x40] sm:$0xf]
    %v1037 = vld [vmem:[%s3 + $0x44] sm:$0xf]
    %v1038 = vld [vmem:[%s3 + $0x48] sm:$0xf]
    %v1039 = vld [vmem:[%s3 + $0x4c] sm:$0xf]
    %v1040 = vld [vmem:[%s3 + $0x50] sm:$0xf]
    %v1041 = vld [vmem:[%s3 + $0x54] sm:$0xf]
    %v1042 = vld [vmem:[%s3 + $0x58] sm:$0xf]
    %v1043 = vld [vmem:[%s3 + $0x5c] sm:$0xf]
    %v1044 = vld [vmem:[%s3 + $0x60] sm:$0xf]
    %v1045 = vld [vmem:[%s3 + $0x64] sm:$0xf]
    %v1046 = vld [vmem:[%s3 + $0x68] sm:$0xf]
    %v1047 = vld [vmem:[%s3 + $0x6c] sm:$0xf]
    %v1048 = vld [vmem:[%s3 + $0x70] sm:$0xf]
    %v1049 = vld [vmem:[%s3 + $0x74] sm:$0xf]
    %v1050 = vld [vmem:[%s3 + $0x78] sm:$0xf]
    %v1051 = vld [vmem:[%s3 + $0x7c] sm:$0xf]
    %v1084 = vunpack.c.l.b16 %v1020
    %v1085 = vunpack.c.l.b16 %v1021
    %v1086 = vunpack.c.l.b16 %v1022
    %v1087 = vunpack.c.l.b16 %v1023
    %v1088 = vunpack.c.l.b16 %v1024
    %v1089 = vunpack.c.l.b16 %v1025
    %v1090 = vunpack.c.l.b16 %v1026
    %v1091 = vunpack.c.l.b16 %v1027
    %v1092 = vunpack.c.l.b16 %v1028
    %v1093 = vunpack.c.l.b16 %v1029
    %v1094 = vunpack.c.l.b16 %v1030
    %v1095 = vunpack.c.l.b16 %v1031
    %v1096 = vunpack.c.l.b16 %v1032
    %v1097 = vunpack.c.l.b16 %v1033
    %v1098 = vunpack.c.l.b16 %v1034
    %v1099 = vunpack.c.l.b16 %v1035
    %v1100 = vunpack.c.l.b16 %v1036
    %v1101 = vunpack.c.l.b16 %v1037
    %v1102 = vunpack.c.l.b16 %v1038
    %v1103 = vunpack.c.l.b16 %v1039
    %v1104 = vunpack.c.l.b16 %v1040
    %v1105 = vunpack.c.l.b16 %v1041
    %v1106 = vunpack.c.l.b16 %v1042
    %v1107 = vunpack.c.l.b16 %v1043
    %v1108 = vunpack.c.l.b16 %v1044
    %v1109 = vunpack.c.l.b16 %v1045
    %v1110 = vunpack.c.l.b16 %v1046
    %v1111 = vunpack.c.l.b16 %v1047
    %v1112 = vunpack.c.l.b16 %v1048
    %v1113 = vunpack.c.l.b16 %v1049
    %v1114 = vunpack.c.l.b16 %v1050
    %v1115 = vunpack.c.l.b16 %v1051
    %v1116 = vpack.c.b16 %v1085, %v1084
    %v1117 = vpack.c.b16 %v1087, %v1086
    %v1118 = vpack.c.b16 %v1089, %v1088
    %v1119 = vpack.c.b16 %v1091, %v1090
    %v1120 = vpack.c.b16 %v1093, %v1092
    %v1121 = vpack.c.b16 %v1095, %v1094
    %v1122 = vpack.c.b16 %v1097, %v1096
    %v1123 = vpack.c.b16 %v1099, %v1098
    %v1124 = vpack.c.b16 %v1101, %v1100
    %v1125 = vpack.c.b16 %v1103, %v1102
    %v1126 = vpack.c.b16 %v1105, %v1104
    %v1127 = vpack.c.b16 %v1107, %v1106
    %v1128 = vpack.c.b16 %v1109, %v1108
    %v1129 = vpack.c.b16 %v1111, %v1110
    %v1130 = vpack.c.b16 %v1113, %v1112
    %v1131 = vpack.c.b16 %v1115, %v1114
    %vm1132 = vcmask 326656
    %v1134 = vsel %vm1132, %v1116, 0
    %v1137 = vsel %vm1132, %v1117, 0
    %v1140 = vsel %vm1132, %v1118, 0
    %v1143 = vsel %vm1132, %v1119, 0
    %v1146 = vsel %vm1132, %v1120, 0
    %v1149 = vsel %vm1132, %v1121, 0
    %v1152 = vsel %vm1132, %v1122, 0
    %v1155 = vsel %vm1132, %v1123, 0
    %v1158 = vsel %vm1132, %v1124, 0
    %v1161 = vsel %vm1132, %v1125, 0
    %v1164 = vsel %vm1132, %v1126, 0
    %v1167 = vsel %vm1132, %v1127, 0
    %v1170 = vsel %vm1132, %v1128, 0
    %v1173 = vsel %vm1132, %v1129, 0
    %v1176 = vsel %vm1132, %v1130, 0
    %v1179 = vsel %vm1132, %v1131, 0
    %vm1181 = vcmask 1043456
    %v1183 = vsel %vm1181, %v1019, 0
    %1185 = vmatprep.subr.bf16.mxu0 0
    %1186 = vmatpush1.bf16.msra.mxu0 %v1017
    %1187 = vmatprep.subr.bf16.mxu0 0
    %1188 = vmatpush1.bf16.msra.mxu0 %v1018
    %1189 = vmatprep.subr.bf16.mxu0 0
    %1190 = vmatpush1.bf16.msra.mxu0 %v1183
    %1191 = vmatprep.subr.bf16.mxu0 0
    %1192 = vmatpush1.bf16.msra.mxu0 0
    %1193 = vmatprep.subr.bf16.mxu0 0
    %1194 = vmatpush1.bf16.msra.mxu0 0
    %1195 = vmatprep.subr.bf16.mxu0 0
    %1196 = vmatpush1.bf16.msra.mxu0 0
    %1197 = vmatprep.subr.bf16.mxu0 0
    %1198 = vmatpush1.bf16.msra.mxu0 0
    %1199 = vmatprep.subr.bf16.mxu0 0
    %1200 = vmatpush1.bf16.msra.mxu0 0
    %1201 = vmatprep.subr.bf16.mxu0 0
    %1202 = vmatpush1.bf16.msra.mxu0 0
    %1203 = vmatprep.subr.bf16.mxu0 0
    %1204 = vmatpush1.bf16.msra.mxu0 0
    %1205 = vmatprep.subr.bf16.mxu0 0
    %1206 = vmatpush1.bf16.msra.mxu0 0
    %1207 = vmatprep.subr.bf16.mxu0 0
    %1208 = vmatpush1.bf16.msra.mxu0 0
    %1209 = vmatprep.subr.bf16.mxu0 0
    %1210 = vmatpush1.bf16.msra.mxu0 0
    %1211 = vmatprep.subr.bf16.mxu0 0
    %1212 = vmatpush1.bf16.msra.mxu0 0
    %1213 = vmatprep.subr.bf16.mxu0 0
    %1214 = vmatpush1.bf16.msra.mxu0 0
    %1215 = vmatprep.subr.bf16.mxu0 0
    %1216 = vmatpush1.bf16.msra.mxu0 0
    %1217 = vmatprep.mubr.bf16.mxu0 0
    %1218 = vmatmul.mubr.bf16.gmra.mrb[0].mxu0 %v1134
    %v1219 = vpop.f32.mrb[0].mxu0
    %v1220 = vadd.f32 0.0, %v1219
    %v1221 = vpop.f32.mrb[0].mxu0
    %v1222 = vpop.f32.mrb[0].mxu0
    %v1223 = vadd.f32 0.0, %v1222
    %v1224 = vpop.f32.mrb[0].mxu0
    %1225 = vmatprep.mubr.bf16.mxu0 0
    %1226 = vmatmul.mubr.bf16.gmra.mrb[0].mxu0 %v1137
    %v1227 = vpop.f32.mrb[0].mxu0
    %v1228 = vadd.f32 0.0, %v1227
    %v1229 = vpop.f32.mrb[0].mxu0
    %v1230 = vpop.f32.mrb[0].mxu0
    %v1231 = vadd.f32 0.0, %v1230
    %v1232 = vpop.f32.mrb[0].mxu0
    %1233 = vmatprep.mubr.bf16.mxu0 0
    %1234 = vmatmul.mubr.bf16.gmra.mrb[0].mxu0 %v1140
    %v1235 = vpop.f32.mrb[0].mxu0
    %v1236 = vadd.f32 0.0, %v1235
    %v1237 = vpop.f32.mrb[0].mxu0
    %v1238 = vpop.f32.mrb[0].mxu0
    %v1239 = vadd.f32 0.0, %v1238
    %v1240 = vpop.f32.mrb[0].mxu0
    %1241 = vmatprep.mubr.bf16.mxu0 0
    %1242 = vmatmul.mubr.bf16.gmra.mrb[0].mxu0 %v1143
    %v1243 = vpop.f32.mrb[0].mxu0
    %v1244 = vadd.f32 0.0, %v1243
    %v1245 = vpop.f32.mrb[0].mxu0
    %v1246 = vpop.f32.mrb[0].mxu0
    %v1247 = vadd.f32 0.0, %v1246
    %v1248 = vpop.f32.mrb[0].mxu0
    %1249 = vmatprep.mubr.bf16.mxu0 0
    %1250 = vmatmul.mubr.bf16.gmra.mrb[0].mxu0 %v1146
    %v1251 = vpop.f32.mrb[0].mxu0
    %v1252 = vadd.f32 0.0, %v1251
    %v1253 = vpop.f32.mrb[0].mxu0
    %v1254 = vpop.f32.mrb[0].mxu0
    %v1255 = vadd.f32 0.0, %v1254
    %v1256 = vpop.f32.mrb[0].mxu0
    %1257 = vmatprep.mubr.bf16.mxu0 0
    %1258 = vmatmul.mubr.bf16.gmra.mrb[0].mxu0 %v1149
    %v1259 = vpop.f32.mrb[0].mxu0
    %v1260 = vadd.f32 0.0, %v1259
    %v1261 = vpop.f32.mrb[0].mxu0
    %v1262 = vpop.f32.mrb[0].mxu0
    %v1263 = vadd.f32 0.0, %v1262
    %v1264 = vpop.f32.mrb[0].mxu0
    %1265 = vmatprep.mubr.bf16.mxu0 0
    %1266 = vmatmul.mubr.bf16.gmra.mrb[0].mxu0 %v1152
    %v1267 = vpop.f32.mrb[0].mxu0
    %v1268 = vadd.f32 0.0, %v1267
    %v1269 = vpop.f32.mrb[0].mxu0
    %v1270 = vpop.f32.mrb[0].mxu0
    %v1271 = vadd.f32 0.0, %v1270
    %v1272 = vpop.f32.mrb[0].mxu0
    %1273 = vmatprep.mubr.bf16.mxu0 0
    %1274 = vmatmul.mubr.bf16.gmra.mrb[0].mxu0 %v1155
    %v1275 = vpop.f32.mrb[0].mxu0
    %v1276 = vadd.f32 0.0, %v1275
    %v1277 = vpop.f32.mrb[0].mxu0
    %v1278 = vpop.f32.mrb[0].mxu0
    %v1279 = vadd.f32 0.0, %v1278
    %v1280 = vpop.f32.mrb[0].mxu0
    %1281 = vmatprep.mubr.bf16.mxu0 0
    %1282 = vmatmul.mubr.bf16.gmra.mrb[0].mxu0 %v1158
    %v1283 = vpop.f32.mrb[0].mxu0
    %v1284 = vadd.f32 0.0, %v1283
    %v1285 = vpop.f32.mrb[0].mxu0
    %v1286 = vpop.f32.mrb[0].mxu0
    %v1287 = vadd.f32 0.0, %v1286
    %v1288 = vpop.f32.mrb[0].mxu0
    %1289 = vmatprep.mubr.bf16.mxu0 0
    %1290 = vmatmul.mubr.bf16.gmra.mrb[0].mxu0 %v1161
    %v1291 = vpop.f32.mrb[0].mxu0
    %v1292 = vadd.f32 0.0, %v1291
    %v1293 = vpop.f32.mrb[0].mxu0
    %v1294 = vpop.f32.mrb[0].mxu0
    %v1295 = vadd.f32 0.0, %v1294
    %v1296 = vpop.f32.mrb[0].mxu0
    %1297 = vmatprep.mubr.bf16.mxu0 0
    %1298 = vmatmul.mubr.bf16.gmra.mrb[0].mxu0 %v1164
    %v1299 = vpop.f32.mrb[0].mxu0
    %v1300 = vadd.f32 0.0, %v1299
    %v1301 = vpop.f32.mrb[0].mxu0
    %v1302 = vpop.f32.mrb[0].mxu0
    %v1303 = vadd.f32 0.0, %v1302
    %v1304 = vpop.f32.mrb[0].mxu0
    %1305 = vmatprep.mubr.bf16.mxu0 0
    %1306 = vmatmul.mubr.bf16.gmra.mrb[0].mxu0 %v1167
    %v1307 = vpop.f32.mrb[0].mxu0
    %v1308 = vadd.f32 0.0, %v1307
    %v1309 = vpop.f32.mrb[0].mxu0
    %v1310 = vpop.f32.mrb[0].mxu0
    %v1311 = vadd.f32 0.0, %v1310
    %v1312 = vpop.f32.mrb[0].mxu0
    %1313 = vmatprep.mubr.bf16.mxu0 0
    %1314 = vmatmul.mubr.bf16.gmra.mrb[0].mxu0 %v1170
    %v1315 = vpop.f32.mrb[0].mxu0
    %v1316 = vadd.f32 0.0, %v1315
    %v1317 = vpop.f32.mrb[0].mxu0
    %v1318 = vpop.f32.mrb[0].mxu0
    %v1319 = vadd.f32 0.0, %v1318
    %v1320 = vpop.f32.mrb[0].mxu0
    %1321 = vmatprep.mubr.bf16.mxu0 0
    %1322 = vmatmul.mubr.bf16.gmra.mrb[0].mxu0 %v1173
    %v1323 = vpop.f32.mrb[0].mxu0
    %v1324 = vadd.f32 0.0, %v1323
    %v1325 = vpop.f32.mrb[0].mxu0
    %v1326 = vpop.f32.mrb[0].mxu0
    %v1327 = vadd.f32 0.0, %v1326
    %v1328 = vpop.f32.mrb[0].mxu0
    %1329 = vmatprep.mubr.bf16.mxu0 0
    %1330 = vmatmul.mubr.bf16.gmra.mrb[0].mxu0 %v1176
    %v1331 = vpop.f32.mrb[0].mxu0
    %v1332 = vadd.f32 0.0, %v1331
    %v1333 = vpop.f32.mrb[0].mxu0
    %v1334 = vpop.f32.mrb[0].mxu0
    %v1335 = vadd.f32 0.0, %v1334
    %v1336 = vpop.f32.mrb[0].mxu0
    %1337 = vmatprep.mubr.bf16.mxu0 0
    %1338 = vmatmul.mubr.bf16.gmra.mrb[0].mxu0 %v1179
    %v1339 = vpop.f32.mrb[0].mxu0
    %v1340 = vadd.f32 0.0, %v1339
    %v1341 = vpop.f32.mrb[0].mxu0
    %v1342 = vpop.f32.mrb[0].mxu0
    %v1343 = vadd.f32 0.0, %v1342
    %v1344 = vpop.f32.mrb[0].mxu0
    %1345 = vdwg.mxu0
    %v1346 = vmax.f32 %v1220, 0.0
    %v1347 = vmax.f32 %v1223, 0.0
    %v1348 = vmax.f32 %v1228, 0.0
    %v1349 = vmax.f32 %v1231, 0.0
    %v1350 = vmax.f32 %v1236, 0.0
    %v1351 = vmax.f32 %v1239, 0.0
    %v1352 = vmax.f32 %v1244, 0.0
    %v1353 = vmax.f32 %v1247, 0.0
    %v1354 = vmax.f32 %v1252, 0.0
    %v1355 = vmax.f32 %v1255, 0.0
    %v1356 = vmax.f32 %v1260, 0.0
    %v1357 = vmax.f32 %v1263, 0.0
    %v1358 = vmax.f32 %v1268, 0.0
    %v1359 = vmax.f32 %v1271, 0.0
    %v1360 = vmax.f32 %v1276, 0.0
    %v1361 = vmax.f32 %v1279, 0.0
    %v1362 = vmax.f32 %v1284, 0.0
    %v1363 = vmax.f32 %v1287, 0.0
    %v1364 = vmax.f32 %v1292, 0.0
    %v1365 = vmax.f32 %v1295, 0.0
    %v1366 = vmax.f32 %v1300, 0.0
    %v1367 = vmax.f32 %v1303, 0.0
    %v1368 = vmax.f32 %v1308, 0.0
    %v1369 = vmax.f32 %v1311, 0.0
    %v1370 = vmax.f32 %v1316, 0.0
    %v1371 = vmax.f32 %v1319, 0.0
    %v1372 = vmax.f32 %v1324, 0.0
    %v1373 = vmax.f32 %v1327, 0.0
    %v1374 = vmax.f32 %v1332, 0.0
    %v1375 = vmax.f32 %v1335, 0.0
    %v1376 = vmax.f32 %v1340, 0.0
    %v1377 = vmax.f32 %v1343, 0.0
    %v1378 = vpack.c.bf16 %v1347, %v1346
    %v1379 = vpack.c.bf16 %v1349, %v1348
    %v1380 = vpack.c.bf16 %v1351, %v1350
    %v1381 = vpack.c.bf16 %v1353, %v1352
    %v1382 = vpack.c.bf16 %v1355, %v1354
    %v1383 = vpack.c.bf16 %v1357, %v1356
    %v1384 = vpack.c.bf16 %v1359, %v1358
    %v1385 = vpack.c.bf16 %v1361, %v1360
    %v1386 = vpack.c.bf16 %v1363, %v1362
    %v1387 = vpack.c.bf16 %v1365, %v1364
    %v1388 = vpack.c.bf16 %v1367, %v1366
    %v1389 = vpack.c.bf16 %v1369, %v1368
    %v1390 = vpack.c.bf16 %v1371, %v1370
    %v1391 = vpack.c.bf16 %v1373, %v1372
    %v1392 = vpack.c.bf16 %v1375, %v1374
    %v1393 = vpack.c.bf16 %v1377, %v1376
    %v1394 = vld [vmem:[%s4] sm:$0xff]
    %v1395 = vld [vmem:[%s4 + $0x40] sm:$0xff]
    %v1396 = vld [vmem:[%s4 + $0x80] sm:$0xff]
    %v1397 = vld [vmem:[%s4 + $0xc0] sm:$0xff]
    %v1398 = vld [vmem:[%s3 + $0x80] sm:$0xf]
    %v1399 = vld [vmem:[%s3 + $0x84] sm:$0xf]
    %v1400 = vld [vmem:[%s3 + $0x88] sm:$0xf]
    %v1401 = vld [vmem:[%s3 + $0x8c] sm:$0xf]
    %v1402 = vld [vmem:[%s3 + $0x90] sm:$0xf]
    %v1403 = vld [vmem:[%s3 + $0x94] sm:$0xf]
    %v1404 = vld [vmem:[%s3 + $0x98] sm:$0xf]
    %v1405 = vld [vmem:[%s3 + $0x9c] sm:$0xf]
    %v1406 = vld [vmem:[%s3 + $0xa0] sm:$0xf]
    %v1407 = vld [vmem:[%s3 + $0xa4] sm:$0xf]
    %v1408 = vld [vmem:[%s3 + $0xa8] sm:$0xf]
    %v1409 = vld [vmem:[%s3 + $0xac] sm:$0xf]
    %v1410 = vld [vmem:[%s3 + $0xb0] sm:$0xf]
    %v1411 = vld [vmem:[%s3 + $0xb4] sm:$0xf]
    %v1412 = vld [vmem:[%s3 + $0xb8] sm:$0xf]
    %v1413 = vld [vmem:[%s3 + $0xbc] sm:$0xf]
    %v1414 = vld [vmem:[%s3 + $0xc0] sm:$0xf]
    %v1415 = vld [vmem:[%s3 + $0xc4] sm:$0xf]
    %v1416 = vld [vmem:[%s3 + $0xc8] sm:$0xf]
    %v1417 = vld [vmem:[%s3 + $0xcc] sm:$0xf]
    %v1418 = vld [vmem:[%s3 + $0xd0] sm:$0xf]
    %v1419 = vld [vmem:[%s3 + $0xd4] sm:$0xf]
    %v1420 = vld [vmem:[%s3 + $0xd8] sm:$0xf]
    %v1421 = vld [vmem:[%s3 + $0xdc] sm:$0xf]
    %v1422 = vld [vmem:[%s3 + $0xe0] sm:$0xf]
    %v1423 = vld [vmem:[%s3 + $0xe4] sm:$0xf]
    %v1424 = vld [vmem:[%s3 + $0xe8] sm:$0xf]
    %v1425 = vld [vmem:[%s3 + $0xec] sm:$0xf]
    %v1426 = vld [vmem:[%s3 + $0xf0] sm:$0xf]
    %v1427 = vld [vmem:[%s3 + $0xf4] sm:$0xf]
    %v1428 = vld [vmem:[%s3 + $0xf8] sm:$0xf]
    %v1429 = vld [vmem:[%s3 + $0xfc] sm:$0xf]
    %v1462 = vunpack.c.l.b16 %v1398
    %v1463 = vunpack.c.l.b16 %v1399
    %v1464 = vunpack.c.l.b16 %v1400
    %v1465 = vunpack.c.l.b16 %v1401
    %v1466 = vunpack.c.l.b16 %v1402
    %v1467 = vunpack.c.l.b16 %v1403
    %v1468 = vunpack.c.l.b16 %v1404
    %v1469 = vunpack.c.l.b16 %v1405
    %v1470 = vunpack.c.l.b16 %v1406
    %v1471 = vunpack.c.l.b16 %v1407
    %v1472 = vunpack.c.l.b16 %v1408
    %v1473 = vunpack.c.l.b16 %v1409
    %v1474 = vunpack.c.l.b16 %v1410
    %v1475 = vunpack.c.l.b16 %v1411
    %v1476 = vunpack.c.l.b16 %v1412
    %v1477 = vunpack.c.l.b16 %v1413
    %v1478 = vunpack.c.l.b16 %v1414
    %v1479 = vunpack.c.l.b16 %v1415
    %v1480 = vunpack.c.l.b16 %v1416
    %v1481 = vunpack.c.l.b16 %v1417
    %v1482 = vunpack.c.l.b16 %v1418
    %v1483 = vunpack.c.l.b16 %v1419
    %v1484 = vunpack.c.l.b16 %v1420
    %v1485 = vunpack.c.l.b16 %v1421
    %v1486 = vunpack.c.l.b16 %v1422
    %v1487 = vunpack.c.l.b16 %v1423
    %v1488 = vunpack.c.l.b16 %v1424
    %v1489 = vunpack.c.l.b16 %v1425
    %v1490 = vunpack.c.l.b16 %v1426
    %v1491 = vunpack.c.l.b16 %v1427
    %v1492 = vunpack.c.l.b16 %v1428
    %v1493 = vunpack.c.l.b16 %v1429
    %v1494 = vpack.c.b16 %v1463, %v1462
    %v1495 = vpack.c.b16 %v1465, %v1464
    %v1496 = vpack.c.b16 %v1467, %v1466
    %v1497 = vpack.c.b16 %v1469, %v1468
    %v1498 = vpack.c.b16 %v1471, %v1470
    %v1499 = vpack.c.b16 %v1473, %v1472
    %v1500 = vpack.c.b16 %v1475, %v1474
    %v1501 = vpack.c.b16 %v1477, %v1476
    %v1502 = vpack.c.b16 %v1479, %v1478
    %v1503 = vpack.c.b16 %v1481, %v1480
    %v1504 = vpack.c.b16 %v1483, %v1482
    %v1505 = vpack.c.b16 %v1485, %v1484
    %v1506 = vpack.c.b16 %v1487, %v1486
    %v1507 = vpack.c.b16 %v1489, %v1488
    %v1508 = vpack.c.b16 %v1491, %v1490
    %v1509 = vpack.c.b16 %v1493, %v1492
    %v1511 = vsel %vm1132, %v1494, 0
    %v1514 = vsel %vm1132, %v1495, 0
    %v1517 = vsel %vm1132, %v1496, 0
    %v1520 = vsel %vm1132, %v1497, 0
    %v1523 = vsel %vm1132, %v1498, 0
    %v1526 = vsel %vm1132, %v1499, 0
    %v1529 = vsel %vm1132, %v1500, 0
    %v1532 = vsel %vm1132, %v1501, 0
    %v1535 = vsel %vm1132, %v1502, 0
    %v1538 = vsel %vm1132, %v1503, 0
    %v1541 = vsel %vm1132, %v1504, 0
    %v1544 = vsel %vm1132, %v1505, 0
    %v1547 = vsel %vm1132, %v1506, 0
    %v1550 = vsel %vm1132, %v1507, 0
    %v1553 = vsel %vm1132, %v1508, 0
    %v1556 = vsel %vm1132, %v1509, 0
    %1558 = vmatprep.subr.bf16.mxu0 0
    %1559 = vmatpush1.bf16.msra.mxu0 %v1017
    %1560 = vmatprep.subr.bf16.mxu0 0
    %1561 = vmatpush1.bf16.msra.mxu0 %v1018
    %1562 = vmatprep.subr.bf16.mxu0 0
    %1563 = vmatpush1.bf16.msra.mxu0 %v1183
    %1564 = vmatprep.subr.bf16.mxu0 0
    %1565 = vmatpush1.bf16.msra.mxu0 0
    %1566 = vmatprep.subr.bf16.mxu0 0
    %1567 = vmatpush1.bf16.msra.mxu0 0
    %1568 = vmatprep.subr.bf16.mxu0 0
    %1569 = vmatpush1.bf16.msra.mxu0 0
    %1570 = vmatprep.subr.bf16.mxu0 0
    %1571 = vmatpush1.bf16.msra.mxu0 0
    %1572 = vmatprep.subr.bf16.mxu0 0
    %1573 = vmatpush1.bf16.msra.mxu0 0
    %1574 = vmatprep.subr.bf16.mxu0 0
    %1575 = vmatpush1.bf16.msra.mxu0 0
    %1576 = vmatprep.subr.bf16.mxu0 0
    %1577 = vmatpush1.bf16.msra.mxu0 0
    %1578 = vmatprep.subr.bf16.mxu0 0
    %1579 = vmatpush1.bf16.msra.mxu0 0
    %1580 = vmatprep.subr.bf16.mxu0 0
    %1581 = vmatpush1.bf16.msra.mxu0 0
    %1582 = vmatprep.subr.bf16.mxu0 0
    %1583 = vmatpush1.bf16.msra.mxu0 0
    %1584 = vmatprep.subr.bf16.mxu0 0
    %1585 = vmatpush1.bf16.msra.mxu0 0
    %1586 = vmatprep.subr.bf16.mxu0 0
    %1587 = vmatpush1.bf16.msra.mxu0 0
    %1588 = vmatprep.subr.bf16.mxu0 0
    %1589 = vmatpush1.bf16.msra.mxu0 0
    %1590 = vmatprep.mubr.bf16.mxu0 0
    %1591 = vmatmul.mubr.bf16.gmra.mrb[0].mxu0 %v1511
    %v1592 = vpop.f32.mrb[0].mxu0
    %v1593 = vadd.f32 0.0, %v1592
    %v1594 = vpop.f32.mrb[0].mxu0
    %v1595 = vpop.f32.mrb[0].mxu0
    %v1596 = vadd.f32 0.0, %v1595
    %v1597 = vpop.f32.mrb[0].mxu0
    %1598 = vmatprep.mubr.bf16.mxu0 0
    %1599 = vmatmul.mubr.bf16.gmra.mrb[0].mxu0 %v1514
    %v1600 = vpop.f32.mrb[0].mxu0
    %v1601 = vadd.f32 0.0, %v1600
    %v1602 = vpop.f32.mrb[0].mxu0
    %v1603 = vpop.f32.mrb[0].mxu0
    %v1604 = vadd.f32 0.0, %v1603
    %v1605 = vpop.f32.mrb[0].mxu0
    %1606 = vmatprep.mubr.bf16.mxu0 0
    %1607 = vmatmul.mubr.bf16.gmra.mrb[0].mxu0 %v1517
    %v1608 = vpop.f32.mrb[0].mxu0
    %v1609 = vadd.f32 0.0, %v1608
    %v1610 = vpop.f32.mrb[0].mxu0
    %v1611 = vpop.f32.mrb[0].mxu0
    %v1612 = vadd.f32 0.0, %v1611
    %v1613 = vpop.f32.mrb[0].mxu0
    %1614 = vmatprep.mubr.bf16.mxu0 0
    %1615 = vmatmul.mubr.bf16.gmra.mrb[0].mxu0 %v1520
    %v1616 = vpop.f32.mrb[0].mxu0
    %v1617 = vadd.f32 0.0, %v1616
    %v1618 = vpop.f32.mrb[0].mxu0
    %v1619 = vpop.f32.mrb[0].mxu0
    %v1620 = vadd.f32 0.0, %v1619
    %v1621 = vpop.f32.mrb[0].mxu0
    %1622 = vmatprep.mubr.bf16.mxu0 0
    %1623 = vmatmul.mubr.bf16.gmra.mrb[0].mxu0 %v1523
    %v1624 = vpop.f32.mrb[0].mxu0
    %v1625 = vadd.f32 0.0, %v1624
    %v1626 = vpop.f32.mrb[0].mxu0
    %v1627 = vpop.f32.mrb[0].mxu0
    %v1628 = vadd.f32 0.0, %v1627
    %v1629 = vpop.f32.mrb[0].mxu0
    %1630 = vmatprep.mubr.bf16.mxu0 0
    %1631 = vmatmul.mubr.bf16.gmra.mrb[0].mxu0 %v1526
    %v1632 = vpop.f32.mrb[0].mxu0
    %v1633 = vadd.f32 0.0, %v1632
    %v1634 = vpop.f32.mrb[0].mxu0
    %v1635 = vpop.f32.mrb[0].mxu0
    %v1636 = vadd.f32 0.0, %v1635
    %v1637 = vpop.f32.mrb[0].mxu0
    %1638 = vmatprep.mubr.bf16.mxu0 0
    %1639 = vmatmul.mubr.bf16.gmra.mrb[0].mxu0 %v1529
    %v1640 = vpop.f32.mrb[0].mxu0
    %v1641 = vadd.f32 0.0, %v1640
    %v1642 = vpop.f32.mrb[0].mxu0
    %v1643 = vpop.f32.mrb[0].mxu0
    %v1644 = vadd.f32 0.0, %v1643
    %v1645 = vpop.f32.mrb[0].mxu0
    %1646 = vmatprep.mubr.bf16.mxu0 0
    %1647 = vmatmul.mubr.bf16.gmra.mrb[0].mxu0 %v1532
    %v1648 = vpop.f32.mrb[0].mxu0
    %v1649 = vadd.f32 0.0, %v1648
    %v1650 = vpop.f32.mrb[0].mxu0
    %v1651 = vpop.f32.mrb[0].mxu0
    %v1652 = vadd.f32 0.0, %v1651
    %v1653 = vpop.f32.mrb[0].mxu0
    %1654 = vmatprep.mubr.bf16.mxu0 0
    %1655 = vmatmul.mubr.bf16.gmra.mrb[0].mxu0 %v1535
    %v1656 = vpop.f32.mrb[0].mxu0
    %v1657 = vadd.f32 0.0, %v1656
    %v1658 = vpop.f32.mrb[0].mxu0
    %v1659 = vpop.f32.mrb[0].mxu0
    %v1660 = vadd.f32 0.0, %v1659
    %v1661 = vpop.f32.mrb[0].mxu0
    %1662 = vmatprep.mubr.bf16.mxu0 0
    %1663 = vmatmul.mubr.bf16.gmra.mrb[0].mxu0 %v1538
    %v1664 = vpop.f32.mrb[0].mxu0
    %v1665 = vadd.f32 0.0, %v1664
    %v1666 = vpop.f32.mrb[0].mxu0
    %v1667 = vpop.f32.mrb[0].mxu0
    %v1668 = vadd.f32 0.0, %v1667
    %v1669 = vpop.f32.mrb[0].mxu0
    %1670 = vmatprep.mubr.bf16.mxu0 0
    %1671 = vmatmul.mubr.bf16.gmra.mrb[0].mxu0 %v1541
    %v1672 = vpop.f32.mrb[0].mxu0
    %v1673 = vadd.f32 0.0, %v1672
    %v1674 = vpop.f32.mrb[0].mxu0
    %v1675 = vpop.f32.mrb[0].mxu0
    %v1676 = vadd.f32 0.0, %v1675
    %v1677 = vpop.f32.mrb[0].mxu0
    %1678 = vmatprep.mubr.bf16.mxu0 0
    %1679 = vmatmul.mubr.bf16.gmra.mrb[0].mxu0 %v1544
    %v1680 = vpop.f32.mrb[0].mxu0
    %v1681 = vadd.f32 0.0, %v1680
    %v1682 = vpop.f32.mrb[0].mxu0
    %v1683 = vpop.f32.mrb[0].mxu0
    %v1684 = vadd.f32 0.0, %v1683
    %v1685 = vpop.f32.mrb[0].mxu0
    %1686 = vmatprep.mubr.bf16.mxu0 0
    %1687 = vmatmul.mubr.bf16.gmra.mrb[0].mxu0 %v1547
    %v1688 = vpop.f32.mrb[0].mxu0
    %v1689 = vadd.f32 0.0, %v1688
    %v1690 = vpop.f32.mrb[0].mxu0
    %v1691 = vpop.f32.mrb[0].mxu0
    %v1692 = vadd.f32 0.0, %v1691
    %v1693 = vpop.f32.mrb[0].mxu0
    %1694 = vmatprep.mubr.bf16.mxu0 0
    %1695 = vmatmul.mubr.bf16.gmra.mrb[0].mxu0 %v1550
    %v1696 = vpop.f32.mrb[0].mxu0
    %v1697 = vadd.f32 0.0, %v1696
    %v1698 = vpop.f32.mrb[0].mxu0
    %v1699 = vpop.f32.mrb[0].mxu0
    %v1700 = vadd.f32 0.0, %v1699
    %v1701 = vpop.f32.mrb[0].mxu0
    %1702 = vmatprep.mubr.bf16.mxu0 0
    %1703 = vmatmul.mubr.bf16.gmra.mrb[0].mxu0 %v1553
    %v1704 = vpop.f32.mrb[0].mxu0
    %v1705 = vadd.f32 0.0, %v1704
    %v1706 = vpop.f32.mrb[0].mxu0
    %v1707 = vpop.f32.mrb[0].mxu0
    %v1708 = vadd.f32 0.0, %v1707
    %v1709 = vpop.f32.mrb[0].mxu0
    %1710 = vmatprep.mubr.bf16.mxu0 0
    %1711 = vmatmul.mubr.bf16.gmra.mrb[0].mxu0 %v1556
    %v1712 = vpop.f32.mrb[0].mxu0
    %v1713 = vadd.f32 0.0, %v1712
    %v1714 = vpop.f32.mrb[0].mxu0
    %v1715 = vpop.f32.mrb[0].mxu0
    %v1716 = vadd.f32 0.0, %v1715
    %v1717 = vpop.f32.mrb[0].mxu0
    %1718 = vdwg.mxu0
    %v1719 = vmax.f32 %v1593, 0.0
    %v1720 = vmax.f32 %v1596, 0.0
    %v1721 = vmax.f32 %v1601, 0.0
    %v1722 = vmax.f32 %v1604, 0.0
    %v1723 = vmax.f32 %v1609, 0.0
    %v1724 = vmax.f32 %v1612, 0.0
    %v1725 = vmax.f32 %v1617, 0.0
    %v1726 = vmax.f32 %v1620, 0.0
    %v1727 = vmax.f32 %v1625, 0.0
    %v1728 = vmax.f32 %v1628, 0.0
    %v1729 = vmax.f32 %v1633, 0.0
    %v1730 = vmax.f32 %v1636, 0.0
    %v1731 = vmax.f32 %v1641, 0.0
    %v1732 = vmax.f32 %v1644, 0.0
    %v1733 = vmax.f32 %v1649, 0.0
    %v1734 = vmax.f32 %v1652, 0.0
    %v1735 = vmax.f32 %v1657, 0.0
    %v1736 = vmax.f32 %v1660, 0.0
    %v1737 = vmax.f32 %v1665, 0.0
    %v1738 = vmax.f32 %v1668, 0.0
    %v1739 = vmax.f32 %v1673, 0.0
    %v1740 = vmax.f32 %v1676, 0.0
    %v1741 = vmax.f32 %v1681, 0.0
    %v1742 = vmax.f32 %v1684, 0.0
    %v1743 = vmax.f32 %v1689, 0.0
    %v1744 = vmax.f32 %v1692, 0.0
    %v1745 = vmax.f32 %v1697, 0.0
    %v1746 = vmax.f32 %v1700, 0.0
    %v1747 = vmax.f32 %v1705, 0.0
    %v1748 = vmax.f32 %v1708, 0.0
    %v1749 = vmax.f32 %v1713, 0.0
    %v1750 = vmax.f32 %v1716, 0.0
    %v1751 = vpack.c.bf16 %v1720, %v1719
    %v1752 = vpack.c.bf16 %v1722, %v1721
    %v1753 = vpack.c.bf16 %v1724, %v1723
    %v1754 = vpack.c.bf16 %v1726, %v1725
    %v1755 = vpack.c.bf16 %v1728, %v1727
    %v1756 = vpack.c.bf16 %v1730, %v1729
    %v1757 = vpack.c.bf16 %v1732, %v1731
    %v1758 = vpack.c.bf16 %v1734, %v1733
    %v1759 = vpack.c.bf16 %v1736, %v1735
    %v1760 = vpack.c.bf16 %v1738, %v1737
    %v1761 = vpack.c.bf16 %v1740, %v1739
    %v1762 = vpack.c.bf16 %v1742, %v1741
    %v1763 = vpack.c.bf16 %v1744, %v1743
    %v1764 = vpack.c.bf16 %v1746, %v1745
    %v1765 = vpack.c.bf16 %v1748, %v1747
    %v1766 = vpack.c.bf16 %v1750, %v1749
    %v1767 = vld [vmem:[%s4 + $0x8] sm:$0xff]
    %v1768 = vld [vmem:[%s4 + $0x48] sm:$0xff]
    %v1769 = vld [vmem:[%s4 + $0x88] sm:$0xff]
    %v1770 = vld [vmem:[%s4 + $0xc8] sm:$0xff]
    %v1775 = vunpack.c.l.b16 %v1767
    %v1776 = vunpack.c.h.b16 %v1767
    %v1777 = vunpack.c.l.b16 %v1768
    %v1778 = vunpack.c.h.b16 %v1768
    %v1779 = vunpack.c.l.b16 %v1769
    %v1780 = vunpack.c.h.b16 %v1769
    %v1781 = vunpack.c.l.b16 %v1770
    %v1782 = vunpack.c.h.b16 %v1770
    %v1783 = vpack.c.b16 %v1777, %v1775
    %v1784 = vpack.c.b16 %v1778, %v1776
    %v1785 = vpack.c.b16 %v1781, %v1779
    %v1786 = vpack.c.b16 %v1782, %v1780
    %1791 = vmatprep.subr.bf16.mxu0 0
    %1792 = vmatpush1.bf16.msra.mxu0 %v1751
    %1793 = vmatprep.subr.bf16.mxu0 0
    %1794 = vmatpush1.bf16.msra.mxu0 %v1752
    %1795 = vmatprep.subr.bf16.mxu0 0
    %1796 = vmatpush1.bf16.msra.mxu0 %v1753
    %1797 = vmatprep.subr.bf16.mxu0 0
    %1798 = vmatpush1.bf16.msra.mxu0 %v1754
    %1799 = vmatprep.subr.bf16.mxu0 0
    %1800 = vmatpush1.bf16.msra.mxu0 %v1755
    %1801 = vmatprep.subr.bf16.mxu0 0
    %1802 = vmatpush1.bf16.msra.mxu0 %v1756
    %1803 = vmatprep.subr.bf16.mxu0 0
    %1804 = vmatpush1.bf16.msra.mxu0 %v1757
    %1805 = vmatprep.subr.bf16.mxu0 0
    %1806 = vmatpush1.bf16.msra.mxu0 %v1758
    %1807 = vmatprep.subr.bf16.mxu0 0
    %1808 = vmatpush1.bf16.msra.mxu0 %v1759
    %1809 = vmatprep.subr.bf16.mxu0 0
    %1810 = vmatpush1.bf16.msra.mxu0 %v1760
    %1811 = vmatprep.subr.bf16.mxu0 0
    %1812 = vmatpush1.bf16.msra.mxu0 %v1761
    %1813 = vmatprep.subr.bf16.mxu0 0
    %1814 = vmatpush1.bf16.msra.mxu0 %v1762
    %1815 = vmatprep.subr.bf16.mxu0 0
    %1816 = vmatpush1.bf16.msra.mxu0 %v1763
    %1817 = vmatprep.subr.bf16.mxu0 0
    %1818 = vmatpush1.bf16.msra.mxu0 %v1764
    %1819 = vmatprep.subr.bf16.mxu0 0
    %1820 = vmatpush1.bf16.msra.mxu0 %v1765
    %1821 = vmatprep.subr.bf16.mxu0 0
    %1822 = vmatpush1.bf16.msra.mxu0 %v1766
    %1823 = vmatprep.mubr.bf16.mxu0 %v1784
    %1824 = vmatmul.mubr.bf16.gmra.mrb[0].mxu0 %v1783
    %v1825 = vpop.f32.mrb[0].mxu0
    %v1826 = vadd.f32 0.0, %v1825
    %v1827 = vpop.f32.mrb[0].mxu0
    %v1828 = vpop.f32.mrb[0].mxu0
    %v1829 = vadd.f32 0.0, %v1828
    %v1830 = vpop.f32.mrb[0].mxu0
    %1831 = vmatprep.mubr.bf16.mxu0 %v1786
    %1832 = vmatmul.mubr.bf16.gmra.mrb[0].mxu0 %v1785
    %v1833 = vpop.f32.mrb[0].mxu0
    %v1834 = vadd.f32 0.0, %v1833
    %v1835 = vpop.f32.mrb[0].mxu0
    %v1836 = vpop.f32.mrb[0].mxu0
    %v1837 = vadd.f32 0.0, %v1836
    %v1838 = vpop.f32.mrb[0].mxu0
    %1839 = vdwg.mxu0
    %v1844 = vunpack.c.l.b16 %v1394
    %v1845 = vunpack.c.h.b16 %v1394
    %v1846 = vunpack.c.l.b16 %v1395
    %v1847 = vunpack.c.h.b16 %v1395
    %v1848 = vunpack.c.l.b16 %v1396
    %v1849 = vunpack.c.h.b16 %v1396
    %v1850 = vunpack.c.l.b16 %v1397
    %v1851 = vunpack.c.h.b16 %v1397
    %v1852 = vpack.c.b16 %v1846, %v1844
    %v1853 = vpack.c.b16 %v1847, %v1845
    %v1854 = vpack.c.b16 %v1850, %v1848
    %v1855 = vpack.c.b16 %v1851, %v1849
    %1860 = vmatprep.subr.bf16.mxu0 0
    %1861 = vmatpush1.bf16.msra.mxu0 %v1378
    %1862 = vmatprep.subr.bf16.mxu0 0
    %1863 = vmatpush1.bf16.msra.mxu0 %v1379
    %1864 = vmatprep.subr.bf16.mxu0 0
    %1865 = vmatpush1.bf16.msra.mxu0 %v1380
    %1866 = vmatprep.subr.bf16.mxu0 0
    %1867 = vmatpush1.bf16.msra.mxu0 %v1381
    %1868 = vmatprep.subr.bf16.mxu0 0
    %1869 = vmatpush1.bf16.msra.mxu0 %v1382
    %1870 = vmatprep.subr.bf16.mxu0 0
    %1871 = vmatpush1.bf16.msra.mxu0 %v1383
    %1872 = vmatprep.subr.bf16.mxu0 0
    %1873 = vmatpush1.bf16.msra.mxu0 %v1384
    %1874 = vmatprep.subr.bf16.mxu0 0
    %1875 = vmatpush1.bf16.msra.mxu0 %v1385
    %1876 = vmatprep.subr.bf16.mxu0 0
    %1877 = vmatpush1.bf16.msra.mxu0 %v1386
    %1878 = vmatprep.subr.bf16.mxu0 0
    %1879 = vmatpush1.bf16.msra.mxu0 %v1387
    %1880 = vmatprep.subr.bf16.mxu0 0
    %1881 = vmatpush1.bf16.msra.mxu0 %v1388
    %1882 = vmatprep.subr.bf16.mxu0 0
    %1883 = vmatpush1.bf16.msra.mxu0 %v1389
    %1884 = vmatprep.subr.bf16.mxu0 0
    %1885 = vmatpush1.bf16.msra.mxu0 %v1390
    %1886 = vmatprep.subr.bf16.mxu0 0
    %1887 = vmatpush1.bf16.msra.mxu0 %v1391
    %1888 = vmatprep.subr.bf16.mxu0 0
    %1889 = vmatpush1.bf16.msra.mxu0 %v1392
    %1890 = vmatprep.subr.bf16.mxu0 0
    %1891 = vmatpush1.bf16.msra.mxu0 %v1393
    %1892 = vmatprep.mubr.bf16.mxu0 %v1853
    %1893 = vmatmul.mubr.bf16.gmra.mrb[0].mxu0 %v1852
    %v1894 = vpop.f32.mrb[0].mxu0
    %v1895 = vadd.f32 %v1826, %v1894
    %v1896 = vpop.f32.mrb[0].mxu0
    %v1897 = vpop.f32.mrb[0].mxu0
    %v1898 = vadd.f32 %v1829, %v1897
    %v1899 = vpop.f32.mrb[0].mxu0
    %1900 = vmatprep.mubr.bf16.mxu0 %v1855
    %1901 = vmatmul.mubr.bf16.gmra.mrb[0].mxu0 %v1854
    %v1902 = vpop.f32.mrb[0].mxu0
    %v1903 = vadd.f32 %v1834, %v1902
    %v1904 = vpop.f32.mrb[0].mxu0
    %v1905 = vpop.f32.mrb[0].mxu0
    %v1906 = vadd.f32 %v1837, %v1905
    %v1907 = vpop.f32.mrb[0].mxu0
    %1908 = vdwg.mxu0
    %v1909 = vld [vmem:[%s3 + $0x100] sm:$0xf]
    %v1910 = vld [vmem:[%s3 + $0x104] sm:$0xf]
    %v1911 = vld [vmem:[%s3 + $0x108] sm:$0xf]
    %v1912 = vld [vmem:[%s3 + $0x10c] sm:$0xf]
    %v1913 = vld [vmem:[%s3 + $0x110] sm:$0xf]
    %v1914 = vld [vmem:[%s3 + $0x114] sm:$0xf]
    %v1915 = vld [vmem:[%s3 + $0x118] sm:$0xf]
    %v1916 = vld [vmem:[%s3 + $0x11c] sm:$0xf]
    %v1917 = vld [vmem:[%s3 + $0x120] sm:$0xf]
    %v1918 = vld [vmem:[%s3 + $0x124] sm:$0xf]
    %v1919 = vld [vmem:[%s3 + $0x128] sm:$0xf]
    %v1920 = vld [vmem:[%s3 + $0x12c] sm:$0xf]
    %v1921 = vld [vmem:[%s3 + $0x130] sm:$0xf]
    %v1922 = vld [vmem:[%s3 + $0x134] sm:$0xf]
    %v1923 = vld [vmem:[%s3 + $0x138] sm:$0xf]
    %v1924 = vld [vmem:[%s3 + $0x13c] sm:$0xf]
    %v1925 = vld [vmem:[%s3 + $0x140] sm:$0xf]
    %v1926 = vld [vmem:[%s3 + $0x144] sm:$0xf]
    %v1927 = vld [vmem:[%s3 + $0x148] sm:$0xf]
    %v1928 = vld [vmem:[%s3 + $0x14c] sm:$0xf]
    %v1929 = vld [vmem:[%s3 + $0x150] sm:$0xf]
    %v1930 = vld [vmem:[%s3 + $0x154] sm:$0xf]
    %v1931 = vld [vmem:[%s3 + $0x158] sm:$0xf]
    %v1932 = vld [vmem:[%s3 + $0x15c] sm:$0xf]
    %v1933 = vld [vmem:[%s3 + $0x160] sm:$0xf]
    %v1934 = vld [vmem:[%s3 + $0x164] sm:$0xf]
    %v1935 = vld [vmem:[%s3 + $0x168] sm:$0xf]
    %v1936 = vld [vmem:[%s3 + $0x16c] sm:$0xf]
    %v1937 = vld [vmem:[%s3 + $0x170] sm:$0xf]
    %v1938 = vld [vmem:[%s3 + $0x174] sm:$0xf]
    %v1939 = vld [vmem:[%s3 + $0x178] sm:$0xf]
    %v1940 = vld [vmem:[%s3 + $0x17c] sm:$0xf]
    %v1973 = vunpack.c.l.b16 %v1909
    %v1974 = vunpack.c.l.b16 %v1910
    %v1975 = vunpack.c.l.b16 %v1911
    %v1976 = vunpack.c.l.b16 %v1912
    %v1977 = vunpack.c.l.b16 %v1913
    %v1978 = vunpack.c.l.b16 %v1914
    %v1979 = vunpack.c.l.b16 %v1915
    %v1980 = vunpack.c.l.b16 %v1916
    %v1981 = vunpack.c.l.b16 %v1917
    %v1982 = vunpack.c.l.b16 %v1918
    %v1983 = vunpack.c.l.b16 %v1919
    %v1984 = vunpack.c.l.b16 %v1920
    %v1985 = vunpack.c.l.b16 %v1921
    %v1986 = vunpack.c.l.b16 %v1922
    %v1987 = vunpack.c.l.b16 %v1923
    %v1988 = vunpack.c.l.b16 %v1924
    %v1989 = vunpack.c.l.b16 %v1925
    %v1990 = vunpack.c.l.b16 %v1926
    %v1991 = vunpack.c.l.b16 %v1927
    %v1992 = vunpack.c.l.b16 %v1928
    %v1993 = vunpack.c.l.b16 %v1929
    %v1994 = vunpack.c.l.b16 %v1930
    %v1995 = vunpack.c.l.b16 %v1931
    %v1996 = vunpack.c.l.b16 %v1932
    %v1997 = vunpack.c.l.b16 %v1933
    %v1998 = vunpack.c.l.b16 %v1934
    %v1999 = vunpack.c.l.b16 %v1935
    %v2000 = vunpack.c.l.b16 %v1936
    %v2001 = vunpack.c.l.b16 %v1937
    %v2002 = vunpack.c.l.b16 %v1938
    %v2003 = vunpack.c.l.b16 %v1939
    %v2004 = vunpack.c.l.b16 %v1940
    %v2005 = vpack.c.b16 %v1974, %v1973
    %v2006 = vpack.c.b16 %v1976, %v1975
    %v2007 = vpack.c.b16 %v1978, %v1977
    %v2008 = vpack.c.b16 %v1980, %v1979
    %v2009 = vpack.c.b16 %v1982, %v1981
    %v2010 = vpack.c.b16 %v1984, %v1983
    %v2011 = vpack.c.b16 %v1986, %v1985
    %v2012 = vpack.c.b16 %v1988, %v1987
    %v2013 = vpack.c.b16 %v1990, %v1989
    %v2014 = vpack.c.b16 %v1992, %v1991
    %v2015 = vpack.c.b16 %v1994, %v1993
    %v2016 = vpack.c.b16 %v1996, %v1995
    %v2017 = vpack.c.b16 %v1998, %v1997
    %v2018 = vpack.c.b16 %v2000, %v1999
    %v2019 = vpack.c.b16 %v2002, %v2001
    %v2020 = vpack.c.b16 %v2004, %v2003
    %v2022 = vsel %vm1132, %v2005, 0
    %v2025 = vsel %vm1132, %v2006, 0
    %v2028 = vsel %vm1132, %v2007, 0
    %v2031 = vsel %vm1132, %v2008, 0
    %v2034 = vsel %vm1132, %v2009, 0
    %v2037 = vsel %vm1132, %v2010, 0
    %v2040 = vsel %vm1132, %v2011, 0
    %v2043 = vsel %vm1132, %v2012, 0
    %v2046 = vsel %vm1132, %v2013, 0
    %v2049 = vsel %vm1132, %v2014, 0
    %v2052 = vsel %vm1132, %v2015, 0
    %v2055 = vsel %vm1132, %v2016, 0
    %v2058 = vsel %vm1132, %v2017, 0
    %v2061 = vsel %vm1132, %v2018, 0
    %v2064 = vsel %vm1132, %v2019, 0
    %v2067 = vsel %vm1132, %v2020, 0
    %2069 = vmatprep.subr.bf16.mxu0 0
    %2070 = vmatpush1.bf16.msra.mxu0 %v1017
    %2071 = vmatprep.subr.bf16.mxu0 0
    %2072 = vmatpush1.bf16.msra.mxu0 %v1018
    %2073 = vmatprep.subr.bf16.mxu0 0
    %2074 = vmatpush1.bf16.msra.mxu0 %v1183
    %2075 = vmatprep.subr.bf16.mxu0 0
    %2076 = vmatpush1.bf16.msra.mxu0 0
    %2077 = vmatprep.subr.bf16.mxu0 0
    %2078 = vmatpush1.bf16.msra.mxu0 0
    %2079 = vmatprep.subr.bf16.mxu0 0
    %2080 = vmatpush1.bf16.msra.mxu0 0
    %2081 = vmatprep.subr.bf16.mxu0 0
    %2082 = vmatpush1.bf16.msra.mxu0 0
    %2083 = vmatprep.subr.bf16.mxu0 0
    %2084 = vmatpush1.bf16.msra.mxu0 0
    %2085 = vmatprep.subr.bf16.mxu0 0
    %2086 = vmatpush1.bf16.msra.mxu0 0
    %2087 = vmatprep.subr.bf16.mxu0 0
    %2088 = vmatpush1.bf16.msra.mxu0 0
    %2089 = vmatprep.subr.bf16.mxu0 0
    %2090 = vmatpush1.bf16.msra.mxu0 0
    %2091 = vmatprep.subr.bf16.mxu0 0
    %2092 = vmatpush1.bf16.msra.mxu0 0
    %2093 = vmatprep.subr.bf16.mxu0 0
    %2094 = vmatpush1.bf16.msra.mxu0 0
    %2095 = vmatprep.subr.bf16.mxu0 0
    %2096 = vmatpush1.bf16.msra.mxu0 0
    %2097 = vmatprep.subr.bf16.mxu0 0
    %2098 = vmatpush1.bf16.msra.mxu0 0
    %2099 = vmatprep.subr.bf16.mxu0 0
    %2100 = vmatpush1.bf16.msra.mxu0 0
    %2101 = vmatprep.mubr.bf16.mxu0 0
    %2102 = vmatmul.mubr.bf16.gmra.mrb[0].mxu0 %v2022
    %v2103 = vpop.f32.mrb[0].mxu0
    %v2104 = vadd.f32 0.0, %v2103
    %v2105 = vpop.f32.mrb[0].mxu0
    %v2106 = vpop.f32.mrb[0].mxu0
    %v2107 = vadd.f32 0.0, %v2106
    %v2108 = vpop.f32.mrb[0].mxu0
    %2109 = vmatprep.mubr.bf16.mxu0 0
    %2110 = vmatmul.mubr.bf16.gmra.mrb[0].mxu0 %v2025
    %v2111 = vpop.f32.mrb[0].mxu0
    %v2112 = vadd.f32 0.0, %v2111
    %v2113 = vpop.f32.mrb[0].mxu0
    %v2114 = vpop.f32.mrb[0].mxu0
    %v2115 = vadd.f32 0.0, %v2114
    %v2116 = vpop.f32.mrb[0].mxu0
    %2117 = vmatprep.mubr.bf16.mxu0 0
    %2118 = vmatmul.mubr.bf16.gmra.mrb[0].mxu0 %v2028
    %v2119 = vpop.f32.mrb[0].mxu0
    %v2120 = vadd.f32 0.0, %v2119
    %v2121 = vpop.f32.mrb[0].mxu0
    %v2122 = vpop.f32.mrb[0].mxu0
    %v2123 = vadd.f32 0.0, %v2122
    %v2124 = vpop.f32.mrb[0].mxu0
    %2125 = vmatprep.mubr.bf16.mxu0 0
    %2126 = vmatmul.mubr.bf16.gmra.mrb[0].mxu0 %v2031
    %v2127 = vpop.f32.mrb[0].mxu0
    %v2128 = vadd.f32 0.0, %v2127
    %v2129 = vpop.f32.mrb[0].mxu0
    %v2130 = vpop.f32.mrb[0].mxu0
    %v2131 = vadd.f32 0.0, %v2130
    %v2132 = vpop.f32.mrb[0].mxu0
    %2133 = vmatprep.mubr.bf16.mxu0 0
    %2134 = vmatmul.mubr.bf16.gmra.mrb[0].mxu0 %v2034
    %v2135 = vpop.f32.mrb[0].mxu0
    %v2136 = vadd.f32 0.0, %v2135
    %v2137 = vpop.f32.mrb[0].mxu0
    %v2138 = vpop.f32.mrb[0].mxu0
    %v2139 = vadd.f32 0.0, %v2138
    %v2140 = vpop.f32.mrb[0].mxu0
    %2141 = vmatprep.mubr.bf16.mxu0 0
    %2142 = vmatmul.mubr.bf16.gmra.mrb[0].mxu0 %v2037
    %v2143 = vpop.f32.mrb[0].mxu0
    %v2144 = vadd.f32 0.0, %v2143
    %v2145 = vpop.f32.mrb[0].mxu0
    %v2146 = vpop.f32.mrb[0].mxu0
    %v2147 = vadd.f32 0.0, %v2146
    %v2148 = vpop.f32.mrb[0].mxu0
    %2149 = vmatprep.mubr.bf16.mxu0 0
    %2150 = vmatmul.mubr.bf16.gmra.mrb[0].mxu0 %v2040
    %v2151 = vpop.f32.mrb[0].mxu0
    %v2152 = vadd.f32 0.0, %v2151
    %v2153 = vpop.f32.mrb[0].mxu0
    %v2154 = vpop.f32.mrb[0].mxu0
    %v2155 = vadd.f32 0.0, %v2154
    %v2156 = vpop.f32.mrb[0].mxu0
    %2157 = vmatprep.mubr.bf16.mxu0 0
    %2158 = vmatmul.mubr.bf16.gmra.mrb[0].mxu0 %v2043
    %v2159 = vpop.f32.mrb[0].mxu0
    %v2160 = vadd.f32 0.0, %v2159
    %v2161 = vpop.f32.mrb[0].mxu0
    %v2162 = vpop.f32.mrb[0].mxu0
    %v2163 = vadd.f32 0.0, %v2162
    %v2164 = vpop.f32.mrb[0].mxu0
    %2165 = vmatprep.mubr.bf16.mxu0 0
    %2166 = vmatmul.mubr.bf16.gmra.mrb[0].mxu0 %v2046
    %v2167 = vpop.f32.mrb[0].mxu0
    %v2168 = vadd.f32 0.0, %v2167
    %v2169 = vpop.f32.mrb[0].mxu0
    %v2170 = vpop.f32.mrb[0].mxu0
    %v2171 = vadd.f32 0.0, %v2170
    %v2172 = vpop.f32.mrb[0].mxu0
    %2173 = vmatprep.mubr.bf16.mxu0 0
    %2174 = vmatmul.mubr.bf16.gmra.mrb[0].mxu0 %v2049
    %v2175 = vpop.f32.mrb[0].mxu0
    %v2176 = vadd.f32 0.0, %v2175
    %v2177 = vpop.f32.mrb[0].mxu0
    %v2178 = vpop.f32.mrb[0].mxu0
    %v2179 = vadd.f32 0.0, %v2178
    %v2180 = vpop.f32.mrb[0].mxu0
    %2181 = vmatprep.mubr.bf16.mxu0 0
    %2182 = vmatmul.mubr.bf16.gmra.mrb[0].mxu0 %v2052
    %v2183 = vpop.f32.mrb[0].mxu0
    %v2184 = vadd.f32 0.0, %v2183
    %v2185 = vpop.f32.mrb[0].mxu0
    %v2186 = vpop.f32.mrb[0].mxu0
    %v2187 = vadd.f32 0.0, %v2186
    %v2188 = vpop.f32.mrb[0].mxu0
    %2189 = vmatprep.mubr.bf16.mxu0 0
    %2190 = vmatmul.mubr.bf16.gmra.mrb[0].mxu0 %v2055
    %v2191 = vpop.f32.mrb[0].mxu0
    %v2192 = vadd.f32 0.0, %v2191
    %v2193 = vpop.f32.mrb[0].mxu0
    %v2194 = vpop.f32.mrb[0].mxu0
    %v2195 = vadd.f32 0.0, %v2194
    %v2196 = vpop.f32.mrb[0].mxu0
    %2197 = vmatprep.mubr.bf16.mxu0 0
    %2198 = vmatmul.mubr.bf16.gmra.mrb[0].mxu0 %v2058
    %v2199 = vpop.f32.mrb[0].mxu0
    %v2200 = vadd.f32 0.0, %v2199
    %v2201 = vpop.f32.mrb[0].mxu0
    %v2202 = vpop.f32.mrb[0].mxu0
    %v2203 = vadd.f32 0.0, %v2202
    %v2204 = vpop.f32.mrb[0].mxu0
    %2205 = vmatprep.mubr.bf16.mxu0 0
    %2206 = vmatmul.mubr.bf16.gmra.mrb[0].mxu0 %v2061
    %v2207 = vpop.f32.mrb[0].mxu0
    %v2208 = vadd.f32 0.0, %v2207
    %v2209 = vpop.f32.mrb[0].mxu0
    %v2210 = vpop.f32.mrb[0].mxu0
    %v2211 = vadd.f32 0.0, %v2210
    %v2212 = vpop.f32.mrb[0].mxu0
    %2213 = vmatprep.mubr.bf16.mxu0 0
    %2214 = vmatmul.mubr.bf16.gmra.mrb[0].mxu0 %v2064
    %v2215 = vpop.f32.mrb[0].mxu0
    %v2216 = vadd.f32 0.0, %v2215
    %v2217 = vpop.f32.mrb[0].mxu0
    %v2218 = vpop.f32.mrb[0].mxu0
    %v2219 = vadd.f32 0.0, %v2218
    %v2220 = vpop.f32.mrb[0].mxu0
    %2221 = vmatprep.mubr.bf16.mxu0 0
    %2222 = vmatmul.mubr.bf16.gmra.mrb[0].mxu0 %v2067
    %v2223 = vpop.f32.mrb[0].mxu0
    %v2224 = vadd.f32 0.0, %v2223
    %v2225 = vpop.f32.mrb[0].mxu0
    %v2226 = vpop.f32.mrb[0].mxu0
    %v2227 = vadd.f32 0.0, %v2226
    %v2228 = vpop.f32.mrb[0].mxu0
    %2229 = vdwg.mxu0
    %v2230 = vmax.f32 %v2104, 0.0
    %v2231 = vmax.f32 %v2107, 0.0
    %v2232 = vmax.f32 %v2112, 0.0
    %v2233 = vmax.f32 %v2115, 0.0
    %v2234 = vmax.f32 %v2120, 0.0
    %v2235 = vmax.f32 %v2123, 0.0
    %v2236 = vmax.f32 %v2128, 0.0
    %v2237 = vmax.f32 %v2131, 0.0
    %v2238 = vmax.f32 %v2136, 0.0
    %v2239 = vmax.f32 %v2139, 0.0
    %v2240 = vmax.f32 %v2144, 0.0
    %v2241 = vmax.f32 %v2147, 0.0
    %v2242 = vmax.f32 %v2152, 0.0
    %v2243 = vmax.f32 %v2155, 0.0
    %v2244 = vmax.f32 %v2160, 0.0
    %v2245 = vmax.f32 %v2163, 0.0
    %v2246 = vmax.f32 %v2168, 0.0
    %v2247 = vmax.f32 %v2171, 0.0
    %v2248 = vmax.f32 %v2176, 0.0
    %v2249 = vmax.f32 %v2179, 0.0
    %v2250 = vmax.f32 %v2184, 0.0
    %v2251 = vmax.f32 %v2187, 0.0
    %v2252 = vmax.f32 %v2192, 0.0
    %v2253 = vmax.f32 %v2195, 0.0
    %v2254 = vmax.f32 %v2200, 0.0
    %v2255 = vmax.f32 %v2203, 0.0
    %v2256 = vmax.f32 %v2208, 0.0
    %v2257 = vmax.f32 %v2211, 0.0
    %v2258 = vmax.f32 %v2216, 0.0
    %v2259 = vmax.f32 %v2219, 0.0
    %v2260 = vmax.f32 %v2224, 0.0
    %v2261 = vmax.f32 %v2227, 0.0
    %v2262 = vpack.c.bf16 %v2231, %v2230
    %v2263 = vpack.c.bf16 %v2233, %v2232
    %v2264 = vpack.c.bf16 %v2235, %v2234
    %v2265 = vpack.c.bf16 %v2237, %v2236
    %v2266 = vpack.c.bf16 %v2239, %v2238
    %v2267 = vpack.c.bf16 %v2241, %v2240
    %v2268 = vpack.c.bf16 %v2243, %v2242
    %v2269 = vpack.c.bf16 %v2245, %v2244
    %v2270 = vpack.c.bf16 %v2247, %v2246
    %v2271 = vpack.c.bf16 %v2249, %v2248
    %v2272 = vpack.c.bf16 %v2251, %v2250
    %v2273 = vpack.c.bf16 %v2253, %v2252
    %v2274 = vpack.c.bf16 %v2255, %v2254
    %v2275 = vpack.c.bf16 %v2257, %v2256
    %v2276 = vpack.c.bf16 %v2259, %v2258
    %v2277 = vpack.c.bf16 %v2261, %v2260
    %v2278 = vld [vmem:[%s4 + $0x10] sm:$0xff]
    %v2279 = vld [vmem:[%s4 + $0x50] sm:$0xff]
    %v2280 = vld [vmem:[%s4 + $0x90] sm:$0xff]
    %v2281 = vld [vmem:[%s4 + $0xd0] sm:$0xff]
    %v2286 = vunpack.c.l.b16 %v2278
    %v2287 = vunpack.c.h.b16 %v2278
    %v2288 = vunpack.c.l.b16 %v2279
    %v2289 = vunpack.c.h.b16 %v2279
    %v2290 = vunpack.c.l.b16 %v2280
    %v2291 = vunpack.c.h.b16 %v2280
    %v2292 = vunpack.c.l.b16 %v2281
    %v2293 = vunpack.c.h.b16 %v2281
    %v2294 = vpack.c.b16 %v2288, %v2286
    %v2295 = vpack.c.b16 %v2289, %v2287
    %v2296 = vpack.c.b16 %v2292, %v2290
    %v2297 = vpack.c.b16 %v2293, %v2291
    %2302 = vmatprep.subr.bf16.mxu0 0
    %2303 = vmatpush1.bf16.msra.mxu0 %v2262
    %2304 = vmatprep.subr.bf16.mxu0 0
    %2305 = vmatpush1.bf16.msra.mxu0 %v2263
    %2306 = vmatprep.subr.bf16.mxu0 0
    %2307 = vmatpush1.bf16.msra.mxu0 %v2264
    %2308 = vmatprep.subr.bf16.mxu0 0
    %2309 = vmatpush1.bf16.msra.mxu0 %v2265
    %2310 = vmatprep.subr.bf16.mxu0 0
    %2311 = vmatpush1.bf16.msra.mxu0 %v2266
    %2312 = vmatprep.subr.bf16.mxu0 0
    %2313 = vmatpush1.bf16.msra.mxu0 %v2267
    %2314 = vmatprep.subr.bf16.mxu0 0
    %2315 = vmatpush1.bf16.msra.mxu0 %v2268
    %2316 = vmatprep.subr.bf16.mxu0 0
    %2317 = vmatpush1.bf16.msra.mxu0 %v2269
    %2318 = vmatprep.subr.bf16.mxu0 0
    %2319 = vmatpush1.bf16.msra.mxu0 %v2270
    %2320 = vmatprep.subr.bf16.mxu0 0
    %2321 = vmatpush1.bf16.msra.mxu0 %v2271
    %2322 = vmatprep.subr.bf16.mxu0 0
    %2323 = vmatpush1.bf16.msra.mxu0 %v2272
    %2324 = vmatprep.subr.bf16.mxu0 0
    %2325 = vmatpush1.bf16.msra.mxu0 %v2273
    %2326 = vmatprep.subr.bf16.mxu0 0
    %2327 = vmatpush1.bf16.msra.mxu0 %v2274
    %2328 = vmatprep.subr.bf16.mxu0 0
    %2329 = vmatpush1.bf16.msra.mxu0 %v2275
    %2330 = vmatprep.subr.bf16.mxu0 0
    %2331 = vmatpush1.bf16.msra.mxu0 %v2276
    %2332 = vmatprep.subr.bf16.mxu0 0
    %2333 = vmatpush1.bf16.msra.mxu0 %v2277
    %2334 = vmatprep.mubr.bf16.mxu0 %v2295
    %2335 = vmatmul.mubr.bf16.gmra.mrb[0].mxu0 %v2294
    %v2336 = vpop.f32.mrb[0].mxu0
    %v2337 = vadd.f32 0.0, %v2336
    %v2338 = vpop.f32.mrb[0].mxu0
    %v2339 = vpop.f32.mrb[0].mxu0
    %v2340 = vadd.f32 0.0, %v2339
    %v2341 = vpop.f32.mrb[0].mxu0
    %2342 = vmatprep.mubr.bf16.mxu0 %v2297
    %2343 = vmatmul.mubr.bf16.gmra.mrb[0].mxu0 %v2296
    %v2344 = vpop.f32.mrb[0].mxu0
    %v2345 = vadd.f32 0.0, %v2344
    %v2346 = vpop.f32.mrb[0].mxu0
    %v2347 = vpop.f32.mrb[0].mxu0
    %v2348 = vadd.f32 0.0, %v2347
    %v2349 = vpop.f32.mrb[0].mxu0
    %2350 = vdwg.mxu0
    %v2351 = vadd.f32 %v1895, %v2337
    %v2352 = vadd.f32 %v1898, %v2340
    %v2353 = vadd.f32 %v1903, %v2345
    %v2354 = vadd.f32 %v1906, %v2348
    %v2355 = vld [vmem:[%s3 + $0x180] sm:$0xf]
    %v2356 = vld [vmem:[%s3 + $0x184] sm:$0xf]
    %v2357 = vld [vmem:[%s3 + $0x188] sm:$0xf]
    %v2358 = vld [vmem:[%s3 + $0x18c] sm:$0xf]
    %v2359 = vld [vmem:[%s3 + $0x190] sm:$0xf]
    %v2360 = vld [vmem:[%s3 + $0x194] sm:$0xf]
    %v2361 = vld [vmem:[%s3 + $0x198] sm:$0xf]
    %v2362 = vld [vmem:[%s3 + $0x19c] sm:$0xf]
    %v2363 = vld [vmem:[%s3 + $0x1a0] sm:$0xf]
    %v2364 = vld [vmem:[%s3 + $0x1a4] sm:$0xf]
    %v2365 = vld [vmem:[%s3 + $0x1a8] sm:$0xf]
    %v2366 = vld [vmem:[%s3 + $0x1ac] sm:$0xf]
    %v2367 = vld [vmem:[%s3 + $0x1b0] sm:$0xf]
    %v2368 = vld [vmem:[%s3 + $0x1b4] sm:$0xf]
    %v2369 = vld [vmem:[%s3 + $0x1b8] sm:$0xf]
    %v2370 = vld [vmem:[%s3 + $0x1bc] sm:$0xf]
    %v2371 = vld [vmem:[%s3 + $0x1c0] sm:$0xf]
    %v2372 = vld [vmem:[%s3 + $0x1c4] sm:$0xf]
    %v2373 = vld [vmem:[%s3 + $0x1c8] sm:$0xf]
    %v2374 = vld [vmem:[%s3 + $0x1cc] sm:$0xf]
    %v2375 = vld [vmem:[%s3 + $0x1d0] sm:$0xf]
    %v2376 = vld [vmem:[%s3 + $0x1d4] sm:$0xf]
    %v2377 = vld [vmem:[%s3 + $0x1d8] sm:$0xf]
    %v2378 = vld [vmem:[%s3 + $0x1dc] sm:$0xf]
    %v2379 = vld [vmem:[%s3 + $0x1e0] sm:$0xf]
    %v2380 = vld [vmem:[%s3 + $0x1e4] sm:$0xf]
    %v2381 = vld [vmem:[%s3 + $0x1e8] sm:$0xf]
    %v2382 = vld [vmem:[%s3 + $0x1ec] sm:$0xf]
    %v2383 = vld [vmem:[%s3 + $0x1f0] sm:$0xf]
    %v2384 = vld [vmem:[%s3 + $0x1f4] sm:$0xf]
    %v2385 = vld [vmem:[%s3 + $0x1f8] sm:$0xf]
    %v2386 = vld [vmem:[%s3 + $0x1fc] sm:$0xf]
    %v2419 = vunpack.c.l.b16 %v2355
    %v2420 = vunpack.c.l.b16 %v2356
    %v2421 = vunpack.c.l.b16 %v2357
    %v2422 = vunpack.c.l.b16 %v2358
    %v2423 = vunpack.c.l.b16 %v2359
    %v2424 = vunpack.c.l.b16 %v2360
    %v2425 = vunpack.c.l.b16 %v2361
    %v2426 = vunpack.c.l.b16 %v2362
    %v2427 = vunpack.c.l.b16 %v2363
    %v2428 = vunpack.c.l.b16 %v2364
    %v2429 = vunpack.c.l.b16 %v2365
    %v2430 = vunpack.c.l.b16 %v2366
    %v2431 = vunpack.c.l.b16 %v2367
    %v2432 = vunpack.c.l.b16 %v2368
    %v2433 = vunpack.c.l.b16 %v2369
    %v2434 = vunpack.c.l.b16 %v2370
    %v2435 = vunpack.c.l.b16 %v2371
    %v2436 = vunpack.c.l.b16 %v2372
    %v2437 = vunpack.c.l.b16 %v2373
    %v2438 = vunpack.c.l.b16 %v2374
    %v2439 = vunpack.c.l.b16 %v2375
    %v2440 = vunpack.c.l.b16 %v2376
    %v2441 = vunpack.c.l.b16 %v2377
    %v2442 = vunpack.c.l.b16 %v2378
    %v2443 = vunpack.c.l.b16 %v2379
    %v2444 = vunpack.c.l.b16 %v2380
    %v2445 = vunpack.c.l.b16 %v2381
    %v2446 = vunpack.c.l.b16 %v2382
    %v2447 = vunpack.c.l.b16 %v2383
    %v2448 = vunpack.c.l.b16 %v2384
    %v2449 = vunpack.c.l.b16 %v2385
    %v2450 = vunpack.c.l.b16 %v2386
    %v2451 = vpack.c.b16 %v2420, %v2419
    %v2452 = vpack.c.b16 %v2422, %v2421
    %v2453 = vpack.c.b16 %v2424, %v2423
    %v2454 = vpack.c.b16 %v2426, %v2425
    %v2455 = vpack.c.b16 %v2428, %v2427
    %v2456 = vpack.c.b16 %v2430, %v2429
    %v2457 = vpack.c.b16 %v2432, %v2431
    %v2458 = vpack.c.b16 %v2434, %v2433
    %v2459 = vpack.c.b16 %v2436, %v2435
    %v2460 = vpack.c.b16 %v2438, %v2437
    %v2461 = vpack.c.b16 %v2440, %v2439
    %v2462 = vpack.c.b16 %v2442, %v2441
    %v2463 = vpack.c.b16 %v2444, %v2443
    %v2464 = vpack.c.b16 %v2446, %v2445
    %v2465 = vpack.c.b16 %v2448, %v2447
    %v2466 = vpack.c.b16 %v2450, %v2449
    %v2468 = vsel %vm1132, %v2451, 0
    %v2471 = vsel %vm1132, %v2452, 0
    %v2474 = vsel %vm1132, %v2453, 0
    %v2477 = vsel %vm1132, %v2454, 0
    %v2480 = vsel %vm1132, %v2455, 0
    %v2483 = vsel %vm1132, %v2456, 0
    %v2486 = vsel %vm1132, %v2457, 0
    %v2489 = vsel %vm1132, %v2458, 0
    %v2492 = vsel %vm1132, %v2459, 0
    %v2495 = vsel %vm1132, %v2460, 0
    %v2498 = vsel %vm1132, %v2461, 0
    %v2501 = vsel %vm1132, %v2462, 0
    %v2504 = vsel %vm1132, %v2463, 0
    %v2507 = vsel %vm1132, %v2464, 0
    %v2510 = vsel %vm1132, %v2465, 0
    %v2513 = vsel %vm1132, %v2466, 0
    %2515 = vmatprep.subr.bf16.mxu0 0
    %2516 = vmatpush1.bf16.msra.mxu0 %v1017
    %2517 = vmatprep.subr.bf16.mxu0 0
    %2518 = vmatpush1.bf16.msra.mxu0 %v1018
    %2519 = vmatprep.subr.bf16.mxu0 0
    %2520 = vmatpush1.bf16.msra.mxu0 %v1183
    %2521 = vmatprep.subr.bf16.mxu0 0
    %2522 = vmatpush1.bf16.msra.mxu0 0
    %2523 = vmatprep.subr.bf16.mxu0 0
    %2524 = vmatpush1.bf16.msra.mxu0 0
    %2525 = vmatprep.subr.bf16.mxu0 0
    %2526 = vmatpush1.bf16.msra.mxu0 0
    %2527 = vmatprep.subr.bf16.mxu0 0
    %2528 = vmatpush1.bf16.msra.mxu0 0
    %2529 = vmatprep.subr.bf16.mxu0 0
    %2530 = vmatpush1.bf16.msra.mxu0 0
    %2531 = vmatprep.subr.bf16.mxu0 0
    %2532 = vmatpush1.bf16.msra.mxu0 0
    %2533 = vmatprep.subr.bf16.mxu0 0
    %2534 = vmatpush1.bf16.msra.mxu0 0
    %2535 = vmatprep.subr.bf16.mxu0 0
    %2536 = vmatpush1.bf16.msra.mxu0 0
    %2537 = vmatprep.subr.bf16.mxu0 0
    %2538 = vmatpush1.bf16.msra.mxu0 0
    %2539 = vmatprep.subr.bf16.mxu0 0
    %2540 = vmatpush1.bf16.msra.mxu0 0
    %2541 = vmatprep.subr.bf16.mxu0 0
    %2542 = vmatpush1.bf16.msra.mxu0 0
    %2543 = vmatprep.subr.bf16.mxu0 0
    %2544 = vmatpush1.bf16.msra.mxu0 0
    %2545 = vmatprep.subr.bf16.mxu0 0
    %2546 = vmatpush1.bf16.msra.mxu0 0
    %2547 = vmatprep.mubr.bf16.mxu0 0
    %2548 = vmatmul.mubr.bf16.gmra.mrb[0].mxu0 %v2468
    %v2549 = vpop.f32.mrb[0].mxu0
    %v2550 = vadd.f32 0.0, %v2549
    %v2551 = vpop.f32.mrb[0].mxu0
    %v2552 = vpop.f32.mrb[0].mxu0
    %v2553 = vadd.f32 0.0, %v2552
    %v2554 = vpop.f32.mrb[0].mxu0
    %2555 = vmatprep.mubr.bf16.mxu0 0
    %2556 = vmatmul.mubr.bf16.gmra.mrb[0].mxu0 %v2471
    %v2557 = vpop.f32.mrb[0].mxu0
    %v2558 = vadd.f32 0.0, %v2557
    %v2559 = vpop.f32.mrb[0].mxu0
    %v2560 = vpop.f32.mrb[0].mxu0
    %v2561 = vadd.f32 0.0, %v2560
    %v2562 = vpop.f32.mrb[0].mxu0
    %2563 = vmatprep.mubr.bf16.mxu0 0
    %2564 = vmatmul.mubr.bf16.gmra.mrb[0].mxu0 %v2474
    %v2565 = vpop.f32.mrb[0].mxu0
    %v2566 = vadd.f32 0.0, %v2565
    %v2567 = vpop.f32.mrb[0].mxu0
    %v2568 = vpop.f32.mrb[0].mxu0
    %v2569 = vadd.f32 0.0, %v2568
    %v2570 = vpop.f32.mrb[0].mxu0
    %2571 = vmatprep.mubr.bf16.mxu0 0
    %2572 = vmatmul.mubr.bf16.gmra.mrb[0].mxu0 %v2477
    %v2573 = vpop.f32.mrb[0].mxu0
    %v2574 = vadd.f32 0.0, %v2573
    %v2575 = vpop.f32.mrb[0].mxu0
    %v2576 = vpop.f32.mrb[0].mxu0
    %v2577 = vadd.f32 0.0, %v2576
    %v2578 = vpop.f32.mrb[0].mxu0
    %2579 = vmatprep.mubr.bf16.mxu0 0
    %2580 = vmatmul.mubr.bf16.gmra.mrb[0].mxu0 %v2480
    %v2581 = vpop.f32.mrb[0].mxu0
    %v2582 = vadd.f32 0.0, %v2581
    %v2583 = vpop.f32.mrb[0].mxu0
    %v2584 = vpop.f32.mrb[0].mxu0
    %v2585 = vadd.f32 0.0, %v2584
    %v2586 = vpop.f32.mrb[0].mxu0
    %2587 = vmatprep.mubr.bf16.mxu0 0
    %2588 = vmatmul.mubr.bf16.gmra.mrb[0].mxu0 %v2483
    %v2589 = vpop.f32.mrb[0].mxu0
    %v2590 = vadd.f32 0.0, %v2589
    %v2591 = vpop.f32.mrb[0].mxu0
    %v2592 = vpop.f32.mrb[0].mxu0
    %v2593 = vadd.f32 0.0, %v2592
    %v2594 = vpop.f32.mrb[0].mxu0
    %2595 = vmatprep.mubr.bf16.mxu0 0
    %2596 = vmatmul.mubr.bf16.gmra.mrb[0].mxu0 %v2486
    %v2597 = vpop.f32.mrb[0].mxu0
    %v2598 = vadd.f32 0.0, %v2597
    %v2599 = vpop.f32.mrb[0].mxu0
    %v2600 = vpop.f32.mrb[0].mxu0
    %v2601 = vadd.f32 0.0, %v2600
    %v2602 = vpop.f32.mrb[0].mxu0
    %2603 = vmatprep.mubr.bf16.mxu0 0
    %2604 = vmatmul.mubr.bf16.gmra.mrb[0].mxu0 %v2489
    %v2605 = vpop.f32.mrb[0].mxu0
    %v2606 = vadd.f32 0.0, %v2605
    %v2607 = vpop.f32.mrb[0].mxu0
    %v2608 = vpop.f32.mrb[0].mxu0
    %v2609 = vadd.f32 0.0, %v2608
    %v2610 = vpop.f32.mrb[0].mxu0
    %2611 = vmatprep.mubr.bf16.mxu0 0
    %2612 = vmatmul.mubr.bf16.gmra.mrb[0].mxu0 %v2492
    %v2613 = vpop.f32.mrb[0].mxu0
    %v2614 = vadd.f32 0.0, %v2613
    %v2615 = vpop.f32.mrb[0].mxu0
    %v2616 = vpop.f32.mrb[0].mxu0
    %v2617 = vadd.f32 0.0, %v2616
    %v2618 = vpop.f32.mrb[0].mxu0
    %2619 = vmatprep.mubr.bf16.mxu0 0
    %2620 = vmatmul.mubr.bf16.gmra.mrb[0].mxu0 %v2495
    %v2621 = vpop.f32.mrb[0].mxu0
    %v2622 = vadd.f32 0.0, %v2621
    %v2623 = vpop.f32.mrb[0].mxu0
    %v2624 = vpop.f32.mrb[0].mxu0
    %v2625 = vadd.f32 0.0, %v2624
    %v2626 = vpop.f32.mrb[0].mxu0
    %2627 = vmatprep.mubr.bf16.mxu0 0
    %2628 = vmatmul.mubr.bf16.gmra.mrb[0].mxu0 %v2498
    %v2629 = vpop.f32.mrb[0].mxu0
    %v2630 = vadd.f32 0.0, %v2629
    %v2631 = vpop.f32.mrb[0].mxu0
    %v2632 = vpop.f32.mrb[0].mxu0
    %v2633 = vadd.f32 0.0, %v2632
    %v2634 = vpop.f32.mrb[0].mxu0
    %2635 = vmatprep.mubr.bf16.mxu0 0
    %2636 = vmatmul.mubr.bf16.gmra.mrb[0].mxu0 %v2501
    %v2637 = vpop.f32.mrb[0].mxu0
    %v2638 = vadd.f32 0.0, %v2637
    %v2639 = vpop.f32.mrb[0].mxu0
    %v2640 = vpop.f32.mrb[0].mxu0
    %v2641 = vadd.f32 0.0, %v2640
    %v2642 = vpop.f32.mrb[0].mxu0
    %2643 = vmatprep.mubr.bf16.mxu0 0
    %2644 = vmatmul.mubr.bf16.gmra.mrb[0].mxu0 %v2504
    %v2645 = vpop.f32.mrb[0].mxu0
    %v2646 = vadd.f32 0.0, %v2645
    %v2647 = vpop.f32.mrb[0].mxu0
    %v2648 = vpop.f32.mrb[0].mxu0
    %v2649 = vadd.f32 0.0, %v2648
    %v2650 = vpop.f32.mrb[0].mxu0
    %2651 = vmatprep.mubr.bf16.mxu0 0
    %2652 = vmatmul.mubr.bf16.gmra.mrb[0].mxu0 %v2507
    %v2653 = vpop.f32.mrb[0].mxu0
    %v2654 = vadd.f32 0.0, %v2653
    %v2655 = vpop.f32.mrb[0].mxu0
    %v2656 = vpop.f32.mrb[0].mxu0
    %v2657 = vadd.f32 0.0, %v2656
    %v2658 = vpop.f32.mrb[0].mxu0
    %2659 = vmatprep.mubr.bf16.mxu0 0
    %2660 = vmatmul.mubr.bf16.gmra.mrb[0].mxu0 %v2510
    %v2661 = vpop.f32.mrb[0].mxu0
    %v2662 = vadd.f32 0.0, %v2661
    %v2663 = vpop.f32.mrb[0].mxu0
    %v2664 = vpop.f32.mrb[0].mxu0
    %v2665 = vadd.f32 0.0, %v2664
    %v2666 = vpop.f32.mrb[0].mxu0
    %2667 = vmatprep.mubr.bf16.mxu0 0
    %2668 = vmatmul.mubr.bf16.gmra.mrb[0].mxu0 %v2513
    %v2669 = vpop.f32.mrb[0].mxu0
    %v2670 = vadd.f32 0.0, %v2669
    %v2671 = vpop.f32.mrb[0].mxu0
    %v2672 = vpop.f32.mrb[0].mxu0
    %v2673 = vadd.f32 0.0, %v2672
    %v2674 = vpop.f32.mrb[0].mxu0
    %2675 = vdwg.mxu0
    %v2676 = vmax.f32 %v2550, 0.0
    %v2677 = vmax.f32 %v2553, 0.0
    %v2678 = vmax.f32 %v2558, 0.0
    %v2679 = vmax.f32 %v2561, 0.0
    %v2680 = vmax.f32 %v2566, 0.0
    %v2681 = vmax.f32 %v2569, 0.0
    %v2682 = vmax.f32 %v2574, 0.0
    %v2683 = vmax.f32 %v2577, 0.0
    %v2684 = vmax.f32 %v2582, 0.0
    %v2685 = vmax.f32 %v2585, 0.0
    %v2686 = vmax.f32 %v2590, 0.0
    %v2687 = vmax.f32 %v2593, 0.0
    %v2688 = vmax.f32 %v2598, 0.0
    %v2689 = vmax.f32 %v2601, 0.0
    %v2690 = vmax.f32 %v2606, 0.0
    %v2691 = vmax.f32 %v2609, 0.0
    %v2692 = vmax.f32 %v2614, 0.0
    %v2693 = vmax.f32 %v2617, 0.0
    %v2694 = vmax.f32 %v2622, 0.0
    %v2695 = vmax.f32 %v2625, 0.0
    %v2696 = vmax.f32 %v2630, 0.0
    %v2697 = vmax.f32 %v2633, 0.0
    %v2698 = vmax.f32 %v2638, 0.0
    %v2699 = vmax.f32 %v2641, 0.0
    %v2700 = vmax.f32 %v2646, 0.0
    %v2701 = vmax.f32 %v2649, 0.0
    %v2702 = vmax.f32 %v2654, 0.0
    %v2703 = vmax.f32 %v2657, 0.0
    %v2704 = vmax.f32 %v2662, 0.0
    %v2705 = vmax.f32 %v2665, 0.0
    %v2706 = vmax.f32 %v2670, 0.0
    %v2707 = vmax.f32 %v2673, 0.0
    %v2708 = vpack.c.bf16 %v2677, %v2676
    %v2709 = vpack.c.bf16 %v2679, %v2678
    %v2710 = vpack.c.bf16 %v2681, %v2680
    %v2711 = vpack.c.bf16 %v2683, %v2682
    %v2712 = vpack.c.bf16 %v2685, %v2684
    %v2713 = vpack.c.bf16 %v2687, %v2686
    %v2714 = vpack.c.bf16 %v2689, %v2688
    %v2715 = vpack.c.bf16 %v2691, %v2690
    %v2716 = vpack.c.bf16 %v2693, %v2692
    %v2717 = vpack.c.bf16 %v2695, %v2694
    %v2718 = vpack.c.bf16 %v2697, %v2696
    %v2719 = vpack.c.bf16 %v2699, %v2698
    %v2720 = vpack.c.bf16 %v2701, %v2700
    %v2721 = vpack.c.bf16 %v2703, %v2702
    %v2722 = vpack.c.bf16 %v2705, %v2704
    %v2723 = vpack.c.bf16 %v2707, %v2706
    %v2724 = vld [vmem:[%s4 + $0x18] sm:$0xff]
    %v2725 = vld [vmem:[%s4 + $0x58] sm:$0xff]
    %v2726 = vld [vmem:[%s4 + $0x98] sm:$0xff]
    %v2727 = vld [vmem:[%s4 + $0xd8] sm:$0xff]
    %v2732 = vunpack.c.l.b16 %v2724
    %v2733 = vunpack.c.h.b16 %v2724
    %v2734 = vunpack.c.l.b16 %v2725
    %v2735 = vunpack.c.h.b16 %v2725
    %v2736 = vunpack.c.l.b16 %v2726
    %v2737 = vunpack.c.h.b16 %v2726
    %v2738 = vunpack.c.l.b16 %v2727
    %v2739 = vunpack.c.h.b16 %v2727
    %v2740 = vpack.c.b16 %v2734, %v2732
    %v2741 = vpack.c.b16 %v2735, %v2733
    %v2742 = vpack.c.b16 %v2738, %v2736
    %v2743 = vpack.c.b16 %v2739, %v2737
    %2748 = vmatprep.subr.bf16.mxu0 0
    %2749 = vmatpush1.bf16.msra.mxu0 %v2708
    %2750 = vmatprep.subr.bf16.mxu0 0
    %2751 = vmatpush1.bf16.msra.mxu0 %v2709
    %2752 = vmatprep.subr.bf16.mxu0 0
    %2753 = vmatpush1.bf16.msra.mxu0 %v2710
    %2754 = vmatprep.subr.bf16.mxu0 0
    %2755 = vmatpush1.bf16.msra.mxu0 %v2711
    %2756 = vmatprep.subr.bf16.mxu0 0
    %2757 = vmatpush1.bf16.msra.mxu0 %v2712
    %2758 = vmatprep.subr.bf16.mxu0 0
    %2759 = vmatpush1.bf16.msra.mxu0 %v2713
    %2760 = vmatprep.subr.bf16.mxu0 0
    %2761 = vmatpush1.bf16.msra.mxu0 %v2714
    %2762 = vmatprep.subr.bf16.mxu0 0
    %2763 = vmatpush1.bf16.msra.mxu0 %v2715
    %2764 = vmatprep.subr.bf16.mxu0 0
    %2765 = vmatpush1.bf16.msra.mxu0 %v2716
    %2766 = vmatprep.subr.bf16.mxu0 0
    %2767 = vmatpush1.bf16.msra.mxu0 %v2717
    %2768 = vmatprep.subr.bf16.mxu0 0
    %2769 = vmatpush1.bf16.msra.mxu0 %v2718
    %2770 = vmatprep.subr.bf16.mxu0 0
    %2771 = vmatpush1.bf16.msra.mxu0 %v2719
    %2772 = vmatprep.subr.bf16.mxu0 0
    %2773 = vmatpush1.bf16.msra.mxu0 %v2720
    %2774 = vmatprep.subr.bf16.mxu0 0
    %2775 = vmatpush1.bf16.msra.mxu0 %v2721
    %2776 = vmatprep.subr.bf16.mxu0 0
    %2777 = vmatpush1.bf16.msra.mxu0 %v2722
    %2778 = vmatprep.subr.bf16.mxu0 0
    %2779 = vmatpush1.bf16.msra.mxu0 %v2723
    %2780 = vmatprep.mubr.bf16.mxu0 %v2741
    %2781 = vmatmul.mubr.bf16.gmra.mrb[0].mxu0 %v2740
    %v2782 = vpop.f32.mrb[0].mxu0
    %v2783 = vadd.f32 0.0, %v2782
    %v2784 = vpop.f32.mrb[0].mxu0
    %v2785 = vpop.f32.mrb[0].mxu0
    %v2786 = vadd.f32 0.0, %v2785
    %v2787 = vpop.f32.mrb[0].mxu0
    %2788 = vmatprep.mubr.bf16.mxu0 %v2743
    %2789 = vmatmul.mubr.bf16.gmra.mrb[0].mxu0 %v2742
    %v2790 = vpop.f32.mrb[0].mxu0
    %v2791 = vadd.f32 0.0, %v2790
    %v2792 = vpop.f32.mrb[0].mxu0
    %v2793 = vpop.f32.mrb[0].mxu0
    %v2794 = vadd.f32 0.0, %v2793
    %v2795 = vpop.f32.mrb[0].mxu0
    %2796 = vdwg.mxu0
    %v2797 = vadd.f32 %v2351, %v2783
    %v2798 = vadd.f32 %v2352, %v2786
    %v2799 = vadd.f32 %v2353, %v2791
    %v2800 = vadd.f32 %v2354, %v2794
    %v2801 = vld [vmem:[%s3 + $0x200] sm:$0xf]
    %v2802 = vld [vmem:[%s3 + $0x204] sm:$0xf]
    %v2803 = vld [vmem:[%s3 + $0x208] sm:$0xf]
    %v2804 = vld [vmem:[%s3 + $0x20c] sm:$0xf]
    %v2805 = vld [vmem:[%s3 + $0x210] sm:$0xf]
    %v2806 = vld [vmem:[%s3 + $0x214] sm:$0xf]
    %v2807 = vld [vmem:[%s3 + $0x218] sm:$0xf]
    %v2808 = vld [vmem:[%s3 + $0x21c] sm:$0xf]
    %v2809 = vld [vmem:[%s3 + $0x220] sm:$0xf]
    %v2810 = vld [vmem:[%s3 + $0x224] sm:$0xf]
    %v2811 = vld [vmem:[%s3 + $0x228] sm:$0xf]
    %v2812 = vld [vmem:[%s3 + $0x22c] sm:$0xf]
    %v2813 = vld [vmem:[%s3 + $0x230] sm:$0xf]
    %v2814 = vld [vmem:[%s3 + $0x234] sm:$0xf]
    %v2815 = vld [vmem:[%s3 + $0x238] sm:$0xf]
    %v2816 = vld [vmem:[%s3 + $0x23c] sm:$0xf]
    %v2817 = vld [vmem:[%s3 + $0x240] sm:$0xf]
    %v2818 = vld [vmem:[%s3 + $0x244] sm:$0xf]
    %v2819 = vld [vmem:[%s3 + $0x248] sm:$0xf]
    %v2820 = vld [vmem:[%s3 + $0x24c] sm:$0xf]
    %v2821 = vld [vmem:[%s3 + $0x250] sm:$0xf]
    %v2822 = vld [vmem:[%s3 + $0x254] sm:$0xf]
    %v2823 = vld [vmem:[%s3 + $0x258] sm:$0xf]
    %v2824 = vld [vmem:[%s3 + $0x25c] sm:$0xf]
    %v2825 = vld [vmem:[%s3 + $0x260] sm:$0xf]
    %v2826 = vld [vmem:[%s3 + $0x264] sm:$0xf]
    %v2827 = vld [vmem:[%s3 + $0x268] sm:$0xf]
    %v2828 = vld [vmem:[%s3 + $0x26c] sm:$0xf]
    %v2829 = vld [vmem:[%s3 + $0x270] sm:$0xf]
    %v2830 = vld [vmem:[%s3 + $0x274] sm:$0xf]
    %v2831 = vld [vmem:[%s3 + $0x278] sm:$0xf]
    %v2832 = vld [vmem:[%s3 + $0x27c] sm:$0xf]
    %v2865 = vunpack.c.l.b16 %v2801
    %v2866 = vunpack.c.l.b16 %v2802
    %v2867 = vunpack.c.l.b16 %v2803
    %v2868 = vunpack.c.l.b16 %v2804
    %v2869 = vunpack.c.l.b16 %v2805
    %v2870 = vunpack.c.l.b16 %v2806
    %v2871 = vunpack.c.l.b16 %v2807
    %v2872 = vunpack.c.l.b16 %v2808
    %v2873 = vunpack.c.l.b16 %v2809
    %v2874 = vunpack.c.l.b16 %v2810
    %v2875 = vunpack.c.l.b16 %v2811
    %v2876 = vunpack.c.l.b16 %v2812
    %v2877 = vunpack.c.l.b16 %v2813
    %v2878 = vunpack.c.l.b16 %v2814
    %v2879 = vunpack.c.l.b16 %v2815
    %v2880 = vunpack.c.l.b16 %v2816
    %v2881 = vunpack.c.l.b16 %v2817
    %v2882 = vunpack.c.l.b16 %v2818
    %v2883 = vunpack.c.l.b16 %v2819
    %v2884 = vunpack.c.l.b16 %v2820
    %v2885 = vunpack.c.l.b16 %v2821
    %v2886 = vunpack.c.l.b16 %v2822
    %v2887 = vunpack.c.l.b16 %v2823
    %v2888 = vunpack.c.l.b16 %v2824
    %v2889 = vunpack.c.l.b16 %v2825
    %v2890 = vunpack.c.l.b16 %v2826
    %v2891 = vunpack.c.l.b16 %v2827
    %v2892 = vunpack.c.l.b16 %v2828
    %v2893 = vunpack.c.l.b16 %v2829
    %v2894 = vunpack.c.l.b16 %v2830
    %v2895 = vunpack.c.l.b16 %v2831
    %v2896 = vunpack.c.l.b16 %v2832
    %v2897 = vpack.c.b16 %v2866, %v2865
    %v2898 = vpack.c.b16 %v2868, %v2867
    %v2899 = vpack.c.b16 %v2870, %v2869
    %v2900 = vpack.c.b16 %v2872, %v2871
    %v2901 = vpack.c.b16 %v2874, %v2873
    %v2902 = vpack.c.b16 %v2876, %v2875
    %v2903 = vpack.c.b16 %v2878, %v2877
    %v2904 = vpack.c.b16 %v2880, %v2879
    %v2905 = vpack.c.b16 %v2882, %v2881
    %v2906 = vpack.c.b16 %v2884, %v2883
    %v2907 = vpack.c.b16 %v2886, %v2885
    %v2908 = vpack.c.b16 %v2888, %v2887
    %v2909 = vpack.c.b16 %v2890, %v2889
    %v2910 = vpack.c.b16 %v2892, %v2891
    %v2911 = vpack.c.b16 %v2894, %v2893
    %v2912 = vpack.c.b16 %v2896, %v2895
    %v2914 = vsel %vm1132, %v2897, 0
    %v2917 = vsel %vm1132, %v2898, 0
    %v2920 = vsel %vm1132, %v2899, 0
    %v2923 = vsel %vm1132, %v2900, 0
    %v2926 = vsel %vm1132, %v2901, 0
    %v2929 = vsel %vm1132, %v2902, 0
    %v2932 = vsel %vm1132, %v2903, 0
    %v2935 = vsel %vm1132, %v2904, 0
    %v2938 = vsel %vm1132, %v2905, 0
    %v2941 = vsel %vm1132, %v2906, 0
    %v2944 = vsel %vm1132, %v2907, 0
    %v2947 = vsel %vm1132, %v2908, 0
    %v2950 = vsel %vm1132, %v2909, 0
    %v2953 = vsel %vm1132, %v2910, 0
    %v2956 = vsel %vm1132, %v2911, 0
    %v2959 = vsel %vm1132, %v2912, 0
    %2961 = vmatprep.subr.bf16.mxu0 0
    %2962 = vmatpush1.bf16.msra.mxu0 %v1017
    %2963 = vmatprep.subr.bf16.mxu0 0
    %2964 = vmatpush1.bf16.msra.mxu0 %v1018
    %2965 = vmatprep.subr.bf16.mxu0 0
    %2966 = vmatpush1.bf16.msra.mxu0 %v1183
    %2967 = vmatprep.subr.bf16.mxu0 0
    %2968 = vmatpush1.bf16.msra.mxu0 0
    %2969 = vmatprep.subr.bf16.mxu0 0
    %2970 = vmatpush1.bf16.msra.mxu0 0
    %2971 = vmatprep.subr.bf16.mxu0 0
    %2972 = vmatpush1.bf16.msra.mxu0 0
    %2973 = vmatprep.subr.bf16.mxu0 0
    %2974 = vmatpush1.bf16.msra.mxu0 0
    %2975 = vmatprep.subr.bf16.mxu0 0
    %2976 = vmatpush1.bf16.msra.mxu0 0
    %2977 = vmatprep.subr.bf16.mxu0 0
    %2978 = vmatpush1.bf16.msra.mxu0 0
    %2979 = vmatprep.subr.bf16.mxu0 0
    %2980 = vmatpush1.bf16.msra.mxu0 0
    %2981 = vmatprep.subr.bf16.mxu0 0
    %2982 = vmatpush1.bf16.msra.mxu0 0
    %2983 = vmatprep.subr.bf16.mxu0 0
    %2984 = vmatpush1.bf16.msra.mxu0 0
    %2985 = vmatprep.subr.bf16.mxu0 0
    %2986 = vmatpush1.bf16.msra.mxu0 0
    %2987 = vmatprep.subr.bf16.mxu0 0
    %2988 = vmatpush1.bf16.msra.mxu0 0
    %2989 = vmatprep.subr.bf16.mxu0 0
    %2990 = vmatpush1.bf16.msra.mxu0 0
    %2991 = vmatprep.subr.bf16.mxu0 0
    %2992 = vmatpush1.bf16.msra.mxu0 0
    %2993 = vmatprep.mubr.bf16.mxu0 0
    %2994 = vmatmul.mubr.bf16.gmra.mrb[0].mxu0 %v2914
    %v2995 = vpop.f32.mrb[0].mxu0
    %v2996 = vadd.f32 0.0, %v2995
    %v2997 = vpop.f32.mrb[0].mxu0
    %v2998 = vpop.f32.mrb[0].mxu0
    %v2999 = vadd.f32 0.0, %v2998
    %v3000 = vpop.f32.mrb[0].mxu0
    %3001 = vmatprep.mubr.bf16.mxu0 0
    %3002 = vmatmul.mubr.bf16.gmra.mrb[0].mxu0 %v2917
    %v3003 = vpop.f32.mrb[0].mxu0
    %v3004 = vadd.f32 0.0, %v3003
    %v3005 = vpop.f32.mrb[0].mxu0
    %v3006 = vpop.f32.mrb[0].mxu0
    %v3007 = vadd.f32 0.0, %v3006
    %v3008 = vpop.f32.mrb[0].mxu0
    %3009 = vmatprep.mubr.bf16.mxu0 0
    %3010 = vmatmul.mubr.bf16.gmra.mrb[0].mxu0 %v2920
    %v3011 = vpop.f32.mrb[0].mxu0
    %v3012 = vadd.f32 0.0, %v3011
    %v3013 = vpop.f32.mrb[0].mxu0
    %v3014 = vpop.f32.mrb[0].mxu0
    %v3015 = vadd.f32 0.0, %v3014
    %v3016 = vpop.f32.mrb[0].mxu0
    %3017 = vmatprep.mubr.bf16.mxu0 0
    %3018 = vmatmul.mubr.bf16.gmra.mrb[0].mxu0 %v2923
    %v3019 = vpop.f32.mrb[0].mxu0
    %v3020 = vadd.f32 0.0, %v3019
    %v3021 = vpop.f32.mrb[0].mxu0
    %v3022 = vpop.f32.mrb[0].mxu0
    %v3023 = vadd.f32 0.0, %v3022
    %v3024 = vpop.f32.mrb[0].mxu0
    %3025 = vmatprep.mubr.bf16.mxu0 0
    %3026 = vmatmul.mubr.bf16.gmra.mrb[0].mxu0 %v2926
    %v3027 = vpop.f32.mrb[0].mxu0
    %v3028 = vadd.f32 0.0, %v3027
    %v3029 = vpop.f32.mrb[0].mxu0
    %v3030 = vpop.f32.mrb[0].mxu0
    %v3031 = vadd.f32 0.0, %v3030
    %v3032 = vpop.f32.mrb[0].mxu0
    %3033 = vmatprep.mubr.bf16.mxu0 0
    %3034 = vmatmul.mubr.bf16.gmra.mrb[0].mxu0 %v2929
    %v3035 = vpop.f32.mrb[0].mxu0
    %v3036 = vadd.f32 0.0, %v3035
    %v3037 = vpop.f32.mrb[0].mxu0
    %v3038 = vpop.f32.mrb[0].mxu0
    %v3039 = vadd.f32 0.0, %v3038
    %v3040 = vpop.f32.mrb[0].mxu0
    %3041 = vmatprep.mubr.bf16.mxu0 0
    %3042 = vmatmul.mubr.bf16.gmra.mrb[0].mxu0 %v2932
    %v3043 = vpop.f32.mrb[0].mxu0
    %v3044 = vadd.f32 0.0, %v3043
    %v3045 = vpop.f32.mrb[0].mxu0
    %v3046 = vpop.f32.mrb[0].mxu0
    %v3047 = vadd.f32 0.0, %v3046
    %v3048 = vpop.f32.mrb[0].mxu0
    %3049 = vmatprep.mubr.bf16.mxu0 0
    %3050 = vmatmul.mubr.bf16.gmra.mrb[0].mxu0 %v2935
    %v3051 = vpop.f32.mrb[0].mxu0
    %v3052 = vadd.f32 0.0, %v3051
    %v3053 = vpop.f32.mrb[0].mxu0
    %v3054 = vpop.f32.mrb[0].mxu0
    %v3055 = vadd.f32 0.0, %v3054
    %v3056 = vpop.f32.mrb[0].mxu0
    %3057 = vmatprep.mubr.bf16.mxu0 0
    %3058 = vmatmul.mubr.bf16.gmra.mrb[0].mxu0 %v2938
    %v3059 = vpop.f32.mrb[0].mxu0
    %v3060 = vadd.f32 0.0, %v3059
    %v3061 = vpop.f32.mrb[0].mxu0
    %v3062 = vpop.f32.mrb[0].mxu0
    %v3063 = vadd.f32 0.0, %v3062
    %v3064 = vpop.f32.mrb[0].mxu0
    %3065 = vmatprep.mubr.bf16.mxu0 0
    %3066 = vmatmul.mubr.bf16.gmra.mrb[0].mxu0 %v2941
    %v3067 = vpop.f32.mrb[0].mxu0
    %v3068 = vadd.f32 0.0, %v3067
    %v3069 = vpop.f32.mrb[0].mxu0
    %v3070 = vpop.f32.mrb[0].mxu0
    %v3071 = vadd.f32 0.0, %v3070
    %v3072 = vpop.f32.mrb[0].mxu0
    %3073 = vmatprep.mubr.bf16.mxu0 0
    %3074 = vmatmul.mubr.bf16.gmra.mrb[0].mxu0 %v2944
    %v3075 = vpop.f32.mrb[0].mxu0
    %v3076 = vadd.f32 0.0, %v3075
    %v3077 = vpop.f32.mrb[0].mxu0
    %v3078 = vpop.f32.mrb[0].mxu0
    %v3079 = vadd.f32 0.0, %v3078
    %v3080 = vpop.f32.mrb[0].mxu0
    %3081 = vmatprep.mubr.bf16.mxu0 0
    %3082 = vmatmul.mubr.bf16.gmra.mrb[0].mxu0 %v2947
    %v3083 = vpop.f32.mrb[0].mxu0
    %v3084 = vadd.f32 0.0, %v3083
    %v3085 = vpop.f32.mrb[0].mxu0
    %v3086 = vpop.f32.mrb[0].mxu0
    %v3087 = vadd.f32 0.0, %v3086
    %v3088 = vpop.f32.mrb[0].mxu0
    %3089 = vmatprep.mubr.bf16.mxu0 0
    %3090 = vmatmul.mubr.bf16.gmra.mrb[0].mxu0 %v2950
    %v3091 = vpop.f32.mrb[0].mxu0
    %v3092 = vadd.f32 0.0, %v3091
    %v3093 = vpop.f32.mrb[0].mxu0
    %v3094 = vpop.f32.mrb[0].mxu0
    %v3095 = vadd.f32 0.0, %v3094
    %v3096 = vpop.f32.mrb[0].mxu0
    %3097 = vmatprep.mubr.bf16.mxu0 0
    %3098 = vmatmul.mubr.bf16.gmra.mrb[0].mxu0 %v2953
    %v3099 = vpop.f32.mrb[0].mxu0
    %v3100 = vadd.f32 0.0, %v3099
    %v3101 = vpop.f32.mrb[0].mxu0
    %v3102 = vpop.f32.mrb[0].mxu0
    %v3103 = vadd.f32 0.0, %v3102
    %v3104 = vpop.f32.mrb[0].mxu0
    %3105 = vmatprep.mubr.bf16.mxu0 0
    %3106 = vmatmul.mubr.bf16.gmra.mrb[0].mxu0 %v2956
    %v3107 = vpop.f32.mrb[0].mxu0
    %v3108 = vadd.f32 0.0, %v3107
    %v3109 = vpop.f32.mrb[0].mxu0
    %v3110 = vpop.f32.mrb[0].mxu0
    %v3111 = vadd.f32 0.0, %v3110
    %v3112 = vpop.f32.mrb[0].mxu0
    %3113 = vmatprep.mubr.bf16.mxu0 0
    %3114 = vmatmul.mubr.bf16.gmra.mrb[0].mxu0 %v2959
    %v3115 = vpop.f32.mrb[0].mxu0
    %v3116 = vadd.f32 0.0, %v3115
    %v3117 = vpop.f32.mrb[0].mxu0
    %v3118 = vpop.f32.mrb[0].mxu0
    %v3119 = vadd.f32 0.0, %v3118
    %v3120 = vpop.f32.mrb[0].mxu0
    %3121 = vdwg.mxu0
    %v3122 = vmax.f32 %v2996, 0.0
    %v3123 = vmax.f32 %v2999, 0.0
    %v3124 = vmax.f32 %v3004, 0.0
    %v3125 = vmax.f32 %v3007, 0.0
    %v3126 = vmax.f32 %v3012, 0.0
    %v3127 = vmax.f32 %v3015, 0.0
    %v3128 = vmax.f32 %v3020, 0.0
    %v3129 = vmax.f32 %v3023, 0.0
    %v3130 = vmax.f32 %v3028, 0.0
    %v3131 = vmax.f32 %v3031, 0.0
    %v3132 = vmax.f32 %v3036, 0.0
    %v3133 = vmax.f32 %v3039, 0.0
    %v3134 = vmax.f32 %v3044, 0.0
    %v3135 = vmax.f32 %v3047, 0.0
    %v3136 = vmax.f32 %v3052, 0.0
    %v3137 = vmax.f32 %v3055, 0.0
    %v3138 = vmax.f32 %v3060, 0.0
    %v3139 = vmax.f32 %v3063, 0.0
    %v3140 = vmax.f32 %v3068, 0.0
    %v3141 = vmax.f32 %v3071, 0.0
    %v3142 = vmax.f32 %v3076, 0.0
    %v3143 = vmax.f32 %v3079, 0.0
    %v3144 = vmax.f32 %v3084, 0.0
    %v3145 = vmax.f32 %v3087, 0.0
    %v3146 = vmax.f32 %v3092, 0.0
    %v3147 = vmax.f32 %v3095, 0.0
    %v3148 = vmax.f32 %v3100, 0.0
    %v3149 = vmax.f32 %v3103, 0.0
    %v3150 = vmax.f32 %v3108, 0.0
    %v3151 = vmax.f32 %v3111, 0.0
    %v3152 = vmax.f32 %v3116, 0.0
    %v3153 = vmax.f32 %v3119, 0.0
    %v3154 = vpack.c.bf16 %v3123, %v3122
    %v3155 = vpack.c.bf16 %v3125, %v3124
    %v3156 = vpack.c.bf16 %v3127, %v3126
    %v3157 = vpack.c.bf16 %v3129, %v3128
    %v3158 = vpack.c.bf16 %v3131, %v3130
    %v3159 = vpack.c.bf16 %v3133, %v3132
    %v3160 = vpack.c.bf16 %v3135, %v3134
    %v3161 = vpack.c.bf16 %v3137, %v3136
    %v3162 = vpack.c.bf16 %v3139, %v3138
    %v3163 = vpack.c.bf16 %v3141, %v3140
    %v3164 = vpack.c.bf16 %v3143, %v3142
    %v3165 = vpack.c.bf16 %v3145, %v3144
    %v3166 = vpack.c.bf16 %v3147, %v3146
    %v3167 = vpack.c.bf16 %v3149, %v3148
    %v3168 = vpack.c.bf16 %v3151, %v3150
    %v3169 = vpack.c.bf16 %v3153, %v3152
    %v3170 = vld [vmem:[%s4 + $0x20] sm:$0xff]
    %v3171 = vld [vmem:[%s4 + $0x60] sm:$0xff]
    %v3172 = vld [vmem:[%s4 + $0xa0] sm:$0xff]
    %v3173 = vld [vmem:[%s4 + $0xe0] sm:$0xff]
    %v3178 = vunpack.c.l.b16 %v3170
    %v3179 = vunpack.c.h.b16 %v3170
    %v3180 = vunpack.c.l.b16 %v3171
    %v3181 = vunpack.c.h.b16 %v3171
    %v3182 = vunpack.c.l.b16 %v3172
    %v3183 = vunpack.c.h.b16 %v3172
    %v3184 = vunpack.c.l.b16 %v3173
    %v3185 = vunpack.c.h.b16 %v3173
    %v3186 = vpack.c.b16 %v3180, %v3178
    %v3187 = vpack.c.b16 %v3181, %v3179
    %v3188 = vpack.c.b16 %v3184, %v3182
    %v3189 = vpack.c.b16 %v3185, %v3183
    %3194 = vmatprep.subr.bf16.mxu0 0
    %3195 = vmatpush1.bf16.msra.mxu0 %v3154
    %3196 = vmatprep.subr.bf16.mxu0 0
    %3197 = vmatpush1.bf16.msra.mxu0 %v3155
    %3198 = vmatprep.subr.bf16.mxu0 0
    %3199 = vmatpush1.bf16.msra.mxu0 %v3156
    %3200 = vmatprep.subr.bf16.mxu0 0
    %3201 = vmatpush1.bf16.msra.mxu0 %v3157
    %3202 = vmatprep.subr.bf16.mxu0 0
    %3203 = vmatpush1.bf16.msra.mxu0 %v3158
    %3204 = vmatprep.subr.bf16.mxu0 0
    %3205 = vmatpush1.bf16.msra.mxu0 %v3159
    %3206 = vmatprep.subr.bf16.mxu0 0
    %3207 = vmatpush1.bf16.msra.mxu0 %v3160
    %3208 = vmatprep.subr.bf16.mxu0 0
    %3209 = vmatpush1.bf16.msra.mxu0 %v3161
    %3210 = vmatprep.subr.bf16.mxu0 0
    %3211 = vmatpush1.bf16.msra.mxu0 %v3162
    %3212 = vmatprep.subr.bf16.mxu0 0
    %3213 = vmatpush1.bf16.msra.mxu0 %v3163
    %3214 = vmatprep.subr.bf16.mxu0 0
    %3215 = vmatpush1.bf16.msra.mxu0 %v3164
    %3216 = vmatprep.subr.bf16.mxu0 0
    %3217 = vmatpush1.bf16.msra.mxu0 %v3165
    %3218 = vmatprep.subr.bf16.mxu0 0
    %3219 = vmatpush1.bf16.msra.mxu0 %v3166
    %3220 = vmatprep.subr.bf16.mxu0 0
    %3221 = vmatpush1.bf16.msra.mxu0 %v3167
    %3222 = vmatprep.subr.bf16.mxu0 0
    %3223 = vmatpush1.bf16.msra.mxu0 %v3168
    %3224 = vmatprep.subr.bf16.mxu0 0
    %3225 = vmatpush1.bf16.msra.mxu0 %v3169
    %3226 = vmatprep.mubr.bf16.mxu0 %v3187
    %3227 = vmatmul.mubr.bf16.gmra.mrb[0].mxu0 %v3186
    %v3228 = vpop.f32.mrb[0].mxu0
    %v3229 = vadd.f32 0.0, %v3228
    %v3230 = vpop.f32.mrb[0].mxu0
    %v3231 = vpop.f32.mrb[0].mxu0
    %v3232 = vadd.f32 0.0, %v3231
    %v3233 = vpop.f32.mrb[0].mxu0
    %3234 = vmatprep.mubr.bf16.mxu0 %v3189
    %3235 = vmatmul.mubr.bf16.gmra.mrb[0].mxu0 %v3188
    %v3236 = vpop.f32.mrb[0].mxu0
    %v3237 = vadd.f32 0.0, %v3236
    %v3238 = vpop.f32.mrb[0].mxu0
    %v3239 = vpop.f32.mrb[0].mxu0
    %v3240 = vadd.f32 0.0, %v3239
    %v3241 = vpop.f32.mrb[0].mxu0
    %3242 = vdwg.mxu0
    %v3243 = vadd.f32 %v2797, %v3229
    %v3244 = vadd.f32 %v2798, %v3232
    %v3245 = vadd.f32 %v2799, %v3237
    %v3246 = vadd.f32 %v2800, %v3240
    %v3247 = vld [vmem:[%s3 + $0x280] sm:$0xf]
    %v3248 = vld [vmem:[%s3 + $0x284] sm:$0xf]
    %v3249 = vld [vmem:[%s3 + $0x288] sm:$0xf]
    %v3250 = vld [vmem:[%s3 + $0x28c] sm:$0xf]
    %v3251 = vld [vmem:[%s3 + $0x290] sm:$0xf]
    %v3252 = vld [vmem:[%s3 + $0x294] sm:$0xf]
    %v3253 = vld [vmem:[%s3 + $0x298] sm:$0xf]
    %v3254 = vld [vmem:[%s3 + $0x29c] sm:$0xf]
    %v3255 = vld [vmem:[%s3 + $0x2a0] sm:$0xf]
    %v3256 = vld [vmem:[%s3 + $0x2a4] sm:$0xf]
    %v3257 = vld [vmem:[%s3 + $0x2a8] sm:$0xf]
    %v3258 = vld [vmem:[%s3 + $0x2ac] sm:$0xf]
    %v3259 = vld [vmem:[%s3 + $0x2b0] sm:$0xf]
    %v3260 = vld [vmem:[%s3 + $0x2b4] sm:$0xf]
    %v3261 = vld [vmem:[%s3 + $0x2b8] sm:$0xf]
    %v3262 = vld [vmem:[%s3 + $0x2bc] sm:$0xf]
    %v3263 = vld [vmem:[%s3 + $0x2c0] sm:$0xf]
    %v3264 = vld [vmem:[%s3 + $0x2c4] sm:$0xf]
    %v3265 = vld [vmem:[%s3 + $0x2c8] sm:$0xf]
    %v3266 = vld [vmem:[%s3 + $0x2cc] sm:$0xf]
    %v3267 = vld [vmem:[%s3 + $0x2d0] sm:$0xf]
    %v3268 = vld [vmem:[%s3 + $0x2d4] sm:$0xf]
    %v3269 = vld [vmem:[%s3 + $0x2d8] sm:$0xf]
    %v3270 = vld [vmem:[%s3 + $0x2dc] sm:$0xf]
    %v3271 = vld [vmem:[%s3 + $0x2e0] sm:$0xf]
    %v3272 = vld [vmem:[%s3 + $0x2e4] sm:$0xf]
    %v3273 = vld [vmem:[%s3 + $0x2e8] sm:$0xf]
    %v3274 = vld [vmem:[%s3 + $0x2ec] sm:$0xf]
    %v3275 = vld [vmem:[%s3 + $0x2f0] sm:$0xf]
    %v3276 = vld [vmem:[%s3 + $0x2f4] sm:$0xf]
    %v3277 = vld [vmem:[%s3 + $0x2f8] sm:$0xf]
    %v3278 = vld [vmem:[%s3 + $0x2fc] sm:$0xf]
    %v3311 = vunpack.c.l.b16 %v3247
    %v3312 = vunpack.c.l.b16 %v3248
    %v3313 = vunpack.c.l.b16 %v3249
    %v3314 = vunpack.c.l.b16 %v3250
    %v3315 = vunpack.c.l.b16 %v3251
    %v3316 = vunpack.c.l.b16 %v3252
    %v3317 = vunpack.c.l.b16 %v3253
    %v3318 = vunpack.c.l.b16 %v3254
    %v3319 = vunpack.c.l.b16 %v3255
    %v3320 = vunpack.c.l.b16 %v3256
    %v3321 = vunpack.c.l.b16 %v3257
    %v3322 = vunpack.c.l.b16 %v3258
    %v3323 = vunpack.c.l.b16 %v3259
    %v3324 = vunpack.c.l.b16 %v3260
    %v3325 = vunpack.c.l.b16 %v3261
    %v3326 = vunpack.c.l.b16 %v3262
    %v3327 = vunpack.c.l.b16 %v3263
    %v3328 = vunpack.c.l.b16 %v3264
    %v3329 = vunpack.c.l.b16 %v3265
    %v3330 = vunpack.c.l.b16 %v3266
    %v3331 = vunpack.c.l.b16 %v3267
    %v3332 = vunpack.c.l.b16 %v3268
    %v3333 = vunpack.c.l.b16 %v3269
    %v3334 = vunpack.c.l.b16 %v3270
    %v3335 = vunpack.c.l.b16 %v3271
    %v3336 = vunpack.c.l.b16 %v3272
    %v3337 = vunpack.c.l.b16 %v3273
    %v3338 = vunpack.c.l.b16 %v3274
    %v3339 = vunpack.c.l.b16 %v3275
    %v3340 = vunpack.c.l.b16 %v3276
    %v3341 = vunpack.c.l.b16 %v3277
    %v3342 = vunpack.c.l.b16 %v3278
    %v3343 = vpack.c.b16 %v3312, %v3311
    %v3344 = vpack.c.b16 %v3314, %v3313
    %v3345 = vpack.c.b16 %v3316, %v3315
    %v3346 = vpack.c.b16 %v3318, %v3317
    %v3347 = vpack.c.b16 %v3320, %v3319
    %v3348 = vpack.c.b16 %v3322, %v3321
    %v3349 = vpack.c.b16 %v3324, %v3323
    %v3350 = vpack.c.b16 %v3326, %v3325
    %v3351 = vpack.c.b16 %v3328, %v3327
    %v3352 = vpack.c.b16 %v3330, %v3329
    %v3353 = vpack.c.b16 %v3332, %v3331
    %v3354 = vpack.c.b16 %v3334, %v3333
    %v3355 = vpack.c.b16 %v3336, %v3335
    %v3356 = vpack.c.b16 %v3338, %v3337
    %v3357 = vpack.c.b16 %v3340, %v3339
    %v3358 = vpack.c.b16 %v3342, %v3341
    %v3360 = vsel %vm1132, %v3343, 0
    %v3363 = vsel %vm1132, %v3344, 0
    %v3366 = vsel %vm1132, %v3345, 0
    %v3369 = vsel %vm1132, %v3346, 0
    %v3372 = vsel %vm1132, %v3347, 0
    %v3375 = vsel %vm1132, %v3348, 0
    %v3378 = vsel %vm1132, %v3349, 0
    %v3381 = vsel %vm1132, %v3350, 0
    %v3384 = vsel %vm1132, %v3351, 0
    %v3387 = vsel %vm1132, %v3352, 0
    %v3390 = vsel %vm1132, %v3353, 0
    %v3393 = vsel %vm1132, %v3354, 0
    %v3396 = vsel %vm1132, %v3355, 0
    %v3399 = vsel %vm1132, %v3356, 0
    %v3402 = vsel %vm1132, %v3357, 0
    %v3405 = vsel %vm1132, %v3358, 0
    %3407 = vmatprep.subr.bf16.mxu0 0
    %3408 = vmatpush1.bf16.msra.mxu0 %v1017
    %3409 = vmatprep.subr.bf16.mxu0 0
    %3410 = vmatpush1.bf16.msra.mxu0 %v1018
    %3411 = vmatprep.subr.bf16.mxu0 0
    %3412 = vmatpush1.bf16.msra.mxu0 %v1183
    %3413 = vmatprep.subr.bf16.mxu0 0
    %3414 = vmatpush1.bf16.msra.mxu0 0
    %3415 = vmatprep.subr.bf16.mxu0 0
    %3416 = vmatpush1.bf16.msra.mxu0 0
    %3417 = vmatprep.subr.bf16.mxu0 0
    %3418 = vmatpush1.bf16.msra.mxu0 0
    %3419 = vmatprep.subr.bf16.mxu0 0
    %3420 = vmatpush1.bf16.msra.mxu0 0
    %3421 = vmatprep.subr.bf16.mxu0 0
    %3422 = vmatpush1.bf16.msra.mxu0 0
    %3423 = vmatprep.subr.bf16.mxu0 0
    %3424 = vmatpush1.bf16.msra.mxu0 0
    %3425 = vmatprep.subr.bf16.mxu0 0
    %3426 = vmatpush1.bf16.msra.mxu0 0
    %3427 = vmatprep.subr.bf16.mxu0 0
    %3428 = vmatpush1.bf16.msra.mxu0 0
    %3429 = vmatprep.subr.bf16.mxu0 0
    %3430 = vmatpush1.bf16.msra.mxu0 0
    %3431 = vmatprep.subr.bf16.mxu0 0
    %3432 = vmatpush1.bf16.msra.mxu0 0
    %3433 = vmatprep.subr.bf16.mxu0 0
    %3434 = vmatpush1.bf16.msra.mxu0 0
    %3435 = vmatprep.subr.bf16.mxu0 0
    %3436 = vmatpush1.bf16.msra.mxu0 0
    %3437 = vmatprep.subr.bf16.mxu0 0
    %3438 = vmatpush1.bf16.msra.mxu0 0
    %3439 = vmatprep.mubr.bf16.mxu0 0
    %3440 = vmatmul.mubr.bf16.gmra.mrb[0].mxu0 %v3360
    %v3441 = vpop.f32.mrb[0].mxu0
    %v3442 = vadd.f32 0.0, %v3441
    %v3443 = vpop.f32.mrb[0].mxu0
    %v3444 = vpop.f32.mrb[0].mxu0
    %v3445 = vadd.f32 0.0, %v3444
    %v3446 = vpop.f32.mrb[0].mxu0
    %3447 = vmatprep.mubr.bf16.mxu0 0
    %3448 = vmatmul.mubr.bf16.gmra.mrb[0].mxu0 %v3363
    %v3449 = vpop.f32.mrb[0].mxu0
    %v3450 = vadd.f32 0.0, %v3449
    %v3451 = vpop.f32.mrb[0].mxu0
    %v3452 = vpop.f32.mrb[0].mxu0
    %v3453 = vadd.f32 0.0, %v3452
    %v3454 = vpop.f32.mrb[0].mxu0
    %3455 = vmatprep.mubr.bf16.mxu0 0
    %3456 = vmatmul.mubr.bf16.gmra.mrb[0].mxu0 %v3366
    %v3457 = vpop.f32.mrb[0].mxu0
    %v3458 = vadd.f32 0.0, %v3457
    %v3459 = vpop.f32.mrb[0].mxu0
    %v3460 = vpop.f32.mrb[0].mxu0
    %v3461 = vadd.f32 0.0, %v3460
    %v3462 = vpop.f32.mrb[0].mxu0
    %3463 = vmatprep.mubr.bf16.mxu0 0
    %3464 = vmatmul.mubr.bf16.gmra.mrb[0].mxu0 %v3369
    %v3465 = vpop.f32.mrb[0].mxu0
    %v3466 = vadd.f32 0.0, %v3465
    %v3467 = vpop.f32.mrb[0].mxu0
    %v3468 = vpop.f32.mrb[0].mxu0
    %v3469 = vadd.f32 0.0, %v3468
    %v3470 = vpop.f32.mrb[0].mxu0
    %3471 = vmatprep.mubr.bf16.mxu0 0
    %3472 = vmatmul.mubr.bf16.gmra.mrb[0].mxu0 %v3372
    %v3473 = vpop.f32.mrb[0].mxu0
    %v3474 = vadd.f32 0.0, %v3473
    %v3475 = vpop.f32.mrb[0].mxu0
    %v3476 = vpop.f32.mrb[0].mxu0
    %v3477 = vadd.f32 0.0, %v3476
    %v3478 = vpop.f32.mrb[0].mxu0
    %3479 = vmatprep.mubr.bf16.mxu0 0
    %3480 = vmatmul.mubr.bf16.gmra.mrb[0].mxu0 %v3375
    %v3481 = vpop.f32.mrb[0].mxu0
    %v3482 = vadd.f32 0.0, %v3481
    %v3483 = vpop.f32.mrb[0].mxu0
    %v3484 = vpop.f32.mrb[0].mxu0
    %v3485 = vadd.f32 0.0, %v3484
    %v3486 = vpop.f32.mrb[0].mxu0
    %3487 = vmatprep.mubr.bf16.mxu0 0
    %3488 = vmatmul.mubr.bf16.gmra.mrb[0].mxu0 %v3378
    %v3489 = vpop.f32.mrb[0].mxu0
    %v3490 = vadd.f32 0.0, %v3489
    %v3491 = vpop.f32.mrb[0].mxu0
    %v3492 = vpop.f32.mrb[0].mxu0
    %v3493 = vadd.f32 0.0, %v3492
    %v3494 = vpop.f32.mrb[0].mxu0
    %3495 = vmatprep.mubr.bf16.mxu0 0
    %3496 = vmatmul.mubr.bf16.gmra.mrb[0].mxu0 %v3381
    %v3497 = vpop.f32.mrb[0].mxu0
    %v3498 = vadd.f32 0.0, %v3497
    %v3499 = vpop.f32.mrb[0].mxu0
    %v3500 = vpop.f32.mrb[0].mxu0
    %v3501 = vadd.f32 0.0, %v3500
    %v3502 = vpop.f32.mrb[0].mxu0
    %3503 = vmatprep.mubr.bf16.mxu0 0
    %3504 = vmatmul.mubr.bf16.gmra.mrb[0].mxu0 %v3384
    %v3505 = vpop.f32.mrb[0].mxu0
    %v3506 = vadd.f32 0.0, %v3505
    %v3507 = vpop.f32.mrb[0].mxu0
    %v3508 = vpop.f32.mrb[0].mxu0
    %v3509 = vadd.f32 0.0, %v3508
    %v3510 = vpop.f32.mrb[0].mxu0
    %3511 = vmatprep.mubr.bf16.mxu0 0
    %3512 = vmatmul.mubr.bf16.gmra.mrb[0].mxu0 %v3387
    %v3513 = vpop.f32.mrb[0].mxu0
    %v3514 = vadd.f32 0.0, %v3513
    %v3515 = vpop.f32.mrb[0].mxu0
    %v3516 = vpop.f32.mrb[0].mxu0
    %v3517 = vadd.f32 0.0, %v3516
    %v3518 = vpop.f32.mrb[0].mxu0
    %3519 = vmatprep.mubr.bf16.mxu0 0
    %3520 = vmatmul.mubr.bf16.gmra.mrb[0].mxu0 %v3390
    %v3521 = vpop.f32.mrb[0].mxu0
    %v3522 = vadd.f32 0.0, %v3521
    %v3523 = vpop.f32.mrb[0].mxu0
    %v3524 = vpop.f32.mrb[0].mxu0
    %v3525 = vadd.f32 0.0, %v3524
    %v3526 = vpop.f32.mrb[0].mxu0
    %3527 = vmatprep.mubr.bf16.mxu0 0
    %3528 = vmatmul.mubr.bf16.gmra.mrb[0].mxu0 %v3393
    %v3529 = vpop.f32.mrb[0].mxu0
    %v3530 = vadd.f32 0.0, %v3529
    %v3531 = vpop.f32.mrb[0].mxu0
    %v3532 = vpop.f32.mrb[0].mxu0
    %v3533 = vadd.f32 0.0, %v3532
    %v3534 = vpop.f32.mrb[0].mxu0
    %3535 = vmatprep.mubr.bf16.mxu0 0
    %3536 = vmatmul.mubr.bf16.gmra.mrb[0].mxu0 %v3396
    %v3537 = vpop.f32.mrb[0].mxu0
    %v3538 = vadd.f32 0.0, %v3537
    %v3539 = vpop.f32.mrb[0].mxu0
    %v3540 = vpop.f32.mrb[0].mxu0
    %v3541 = vadd.f32 0.0, %v3540
    %v3542 = vpop.f32.mrb[0].mxu0
    %3543 = vmatprep.mubr.bf16.mxu0 0
    %3544 = vmatmul.mubr.bf16.gmra.mrb[0].mxu0 %v3399
    %v3545 = vpop.f32.mrb[0].mxu0
    %v3546 = vadd.f32 0.0, %v3545
    %v3547 = vpop.f32.mrb[0].mxu0
    %v3548 = vpop.f32.mrb[0].mxu0
    %v3549 = vadd.f32 0.0, %v3548
    %v3550 = vpop.f32.mrb[0].mxu0
    %3551 = vmatprep.mubr.bf16.mxu0 0
    %3552 = vmatmul.mubr.bf16.gmra.mrb[0].mxu0 %v3402
    %v3553 = vpop.f32.mrb[0].mxu0
    %v3554 = vadd.f32 0.0, %v3553
    %v3555 = vpop.f32.mrb[0].mxu0
    %v3556 = vpop.f32.mrb[0].mxu0
    %v3557 = vadd.f32 0.0, %v3556
    %v3558 = vpop.f32.mrb[0].mxu0
    %3559 = vmatprep.mubr.bf16.mxu0 0
    %3560 = vmatmul.mubr.bf16.gmra.mrb[0].mxu0 %v3405
    %v3561 = vpop.f32.mrb[0].mxu0
    %v3562 = vadd.f32 0.0, %v3561
    %v3563 = vpop.f32.mrb[0].mxu0
    %v3564 = vpop.f32.mrb[0].mxu0
    %v3565 = vadd.f32 0.0, %v3564
    %v3566 = vpop.f32.mrb[0].mxu0
    %3567 = vdwg.mxu0
    %v3568 = vmax.f32 %v3442, 0.0
    %v3569 = vmax.f32 %v3445, 0.0
    %v3570 = vmax.f32 %v3450, 0.0
    %v3571 = vmax.f32 %v3453, 0.0
    %v3572 = vmax.f32 %v3458, 0.0
    %v3573 = vmax.f32 %v3461, 0.0
    %v3574 = vmax.f32 %v3466, 0.0
    %v3575 = vmax.f32 %v3469, 0.0
    %v3576 = vmax.f32 %v3474, 0.0
    %v3577 = vmax.f32 %v3477, 0.0
    %v3578 = vmax.f32 %v3482, 0.0
    %v3579 = vmax.f32 %v3485, 0.0
    %v3580 = vmax.f32 %v3490, 0.0
    %v3581 = vmax.f32 %v3493, 0.0
    %v3582 = vmax.f32 %v3498, 0.0
    %v3583 = vmax.f32 %v3501, 0.0
    %v3584 = vmax.f32 %v3506, 0.0
    %v3585 = vmax.f32 %v3509, 0.0
    %v3586 = vmax.f32 %v3514, 0.0
    %v3587 = vmax.f32 %v3517, 0.0
    %v3588 = vmax.f32 %v3522, 0.0
    %v3589 = vmax.f32 %v3525, 0.0
    %v3590 = vmax.f32 %v3530, 0.0
    %v3591 = vmax.f32 %v3533, 0.0
    %v3592 = vmax.f32 %v3538, 0.0
    %v3593 = vmax.f32 %v3541, 0.0
    %v3594 = vmax.f32 %v3546, 0.0
    %v3595 = vmax.f32 %v3549, 0.0
    %v3596 = vmax.f32 %v3554, 0.0
    %v3597 = vmax.f32 %v3557, 0.0
    %v3598 = vmax.f32 %v3562, 0.0
    %v3599 = vmax.f32 %v3565, 0.0
    %v3600 = vpack.c.bf16 %v3569, %v3568
    %v3601 = vpack.c.bf16 %v3571, %v3570
    %v3602 = vpack.c.bf16 %v3573, %v3572
    %v3603 = vpack.c.bf16 %v3575, %v3574
    %v3604 = vpack.c.bf16 %v3577, %v3576
    %v3605 = vpack.c.bf16 %v3579, %v3578
    %v3606 = vpack.c.bf16 %v3581, %v3580
    %v3607 = vpack.c.bf16 %v3583, %v3582
    %v3608 = vpack.c.bf16 %v3585, %v3584
    %v3609 = vpack.c.bf16 %v3587, %v3586
    %v3610 = vpack.c.bf16 %v3589, %v3588
    %v3611 = vpack.c.bf16 %v3591, %v3590
    %v3612 = vpack.c.bf16 %v3593, %v3592
    %v3613 = vpack.c.bf16 %v3595, %v3594
    %v3614 = vpack.c.bf16 %v3597, %v3596
    %v3615 = vpack.c.bf16 %v3599, %v3598
    %v3616 = vld [vmem:[%s4 + $0x28] sm:$0xff]
    %v3617 = vld [vmem:[%s4 + $0x68] sm:$0xff]
    %v3618 = vld [vmem:[%s4 + $0xa8] sm:$0xff]
    %v3619 = vld [vmem:[%s4 + $0xe8] sm:$0xff]
    %v3624 = vunpack.c.l.b16 %v3616
    %v3625 = vunpack.c.h.b16 %v3616
    %v3626 = vunpack.c.l.b16 %v3617
    %v3627 = vunpack.c.h.b16 %v3617
    %v3628 = vunpack.c.l.b16 %v3618
    %v3629 = vunpack.c.h.b16 %v3618
    %v3630 = vunpack.c.l.b16 %v3619
    %v3631 = vunpack.c.h.b16 %v3619
    %v3632 = vpack.c.b16 %v3626, %v3624
    %v3633 = vpack.c.b16 %v3627, %v3625
    %v3634 = vpack.c.b16 %v3630, %v3628
    %v3635 = vpack.c.b16 %v3631, %v3629
    %3640 = vmatprep.subr.bf16.mxu0 0
    %3641 = vmatpush1.bf16.msra.mxu0 %v3600
    %3642 = vmatprep.subr.bf16.mxu0 0
    %3643 = vmatpush1.bf16.msra.mxu0 %v3601
    %3644 = vmatprep.subr.bf16.mxu0 0
    %3645 = vmatpush1.bf16.msra.mxu0 %v3602
    %3646 = vmatprep.subr.bf16.mxu0 0
    %3647 = vmatpush1.bf16.msra.mxu0 %v3603
    %3648 = vmatprep.subr.bf16.mxu0 0
    %3649 = vmatpush1.bf16.msra.mxu0 %v3604
    %3650 = vmatprep.subr.bf16.mxu0 0
    %3651 = vmatpush1.bf16.msra.mxu0 %v3605
    %3652 = vmatprep.subr.bf16.mxu0 0
    %3653 = vmatpush1.bf16.msra.mxu0 %v3606
    %3654 = vmatprep.subr.bf16.mxu0 0
    %3655 = vmatpush1.bf16.msra.mxu0 %v3607
    %3656 = vmatprep.subr.bf16.mxu0 0
    %3657 = vmatpush1.bf16.msra.mxu0 %v3608
    %3658 = vmatprep.subr.bf16.mxu0 0
    %3659 = vmatpush1.bf16.msra.mxu0 %v3609
    %3660 = vmatprep.subr.bf16.mxu0 0
    %3661 = vmatpush1.bf16.msra.mxu0 %v3610
    %3662 = vmatprep.subr.bf16.mxu0 0
    %3663 = vmatpush1.bf16.msra.mxu0 %v3611
    %3664 = vmatprep.subr.bf16.mxu0 0
    %3665 = vmatpush1.bf16.msra.mxu0 %v3612
    %3666 = vmatprep.subr.bf16.mxu0 0
    %3667 = vmatpush1.bf16.msra.mxu0 %v3613
    %3668 = vmatprep.subr.bf16.mxu0 0
    %3669 = vmatpush1.bf16.msra.mxu0 %v3614
    %3670 = vmatprep.subr.bf16.mxu0 0
    %3671 = vmatpush1.bf16.msra.mxu0 %v3615
    %3672 = vmatprep.mubr.bf16.mxu0 %v3633
    %3673 = vmatmul.mubr.bf16.gmra.mrb[0].mxu0 %v3632
    %v3674 = vpop.f32.mrb[0].mxu0
    %v3675 = vadd.f32 0.0, %v3674
    %v3676 = vpop.f32.mrb[0].mxu0
    %v3677 = vpop.f32.mrb[0].mxu0
    %v3678 = vadd.f32 0.0, %v3677
    %v3679 = vpop.f32.mrb[0].mxu0
    %3680 = vmatprep.mubr.bf16.mxu0 %v3635
    %3681 = vmatmul.mubr.bf16.gmra.mrb[0].mxu0 %v3634
    %v3682 = vpop.f32.mrb[0].mxu0
    %v3683 = vadd.f32 0.0, %v3682
    %v3684 = vpop.f32.mrb[0].mxu0
    %v3685 = vpop.f32.mrb[0].mxu0
    %v3686 = vadd.f32 0.0, %v3685
    %v3687 = vpop.f32.mrb[0].mxu0
    %3688 = vdwg.mxu0
    %v3689 = vadd.f32 %v3243, %v3675
    %v3690 = vadd.f32 %v3244, %v3678
    %v3691 = vadd.f32 %v3245, %v3683
    %v3692 = vadd.f32 %v3246, %v3686
    %v3693 = vld [vmem:[%s3 + $0x300] sm:$0xf]
    %v3694 = vld [vmem:[%s3 + $0x304] sm:$0xf]
    %v3695 = vld [vmem:[%s3 + $0x308] sm:$0xf]
    %v3696 = vld [vmem:[%s3 + $0x30c] sm:$0xf]
    %v3697 = vld [vmem:[%s3 + $0x310] sm:$0xf]
    %v3698 = vld [vmem:[%s3 + $0x314] sm:$0xf]
    %v3699 = vld [vmem:[%s3 + $0x318] sm:$0xf]
    %v3700 = vld [vmem:[%s3 + $0x31c] sm:$0xf]
    %v3701 = vld [vmem:[%s3 + $0x320] sm:$0xf]
    %v3702 = vld [vmem:[%s3 + $0x324] sm:$0xf]
    %v3703 = vld [vmem:[%s3 + $0x328] sm:$0xf]
    %v3704 = vld [vmem:[%s3 + $0x32c] sm:$0xf]
    %v3705 = vld [vmem:[%s3 + $0x330] sm:$0xf]
    %v3706 = vld [vmem:[%s3 + $0x334] sm:$0xf]
    %v3707 = vld [vmem:[%s3 + $0x338] sm:$0xf]
    %v3708 = vld [vmem:[%s3 + $0x33c] sm:$0xf]
    %v3709 = vld [vmem:[%s3 + $0x340] sm:$0xf]
    %v3710 = vld [vmem:[%s3 + $0x344] sm:$0xf]
    %v3711 = vld [vmem:[%s3 + $0x348] sm:$0xf]
    %v3712 = vld [vmem:[%s3 + $0x34c] sm:$0xf]
    %v3713 = vld [vmem:[%s3 + $0x350] sm:$0xf]
    %v3714 = vld [vmem:[%s3 + $0x354] sm:$0xf]
    %v3715 = vld [vmem:[%s3 + $0x358] sm:$0xf]
    %v3716 = vld [vmem:[%s3 + $0x35c] sm:$0xf]
    %v3717 = vld [vmem:[%s3 + $0x360] sm:$0xf]
    %v3718 = vld [vmem:[%s3 + $0x364] sm:$0xf]
    %v3719 = vld [vmem:[%s3 + $0x368] sm:$0xf]
    %v3720 = vld [vmem:[%s3 + $0x36c] sm:$0xf]
    %v3721 = vld [vmem:[%s3 + $0x370] sm:$0xf]
    %v3722 = vld [vmem:[%s3 + $0x374] sm:$0xf]
    %v3723 = vld [vmem:[%s3 + $0x378] sm:$0xf]
    %v3724 = vld [vmem:[%s3 + $0x37c] sm:$0xf]
    %v3757 = vunpack.c.l.b16 %v3693
    %v3758 = vunpack.c.l.b16 %v3694
    %v3759 = vunpack.c.l.b16 %v3695
    %v3760 = vunpack.c.l.b16 %v3696
    %v3761 = vunpack.c.l.b16 %v3697
    %v3762 = vunpack.c.l.b16 %v3698
    %v3763 = vunpack.c.l.b16 %v3699
    %v3764 = vunpack.c.l.b16 %v3700
    %v3765 = vunpack.c.l.b16 %v3701
    %v3766 = vunpack.c.l.b16 %v3702
    %v3767 = vunpack.c.l.b16 %v3703
    %v3768 = vunpack.c.l.b16 %v3704
    %v3769 = vunpack.c.l.b16 %v3705
    %v3770 = vunpack.c.l.b16 %v3706
    %v3771 = vunpack.c.l.b16 %v3707
    %v3772 = vunpack.c.l.b16 %v3708
    %v3773 = vunpack.c.l.b16 %v3709
    %v3774 = vunpack.c.l.b16 %v3710
    %v3775 = vunpack.c.l.b16 %v3711
    %v3776 = vunpack.c.l.b16 %v3712
    %v3777 = vunpack.c.l.b16 %v3713
    %v3778 = vunpack.c.l.b16 %v3714
    %v3779 = vunpack.c.l.b16 %v3715
    %v3780 = vunpack.c.l.b16 %v3716
    %v3781 = vunpack.c.l.b16 %v3717
    %v3782 = vunpack.c.l.b16 %v3718
    %v3783 = vunpack.c.l.b16 %v3719
    %v3784 = vunpack.c.l.b16 %v3720
    %v3785 = vunpack.c.l.b16 %v3721
    %v3786 = vunpack.c.l.b16 %v3722
    %v3787 = vunpack.c.l.b16 %v3723
    %v3788 = vunpack.c.l.b16 %v3724
    %v3789 = vpack.c.b16 %v3758, %v3757
    %v3790 = vpack.c.b16 %v3760, %v3759
    %v3791 = vpack.c.b16 %v3762, %v3761
    %v3792 = vpack.c.b16 %v3764, %v3763
    %v3793 = vpack.c.b16 %v3766, %v3765
    %v3794 = vpack.c.b16 %v3768, %v3767
    %v3795 = vpack.c.b16 %v3770, %v3769
    %v3796 = vpack.c.b16 %v3772, %v3771
    %v3797 = vpack.c.b16 %v3774, %v3773
    %v3798 = vpack.c.b16 %v3776, %v3775
    %v3799 = vpack.c.b16 %v3778, %v3777
    %v3800 = vpack.c.b16 %v3780, %v3779
    %v3801 = vpack.c.b16 %v3782, %v3781
    %v3802 = vpack.c.b16 %v3784, %v3783
    %v3803 = vpack.c.b16 %v3786, %v3785
    %v3804 = vpack.c.b16 %v3788, %v3787
    %v3806 = vsel %vm1132, %v3789, 0
    %v3809 = vsel %vm1132, %v3790, 0
    %v3812 = vsel %vm1132, %v3791, 0
    %v3815 = vsel %vm1132, %v3792, 0
    %v3818 = vsel %vm1132, %v3793, 0
    %v3821 = vsel %vm1132, %v3794, 0
    %v3824 = vsel %vm1132, %v3795, 0
    %v3827 = vsel %vm1132, %v3796, 0
    %v3830 = vsel %vm1132, %v3797, 0
    %v3833 = vsel %vm1132, %v3798, 0
    %v3836 = vsel %vm1132, %v3799, 0
    %v3839 = vsel %vm1132, %v3800, 0
    %v3842 = vsel %vm1132, %v3801, 0
    %v3845 = vsel %vm1132, %v3802, 0
    %v3848 = vsel %vm1132, %v3803, 0
    %v3851 = vsel %vm1132, %v3804, 0
    %3853 = vmatprep.subr.bf16.mxu0 0
    %3854 = vmatpush1.bf16.msra.mxu0 %v1017
    %3855 = vmatprep.subr.bf16.mxu0 0
    %3856 = vmatpush1.bf16.msra.mxu0 %v1018
    %3857 = vmatprep.subr.bf16.mxu0 0
    %3858 = vmatpush1.bf16.msra.mxu0 %v1183
    %3859 = vmatprep.subr.bf16.mxu0 0
    %3860 = vmatpush1.bf16.msra.mxu0 0
    %3861 = vmatprep.subr.bf16.mxu0 0
    %3862 = vmatpush1.bf16.msra.mxu0 0
    %3863 = vmatprep.subr.bf16.mxu0 0
    %3864 = vmatpush1.bf16.msra.mxu0 0
    %3865 = vmatprep.subr.bf16.mxu0 0
    %3866 = vmatpush1.bf16.msra.mxu0 0
    %3867 = vmatprep.subr.bf16.mxu0 0
    %3868 = vmatpush1.bf16.msra.mxu0 0
    %3869 = vmatprep.subr.bf16.mxu0 0
    %3870 = vmatpush1.bf16.msra.mxu0 0
    %3871 = vmatprep.subr.bf16.mxu0 0
    %3872 = vmatpush1.bf16.msra.mxu0 0
    %3873 = vmatprep.subr.bf16.mxu0 0
    %3874 = vmatpush1.bf16.msra.mxu0 0
    %3875 = vmatprep.subr.bf16.mxu0 0
    %3876 = vmatpush1.bf16.msra.mxu0 0
    %3877 = vmatprep.subr.bf16.mxu0 0
    %3878 = vmatpush1.bf16.msra.mxu0 0
    %3879 = vmatprep.subr.bf16.mxu0 0
    %3880 = vmatpush1.bf16.msra.mxu0 0
    %3881 = vmatprep.subr.bf16.mxu0 0
    %3882 = vmatpush1.bf16.msra.mxu0 0
    %3883 = vmatprep.subr.bf16.mxu0 0
    %3884 = vmatpush1.bf16.msra.mxu0 0
    %3885 = vmatprep.mubr.bf16.mxu0 0
    %3886 = vmatmul.mubr.bf16.gmra.mrb[0].mxu0 %v3806
    %v3887 = vpop.f32.mrb[0].mxu0
    %v3888 = vadd.f32 0.0, %v3887
    %v3889 = vpop.f32.mrb[0].mxu0
    %v3890 = vpop.f32.mrb[0].mxu0
    %v3891 = vadd.f32 0.0, %v3890
    %v3892 = vpop.f32.mrb[0].mxu0
    %3893 = vmatprep.mubr.bf16.mxu0 0
    %3894 = vmatmul.mubr.bf16.gmra.mrb[0].mxu0 %v3809
    %v3895 = vpop.f32.mrb[0].mxu0
    %v3896 = vadd.f32 0.0, %v3895
    %v3897 = vpop.f32.mrb[0].mxu0
    %v3898 = vpop.f32.mrb[0].mxu0
    %v3899 = vadd.f32 0.0, %v3898
    %v3900 = vpop.f32.mrb[0].mxu0
    %3901 = vmatprep.mubr.bf16.mxu0 0
    %3902 = vmatmul.mubr.bf16.gmra.mrb[0].mxu0 %v3812
    %v3903 = vpop.f32.mrb[0].mxu0
    %v3904 = vadd.f32 0.0, %v3903
    %v3905 = vpop.f32.mrb[0].mxu0
    %v3906 = vpop.f32.mrb[0].mxu0
    %v3907 = vadd.f32 0.0, %v3906
    %v3908 = vpop.f32.mrb[0].mxu0
    %3909 = vmatprep.mubr.bf16.mxu0 0
    %3910 = vmatmul.mubr.bf16.gmra.mrb[0].mxu0 %v3815
    %v3911 = vpop.f32.mrb[0].mxu0
    %v3912 = vadd.f32 0.0, %v3911
    %v3913 = vpop.f32.mrb[0].mxu0
    %v3914 = vpop.f32.mrb[0].mxu0
    %v3915 = vadd.f32 0.0, %v3914
    %v3916 = vpop.f32.mrb[0].mxu0
    %3917 = vmatprep.mubr.bf16.mxu0 0
    %3918 = vmatmul.mubr.bf16.gmra.mrb[0].mxu0 %v3818
    %v3919 = vpop.f32.mrb[0].mxu0
    %v3920 = vadd.f32 0.0, %v3919
    %v3921 = vpop.f32.mrb[0].mxu0
    %v3922 = vpop.f32.mrb[0].mxu0
    %v3923 = vadd.f32 0.0, %v3922
    %v3924 = vpop.f32.mrb[0].mxu0
    %3925 = vmatprep.mubr.bf16.mxu0 0
    %3926 = vmatmul.mubr.bf16.gmra.mrb[0].mxu0 %v3821
    %v3927 = vpop.f32.mrb[0].mxu0
    %v3928 = vadd.f32 0.0, %v3927
    %v3929 = vpop.f32.mrb[0].mxu0
    %v3930 = vpop.f32.mrb[0].mxu0
    %v3931 = vadd.f32 0.0, %v3930
    %v3932 = vpop.f32.mrb[0].mxu0
    %3933 = vmatprep.mubr.bf16.mxu0 0
    %3934 = vmatmul.mubr.bf16.gmra.mrb[0].mxu0 %v3824
    %v3935 = vpop.f32.mrb[0].mxu0
    %v3936 = vadd.f32 0.0, %v3935
    %v3937 = vpop.f32.mrb[0].mxu0
    %v3938 = vpop.f32.mrb[0].mxu0
    %v3939 = vadd.f32 0.0, %v3938
    %v3940 = vpop.f32.mrb[0].mxu0
    %3941 = vmatprep.mubr.bf16.mxu0 0
    %3942 = vmatmul.mubr.bf16.gmra.mrb[0].mxu0 %v3827
    %v3943 = vpop.f32.mrb[0].mxu0
    %v3944 = vadd.f32 0.0, %v3943
    %v3945 = vpop.f32.mrb[0].mxu0
    %v3946 = vpop.f32.mrb[0].mxu0
    %v3947 = vadd.f32 0.0, %v3946
    %v3948 = vpop.f32.mrb[0].mxu0
    %3949 = vmatprep.mubr.bf16.mxu0 0
    %3950 = vmatmul.mubr.bf16.gmra.mrb[0].mxu0 %v3830
    %v3951 = vpop.f32.mrb[0].mxu0
    %v3952 = vadd.f32 0.0, %v3951
    %v3953 = vpop.f32.mrb[0].mxu0
    %v3954 = vpop.f32.mrb[0].mxu0
    %v3955 = vadd.f32 0.0, %v3954
    %v3956 = vpop.f32.mrb[0].mxu0
    %3957 = vmatprep.mubr.bf16.mxu0 0
    %3958 = vmatmul.mubr.bf16.gmra.mrb[0].mxu0 %v3833
    %v3959 = vpop.f32.mrb[0].mxu0
    %v3960 = vadd.f32 0.0, %v3959
    %v3961 = vpop.f32.mrb[0].mxu0
    %v3962 = vpop.f32.mrb[0].mxu0
    %v3963 = vadd.f32 0.0, %v3962
    %v3964 = vpop.f32.mrb[0].mxu0
    %3965 = vmatprep.mubr.bf16.mxu0 0
    %3966 = vmatmul.mubr.bf16.gmra.mrb[0].mxu0 %v3836
    %v3967 = vpop.f32.mrb[0].mxu0
    %v3968 = vadd.f32 0.0, %v3967
    %v3969 = vpop.f32.mrb[0].mxu0
    %v3970 = vpop.f32.mrb[0].mxu0
    %v3971 = vadd.f32 0.0, %v3970
    %v3972 = vpop.f32.mrb[0].mxu0
    %3973 = vmatprep.mubr.bf16.mxu0 0
    %3974 = vmatmul.mubr.bf16.gmra.mrb[0].mxu0 %v3839
    %v3975 = vpop.f32.mrb[0].mxu0
    %v3976 = vadd.f32 0.0, %v3975
    %v3977 = vpop.f32.mrb[0].mxu0
    %v3978 = vpop.f32.mrb[0].mxu0
    %v3979 = vadd.f32 0.0, %v3978
    %v3980 = vpop.f32.mrb[0].mxu0
    %3981 = vmatprep.mubr.bf16.mxu0 0
    %3982 = vmatmul.mubr.bf16.gmra.mrb[0].mxu0 %v3842
    %v3983 = vpop.f32.mrb[0].mxu0
    %v3984 = vadd.f32 0.0, %v3983
    %v3985 = vpop.f32.mrb[0].mxu0
    %v3986 = vpop.f32.mrb[0].mxu0
    %v3987 = vadd.f32 0.0, %v3986
    %v3988 = vpop.f32.mrb[0].mxu0
    %3989 = vmatprep.mubr.bf16.mxu0 0
    %3990 = vmatmul.mubr.bf16.gmra.mrb[0].mxu0 %v3845
    %v3991 = vpop.f32.mrb[0].mxu0
    %v3992 = vadd.f32 0.0, %v3991
    %v3993 = vpop.f32.mrb[0].mxu0
    %v3994 = vpop.f32.mrb[0].mxu0
    %v3995 = vadd.f32 0.0, %v3994
    %v3996 = vpop.f32.mrb[0].mxu0
    %3997 = vmatprep.mubr.bf16.mxu0 0
    %3998 = vmatmul.mubr.bf16.gmra.mrb[0].mxu0 %v3848
    %v3999 = vpop.f32.mrb[0].mxu0
    %v4000 = vadd.f32 0.0, %v3999
    %v4001 = vpop.f32.mrb[0].mxu0
    %v4002 = vpop.f32.mrb[0].mxu0
    %v4003 = vadd.f32 0.0, %v4002
    %v4004 = vpop.f32.mrb[0].mxu0
    %4005 = vmatprep.mubr.bf16.mxu0 0
    %4006 = vmatmul.mubr.bf16.gmra.mrb[0].mxu0 %v3851
    %v4007 = vpop.f32.mrb[0].mxu0
    %v4008 = vadd.f32 0.0, %v4007
    %v4009 = vpop.f32.mrb[0].mxu0
    %v4010 = vpop.f32.mrb[0].mxu0
    %v4011 = vadd.f32 0.0, %v4010
    %v4012 = vpop.f32.mrb[0].mxu0
    %4013 = vdwg.mxu0
    %v4014 = vmax.f32 %v3888, 0.0
    %v4015 = vmax.f32 %v3891, 0.0
    %v4016 = vmax.f32 %v3896, 0.0
    %v4017 = vmax.f32 %v3899, 0.0
    %v4018 = vmax.f32 %v3904, 0.0
    %v4019 = vmax.f32 %v3907, 0.0
    %v4020 = vmax.f32 %v3912, 0.0
    %v4021 = vmax.f32 %v3915, 0.0
    %v4022 = vmax.f32 %v3920, 0.0
    %v4023 = vmax.f32 %v3923, 0.0
    %v4024 = vmax.f32 %v3928, 0.0
    %v4025 = vmax.f32 %v3931, 0.0
    %v4026 = vmax.f32 %v3936, 0.0
    %v4027 = vmax.f32 %v3939, 0.0
    %v4028 = vmax.f32 %v3944, 0.0
    %v4029 = vmax.f32 %v3947, 0.0
    %v4030 = vmax.f32 %v3952, 0.0
    %v4031 = vmax.f32 %v3955, 0.0
    %v4032 = vmax.f32 %v3960, 0.0
    %v4033 = vmax.f32 %v3963, 0.0
    %v4034 = vmax.f32 %v3968, 0.0
    %v4035 = vmax.f32 %v3971, 0.0
    %v4036 = vmax.f32 %v3976, 0.0
    %v4037 = vmax.f32 %v3979, 0.0
    %v4038 = vmax.f32 %v3984, 0.0
    %v4039 = vmax.f32 %v3987, 0.0
    %v4040 = vmax.f32 %v3992, 0.0
    %v4041 = vmax.f32 %v3995, 0.0
    %v4042 = vmax.f32 %v4000, 0.0
    %v4043 = vmax.f32 %v4003, 0.0
    %v4044 = vmax.f32 %v4008, 0.0
    %v4045 = vmax.f32 %v4011, 0.0
    %v4046 = vpack.c.bf16 %v4015, %v4014
    %v4047 = vpack.c.bf16 %v4017, %v4016
    %v4048 = vpack.c.bf16 %v4019, %v4018
    %v4049 = vpack.c.bf16 %v4021, %v4020
    %v4050 = vpack.c.bf16 %v4023, %v4022
    %v4051 = vpack.c.bf16 %v4025, %v4024
    %v4052 = vpack.c.bf16 %v4027, %v4026
    %v4053 = vpack.c.bf16 %v4029, %v4028
    %v4054 = vpack.c.bf16 %v4031, %v4030
    %v4055 = vpack.c.bf16 %v4033, %v4032
    %v4056 = vpack.c.bf16 %v4035, %v4034
    %v4057 = vpack.c.bf16 %v4037, %v4036
    %v4058 = vpack.c.bf16 %v4039, %v4038
    %v4059 = vpack.c.bf16 %v4041, %v4040
    %v4060 = vpack.c.bf16 %v4043, %v4042
    %v4061 = vpack.c.bf16 %v4045, %v4044
    %v4062 = vld [vmem:[%s4 + $0x30] sm:$0xff]
    %v4063 = vld [vmem:[%s4 + $0x70] sm:$0xff]
    %v4064 = vld [vmem:[%s4 + $0xb0] sm:$0xff]
    %v4065 = vld [vmem:[%s4 + $0xf0] sm:$0xff]
    %v4070 = vunpack.c.l.b16 %v4062
    %v4071 = vunpack.c.h.b16 %v4062
    %v4072 = vunpack.c.l.b16 %v4063
    %v4073 = vunpack.c.h.b16 %v4063
    %v4074 = vunpack.c.l.b16 %v4064
    %v4075 = vunpack.c.h.b16 %v4064
    %v4076 = vunpack.c.l.b16 %v4065
    %v4077 = vunpack.c.h.b16 %v4065
    %v4078 = vpack.c.b16 %v4072, %v4070
    %v4079 = vpack.c.b16 %v4073, %v4071
    %v4080 = vpack.c.b16 %v4076, %v4074
    %v4081 = vpack.c.b16 %v4077, %v4075
    %4086 = vmatprep.subr.bf16.mxu0 0
    %4087 = vmatpush1.bf16.msra.mxu0 %v4046
    %4088 = vmatprep.subr.bf16.mxu0 0
    %4089 = vmatpush1.bf16.msra.mxu0 %v4047
    %4090 = vmatprep.subr.bf16.mxu0 0
    %4091 = vmatpush1.bf16.msra.mxu0 %v4048
    %4092 = vmatprep.subr.bf16.mxu0 0
    %4093 = vmatpush1.bf16.msra.mxu0 %v4049
    %4094 = vmatprep.subr.bf16.mxu0 0
    %4095 = vmatpush1.bf16.msra.mxu0 %v4050
    %4096 = vmatprep.subr.bf16.mxu0 0
    %4097 = vmatpush1.bf16.msra.mxu0 %v4051
    %4098 = vmatprep.subr.bf16.mxu0 0
    %4099 = vmatpush1.bf16.msra.mxu0 %v4052
    %4100 = vmatprep.subr.bf16.mxu0 0
    %4101 = vmatpush1.bf16.msra.mxu0 %v4053
    %4102 = vmatprep.subr.bf16.mxu0 0
    %4103 = vmatpush1.bf16.msra.mxu0 %v4054
    %4104 = vmatprep.subr.bf16.mxu0 0
    %4105 = vmatpush1.bf16.msra.mxu0 %v4055
    %4106 = vmatprep.subr.bf16.mxu0 0
    %4107 = vmatpush1.bf16.msra.mxu0 %v4056
    %4108 = vmatprep.subr.bf16.mxu0 0
    %4109 = vmatpush1.bf16.msra.mxu0 %v4057
    %4110 = vmatprep.subr.bf16.mxu0 0
    %4111 = vmatpush1.bf16.msra.mxu0 %v4058
    %4112 = vmatprep.subr.bf16.mxu0 0
    %4113 = vmatpush1.bf16.msra.mxu0 %v4059
    %4114 = vmatprep.subr.bf16.mxu0 0
    %4115 = vmatpush1.bf16.msra.mxu0 %v4060
    %4116 = vmatprep.subr.bf16.mxu0 0
    %4117 = vmatpush1.bf16.msra.mxu0 %v4061
    %4118 = vmatprep.mubr.bf16.mxu0 %v4079
    %4119 = vmatmul.mubr.bf16.gmra.mrb[0].mxu0 %v4078
    %v4120 = vpop.f32.mrb[0].mxu0
    %v4121 = vadd.f32 0.0, %v4120
    %v4122 = vpop.f32.mrb[0].mxu0
    %v4123 = vpop.f32.mrb[0].mxu0
    %v4124 = vadd.f32 0.0, %v4123
    %v4125 = vpop.f32.mrb[0].mxu0
    %4126 = vmatprep.mubr.bf16.mxu0 %v4081
    %4127 = vmatmul.mubr.bf16.gmra.mrb[0].mxu0 %v4080
    %v4128 = vpop.f32.mrb[0].mxu0
    %v4129 = vadd.f32 0.0, %v4128
    %v4130 = vpop.f32.mrb[0].mxu0
    %v4131 = vpop.f32.mrb[0].mxu0
    %v4132 = vadd.f32 0.0, %v4131
    %v4133 = vpop.f32.mrb[0].mxu0
    %4134 = vdwg.mxu0
    %v4135 = vadd.f32 %v3689, %v4121
    %v4136 = vadd.f32 %v3690, %v4124
    %v4137 = vadd.f32 %v3691, %v4129
    %v4138 = vadd.f32 %v3692, %v4132
    %v4139 = vld [vmem:[%s3 + $0x380] sm:$0xf]
    %v4140 = vld [vmem:[%s3 + $0x384] sm:$0xf]
    %v4141 = vld [vmem:[%s3 + $0x388] sm:$0xf]
    %v4142 = vld [vmem:[%s3 + $0x38c] sm:$0xf]
    %v4143 = vld [vmem:[%s3 + $0x390] sm:$0xf]
    %v4144 = vld [vmem:[%s3 + $0x394] sm:$0xf]
    %v4145 = vld [vmem:[%s3 + $0x398] sm:$0xf]
    %v4146 = vld [vmem:[%s3 + $0x39c] sm:$0xf]
    %v4147 = vld [vmem:[%s3 + $0x3a0] sm:$0xf]
    %v4148 = vld [vmem:[%s3 + $0x3a4] sm:$0xf]
    %v4149 = vld [vmem:[%s3 + $0x3a8] sm:$0xf]
    %v4150 = vld [vmem:[%s3 + $0x3ac] sm:$0xf]
    %v4151 = vld [vmem:[%s3 + $0x3b0] sm:$0xf]
    %v4152 = vld [vmem:[%s3 + $0x3b4] sm:$0xf]
    %v4153 = vld [vmem:[%s3 + $0x3b8] sm:$0xf]
    %v4154 = vld [vmem:[%s3 + $0x3bc] sm:$0xf]
    %v4155 = vld [vmem:[%s3 + $0x3c0] sm:$0xf]
    %v4156 = vld [vmem:[%s3 + $0x3c4] sm:$0xf]
    %v4157 = vld [vmem:[%s3 + $0x3c8] sm:$0xf]
    %v4158 = vld [vmem:[%s3 + $0x3cc] sm:$0xf]
    %v4159 = vld [vmem:[%s3 + $0x3d0] sm:$0xf]
    %v4160 = vld [vmem:[%s3 + $0x3d4] sm:$0xf]
    %v4161 = vld [vmem:[%s3 + $0x3d8] sm:$0xf]
    %v4162 = vld [vmem:[%s3 + $0x3dc] sm:$0xf]
    %v4163 = vld [vmem:[%s3 + $0x3e0] sm:$0xf]
    %v4164 = vld [vmem:[%s3 + $0x3e4] sm:$0xf]
    %v4165 = vld [vmem:[%s3 + $0x3e8] sm:$0xf]
    %v4166 = vld [vmem:[%s3 + $0x3ec] sm:$0xf]
    %v4167 = vld [vmem:[%s3 + $0x3f0] sm:$0xf]
    %v4168 = vld [vmem:[%s3 + $0x3f4] sm:$0xf]
    %v4169 = vld [vmem:[%s3 + $0x3f8] sm:$0xf]
    %v4170 = vld [vmem:[%s3 + $0x3fc] sm:$0xf]
    %v4203 = vunpack.c.l.b16 %v4139
    %v4204 = vunpack.c.l.b16 %v4140
    %v4205 = vunpack.c.l.b16 %v4141
    %v4206 = vunpack.c.l.b16 %v4142
    %v4207 = vunpack.c.l.b16 %v4143
    %v4208 = vunpack.c.l.b16 %v4144
    %v4209 = vunpack.c.l.b16 %v4145
    %v4210 = vunpack.c.l.b16 %v4146
    %v4211 = vunpack.c.l.b16 %v4147
    %v4212 = vunpack.c.l.b16 %v4148
    %v4213 = vunpack.c.l.b16 %v4149
    %v4214 = vunpack.c.l.b16 %v4150
    %v4215 = vunpack.c.l.b16 %v4151
    %v4216 = vunpack.c.l.b16 %v4152
    %v4217 = vunpack.c.l.b16 %v4153
    %v4218 = vunpack.c.l.b16 %v4154
    %v4219 = vunpack.c.l.b16 %v4155
    %v4220 = vunpack.c.l.b16 %v4156
    %v4221 = vunpack.c.l.b16 %v4157
    %v4222 = vunpack.c.l.b16 %v4158
    %v4223 = vunpack.c.l.b16 %v4159
    %v4224 = vunpack.c.l.b16 %v4160
    %v4225 = vunpack.c.l.b16 %v4161
    %v4226 = vunpack.c.l.b16 %v4162
    %v4227 = vunpack.c.l.b16 %v4163
    %v4228 = vunpack.c.l.b16 %v4164
    %v4229 = vunpack.c.l.b16 %v4165
    %v4230 = vunpack.c.l.b16 %v4166
    %v4231 = vunpack.c.l.b16 %v4167
    %v4232 = vunpack.c.l.b16 %v4168
    %v4233 = vunpack.c.l.b16 %v4169
    %v4234 = vunpack.c.l.b16 %v4170
    %v4235 = vpack.c.b16 %v4204, %v4203
    %v4236 = vpack.c.b16 %v4206, %v4205
    %v4237 = vpack.c.b16 %v4208, %v4207
    %v4238 = vpack.c.b16 %v4210, %v4209
    %v4239 = vpack.c.b16 %v4212, %v4211
    %v4240 = vpack.c.b16 %v4214, %v4213
    %v4241 = vpack.c.b16 %v4216, %v4215
    %v4242 = vpack.c.b16 %v4218, %v4217
    %v4243 = vpack.c.b16 %v4220, %v4219
    %v4244 = vpack.c.b16 %v4222, %v4221
    %v4245 = vpack.c.b16 %v4224, %v4223
    %v4246 = vpack.c.b16 %v4226, %v4225
    %v4247 = vpack.c.b16 %v4228, %v4227
    %v4248 = vpack.c.b16 %v4230, %v4229
    %v4249 = vpack.c.b16 %v4232, %v4231
    %v4250 = vpack.c.b16 %v4234, %v4233
    %v4252 = vsel %vm1132, %v4235, 0
    %v4255 = vsel %vm1132, %v4236, 0
    %v4258 = vsel %vm1132, %v4237, 0
    %v4261 = vsel %vm1132, %v4238, 0
    %v4264 = vsel %vm1132, %v4239, 0
    %v4267 = vsel %vm1132, %v4240, 0
    %v4270 = vsel %vm1132, %v4241, 0
    %v4273 = vsel %vm1132, %v4242, 0
    %v4276 = vsel %vm1132, %v4243, 0
    %v4279 = vsel %vm1132, %v4244, 0
    %v4282 = vsel %vm1132, %v4245, 0
    %v4285 = vsel %vm1132, %v4246, 0
    %v4288 = vsel %vm1132, %v4247, 0
    %v4291 = vsel %vm1132, %v4248, 0
    %v4294 = vsel %vm1132, %v4249, 0
    %v4297 = vsel %vm1132, %v4250, 0
    %4299 = vmatprep.subr.bf16.mxu0 0
    %4300 = vmatpush1.bf16.msra.mxu0 %v1017
    %4301 = vmatprep.subr.bf16.mxu0 0
    %4302 = vmatpush1.bf16.msra.mxu0 %v1018
    %4303 = vmatprep.subr.bf16.mxu0 0
    %4304 = vmatpush1.bf16.msra.mxu0 %v1183
    %4305 = vmatprep.subr.bf16.mxu0 0
    %4306 = vmatpush1.bf16.msra.mxu0 0
    %4307 = vmatprep.subr.bf16.mxu0 0
    %4308 = vmatpush1.bf16.msra.mxu0 0
    %4309 = vmatprep.subr.bf16.mxu0 0
    %4310 = vmatpush1.bf16.msra.mxu0 0
    %4311 = vmatprep.subr.bf16.mxu0 0
    %4312 = vmatpush1.bf16.msra.mxu0 0
    %4313 = vmatprep.subr.bf16.mxu0 0
    %4314 = vmatpush1.bf16.msra.mxu0 0
    %4315 = vmatprep.subr.bf16.mxu0 0
    %4316 = vmatpush1.bf16.msra.mxu0 0
    %4317 = vmatprep.subr.bf16.mxu0 0
    %4318 = vmatpush1.bf16.msra.mxu0 0
    %4319 = vmatprep.subr.bf16.mxu0 0
    %4320 = vmatpush1.bf16.msra.mxu0 0
    %4321 = vmatprep.subr.bf16.mxu0 0
    %4322 = vmatpush1.bf16.msra.mxu0 0
    %4323 = vmatprep.subr.bf16.mxu0 0
    %4324 = vmatpush1.bf16.msra.mxu0 0
    %4325 = vmatprep.subr.bf16.mxu0 0
    %4326 = vmatpush1.bf16.msra.mxu0 0
    %4327 = vmatprep.subr.bf16.mxu0 0
    %4328 = vmatpush1.bf16.msra.mxu0 0
    %4329 = vmatprep.subr.bf16.mxu0 0
    %4330 = vmatpush1.bf16.msra.mxu0 0
    %4331 = vmatprep.mubr.bf16.mxu0 0
    %4332 = vmatmul.mubr.bf16.gmra.mrb[0].mxu0 %v4252
    %v4333 = vpop.f32.mrb[0].mxu0
    %v4334 = vadd.f32 0.0, %v4333
    %v4335 = vpop.f32.mrb[0].mxu0
    %v4336 = vpop.f32.mrb[0].mxu0
    %v4337 = vadd.f32 0.0, %v4336
    %v4338 = vpop.f32.mrb[0].mxu0
    %4339 = vmatprep.mubr.bf16.mxu0 0
    %4340 = vmatmul.mubr.bf16.gmra.mrb[0].mxu0 %v4255
    %v4341 = vpop.f32.mrb[0].mxu0
    %v4342 = vadd.f32 0.0, %v4341
    %v4343 = vpop.f32.mrb[0].mxu0
    %v4344 = vpop.f32.mrb[0].mxu0
    %v4345 = vadd.f32 0.0, %v4344
    %v4346 = vpop.f32.mrb[0].mxu0
    %4347 = vmatprep.mubr.bf16.mxu0 0
    %4348 = vmatmul.mubr.bf16.gmra.mrb[0].mxu0 %v4258
    %v4349 = vpop.f32.mrb[0].mxu0
    %v4350 = vadd.f32 0.0, %v4349
    %v4351 = vpop.f32.mrb[0].mxu0
    %v4352 = vpop.f32.mrb[0].mxu0
    %v4353 = vadd.f32 0.0, %v4352
    %v4354 = vpop.f32.mrb[0].mxu0
    %4355 = vmatprep.mubr.bf16.mxu0 0
    %4356 = vmatmul.mubr.bf16.gmra.mrb[0].mxu0 %v4261
    %v4357 = vpop.f32.mrb[0].mxu0
    %v4358 = vadd.f32 0.0, %v4357
    %v4359 = vpop.f32.mrb[0].mxu0
    %v4360 = vpop.f32.mrb[0].mxu0
    %v4361 = vadd.f32 0.0, %v4360
    %v4362 = vpop.f32.mrb[0].mxu0
    %4363 = vmatprep.mubr.bf16.mxu0 0
    %4364 = vmatmul.mubr.bf16.gmra.mrb[0].mxu0 %v4264
    %v4365 = vpop.f32.mrb[0].mxu0
    %v4366 = vadd.f32 0.0, %v4365
    %v4367 = vpop.f32.mrb[0].mxu0
    %v4368 = vpop.f32.mrb[0].mxu0
    %v4369 = vadd.f32 0.0, %v4368
    %v4370 = vpop.f32.mrb[0].mxu0
    %4371 = vmatprep.mubr.bf16.mxu0 0
    %4372 = vmatmul.mubr.bf16.gmra.mrb[0].mxu0 %v4267
    %v4373 = vpop.f32.mrb[0].mxu0
    %v4374 = vadd.f32 0.0, %v4373
    %v4375 = vpop.f32.mrb[0].mxu0
    %v4376 = vpop.f32.mrb[0].mxu0
    %v4377 = vadd.f32 0.0, %v4376
    %v4378 = vpop.f32.mrb[0].mxu0
    %4379 = vmatprep.mubr.bf16.mxu0 0
    %4380 = vmatmul.mubr.bf16.gmra.mrb[0].mxu0 %v4270
    %v4381 = vpop.f32.mrb[0].mxu0
    %v4382 = vadd.f32 0.0, %v4381
    %v4383 = vpop.f32.mrb[0].mxu0
    %v4384 = vpop.f32.mrb[0].mxu0
    %v4385 = vadd.f32 0.0, %v4384
    %v4386 = vpop.f32.mrb[0].mxu0
    %4387 = vmatprep.mubr.bf16.mxu0 0
    %4388 = vmatmul.mubr.bf16.gmra.mrb[0].mxu0 %v4273
    %v4389 = vpop.f32.mrb[0].mxu0
    %v4390 = vadd.f32 0.0, %v4389
    %v4391 = vpop.f32.mrb[0].mxu0
    %v4392 = vpop.f32.mrb[0].mxu0
    %v4393 = vadd.f32 0.0, %v4392
    %v4394 = vpop.f32.mrb[0].mxu0
    %4395 = vmatprep.mubr.bf16.mxu0 0
    %4396 = vmatmul.mubr.bf16.gmra.mrb[0].mxu0 %v4276
    %v4397 = vpop.f32.mrb[0].mxu0
    %v4398 = vadd.f32 0.0, %v4397
    %v4399 = vpop.f32.mrb[0].mxu0
    %v4400 = vpop.f32.mrb[0].mxu0
    %v4401 = vadd.f32 0.0, %v4400
    %v4402 = vpop.f32.mrb[0].mxu0
    %4403 = vmatprep.mubr.bf16.mxu0 0
    %4404 = vmatmul.mubr.bf16.gmra.mrb[0].mxu0 %v4279
    %v4405 = vpop.f32.mrb[0].mxu0
    %v4406 = vadd.f32 0.0, %v4405
    %v4407 = vpop.f32.mrb[0].mxu0
    %v4408 = vpop.f32.mrb[0].mxu0
    %v4409 = vadd.f32 0.0, %v4408
    %v4410 = vpop.f32.mrb[0].mxu0
    %4411 = vmatprep.mubr.bf16.mxu0 0
    %4412 = vmatmul.mubr.bf16.gmra.mrb[0].mxu0 %v4282
    %v4413 = vpop.f32.mrb[0].mxu0
    %v4414 = vadd.f32 0.0, %v4413
    %v4415 = vpop.f32.mrb[0].mxu0
    %v4416 = vpop.f32.mrb[0].mxu0
    %v4417 = vadd.f32 0.0, %v4416
    %v4418 = vpop.f32.mrb[0].mxu0
    %4419 = vmatprep.mubr.bf16.mxu0 0
    %4420 = vmatmul.mubr.bf16.gmra.mrb[0].mxu0 %v4285
    %v4421 = vpop.f32.mrb[0].mxu0
    %v4422 = vadd.f32 0.0, %v4421
    %v4423 = vpop.f32.mrb[0].mxu0
    %v4424 = vpop.f32.mrb[0].mxu0
    %v4425 = vadd.f32 0.0, %v4424
    %v4426 = vpop.f32.mrb[0].mxu0
    %4427 = vmatprep.mubr.bf16.mxu0 0
    %4428 = vmatmul.mubr.bf16.gmra.mrb[0].mxu0 %v4288
    %v4429 = vpop.f32.mrb[0].mxu0
    %v4430 = vadd.f32 0.0, %v4429
    %v4431 = vpop.f32.mrb[0].mxu0
    %v4432 = vpop.f32.mrb[0].mxu0
    %v4433 = vadd.f32 0.0, %v4432
    %v4434 = vpop.f32.mrb[0].mxu0
    %4435 = vmatprep.mubr.bf16.mxu0 0
    %4436 = vmatmul.mubr.bf16.gmra.mrb[0].mxu0 %v4291
    %v4437 = vpop.f32.mrb[0].mxu0
    %v4438 = vadd.f32 0.0, %v4437
    %v4439 = vpop.f32.mrb[0].mxu0
    %v4440 = vpop.f32.mrb[0].mxu0
    %v4441 = vadd.f32 0.0, %v4440
    %v4442 = vpop.f32.mrb[0].mxu0
    %4443 = vmatprep.mubr.bf16.mxu0 0
    %4444 = vmatmul.mubr.bf16.gmra.mrb[0].mxu0 %v4294
    %v4445 = vpop.f32.mrb[0].mxu0
    %v4446 = vadd.f32 0.0, %v4445
    %v4447 = vpop.f32.mrb[0].mxu0
    %v4448 = vpop.f32.mrb[0].mxu0
    %v4449 = vadd.f32 0.0, %v4448
    %v4450 = vpop.f32.mrb[0].mxu0
    %4451 = vmatprep.mubr.bf16.mxu0 0
    %4452 = vmatmul.mubr.bf16.gmra.mrb[0].mxu0 %v4297
    %v4453 = vpop.f32.mrb[0].mxu0
    %v4454 = vadd.f32 0.0, %v4453
    %v4455 = vpop.f32.mrb[0].mxu0
    %v4456 = vpop.f32.mrb[0].mxu0
    %v4457 = vadd.f32 0.0, %v4456
    %v4458 = vpop.f32.mrb[0].mxu0
    %4459 = vdwg.mxu0
    %v4460 = vmax.f32 %v4334, 0.0
    %v4461 = vmax.f32 %v4337, 0.0
    %v4462 = vmax.f32 %v4342, 0.0
    %v4463 = vmax.f32 %v4345, 0.0
    %v4464 = vmax.f32 %v4350, 0.0
    %v4465 = vmax.f32 %v4353, 0.0
    %v4466 = vmax.f32 %v4358, 0.0
    %v4467 = vmax.f32 %v4361, 0.0
    %v4468 = vmax.f32 %v4366, 0.0
    %v4469 = vmax.f32 %v4369, 0.0
    %v4470 = vmax.f32 %v4374, 0.0
    %v4471 = vmax.f32 %v4377, 0.0
    %v4472 = vmax.f32 %v4382, 0.0
    %v4473 = vmax.f32 %v4385, 0.0
    %v4474 = vmax.f32 %v4390, 0.0
    %v4475 = vmax.f32 %v4393, 0.0
    %v4476 = vmax.f32 %v4398, 0.0
    %v4477 = vmax.f32 %v4401, 0.0
    %v4478 = vmax.f32 %v4406, 0.0
    %v4479 = vmax.f32 %v4409, 0.0
    %v4480 = vmax.f32 %v4414, 0.0
    %v4481 = vmax.f32 %v4417, 0.0
    %v4482 = vmax.f32 %v4422, 0.0
    %v4483 = vmax.f32 %v4425, 0.0
    %v4484 = vmax.f32 %v4430, 0.0
    %v4485 = vmax.f32 %v4433, 0.0
    %v4486 = vmax.f32 %v4438, 0.0
    %v4487 = vmax.f32 %v4441, 0.0
    %v4488 = vmax.f32 %v4446, 0.0
    %v4489 = vmax.f32 %v4449, 0.0
    %v4490 = vmax.f32 %v4454, 0.0
    %v4491 = vmax.f32 %v4457, 0.0
    %v4492 = vpack.c.bf16 %v4461, %v4460
    %v4493 = vpack.c.bf16 %v4463, %v4462
    %v4494 = vpack.c.bf16 %v4465, %v4464
    %v4495 = vpack.c.bf16 %v4467, %v4466
    %v4496 = vpack.c.bf16 %v4469, %v4468
    %v4497 = vpack.c.bf16 %v4471, %v4470
    %v4498 = vpack.c.bf16 %v4473, %v4472
    %v4499 = vpack.c.bf16 %v4475, %v4474
    %v4500 = vpack.c.bf16 %v4477, %v4476
    %v4501 = vpack.c.bf16 %v4479, %v4478
    %v4502 = vpack.c.bf16 %v4481, %v4480
    %v4503 = vpack.c.bf16 %v4483, %v4482
    %v4504 = vpack.c.bf16 %v4485, %v4484
    %v4505 = vpack.c.bf16 %v4487, %v4486
    %v4506 = vpack.c.bf16 %v4489, %v4488
    %v4507 = vpack.c.bf16 %v4491, %v4490
    %v4508 = vld [vmem:[%s4 + $0x38] sm:$0xff]
    %v4509 = vld [vmem:[%s4 + $0x78] sm:$0xff]
    %v4510 = vld [vmem:[%s4 + $0xb8] sm:$0xff]
    %v4511 = vld [vmem:[%s4 + $0xf8] sm:$0xff]
    %v4516 = vunpack.c.l.b16 %v4508
    %v4517 = vunpack.c.h.b16 %v4508
    %v4518 = vunpack.c.l.b16 %v4509
    %v4519 = vunpack.c.h.b16 %v4509
    %v4520 = vunpack.c.l.b16 %v4510
    %v4521 = vunpack.c.h.b16 %v4510
    %v4522 = vunpack.c.l.b16 %v4511
    %v4523 = vunpack.c.h.b16 %v4511
    %v4524 = vpack.c.b16 %v4518, %v4516
    %v4525 = vpack.c.b16 %v4519, %v4517
    %v4526 = vpack.c.b16 %v4522, %v4520
    %v4527 = vpack.c.b16 %v4523, %v4521
    %4532 = vmatprep.subr.bf16.mxu0 0
    %4533 = vmatpush1.bf16.msra.mxu0 %v4492
    %4534 = vmatprep.subr.bf16.mxu0 0
    %4535 = vmatpush1.bf16.msra.mxu0 %v4493
    %4536 = vmatprep.subr.bf16.mxu0 0
    %4537 = vmatpush1.bf16.msra.mxu0 %v4494
    %4538 = vmatprep.subr.bf16.mxu0 0
    %4539 = vmatpush1.bf16.msra.mxu0 %v4495
    %4540 = vmatprep.subr.bf16.mxu0 0
    %4541 = vmatpush1.bf16.msra.mxu0 %v4496
    %4542 = vmatprep.subr.bf16.mxu0 0
    %4543 = vmatpush1.bf16.msra.mxu0 %v4497
    %4544 = vmatprep.subr.bf16.mxu0 0
    %4545 = vmatpush1.bf16.msra.mxu0 %v4498
    %4546 = vmatprep.subr.bf16.mxu0 0
    %4547 = vmatpush1.bf16.msra.mxu0 %v4499
    %4548 = vmatprep.subr.bf16.mxu0 0
    %4549 = vmatpush1.bf16.msra.mxu0 %v4500
    %4550 = vmatprep.subr.bf16.mxu0 0
    %4551 = vmatpush1.bf16.msra.mxu0 %v4501
    %4552 = vmatprep.subr.bf16.mxu0 0
    %4553 = vmatpush1.bf16.msra.mxu0 %v4502
    %4554 = vmatprep.subr.bf16.mxu0 0
    %4555 = vmatpush1.bf16.msra.mxu0 %v4503
    %4556 = vmatprep.subr.bf16.mxu0 0
    %4557 = vmatpush1.bf16.msra.mxu0 %v4504
    %4558 = vmatprep.subr.bf16.mxu0 0
    %4559 = vmatpush1.bf16.msra.mxu0 %v4505
    %4560 = vmatprep.subr.bf16.mxu0 0
    %4561 = vmatpush1.bf16.msra.mxu0 %v4506
    %4562 = vmatprep.subr.bf16.mxu0 0
    %4563 = vmatpush1.bf16.msra.mxu0 %v4507
    %4564 = vmatprep.mubr.bf16.mxu0 %v4525
    %4565 = vmatmul.mubr.bf16.gmra.mrb[0].mxu0 %v4524
    %v4566 = vpop.f32.mrb[0].mxu0
    %v4567 = vadd.f32 0.0, %v4566
    %v4568 = vpop.f32.mrb[0].mxu0
    %v4569 = vpop.f32.mrb[0].mxu0
    %v4570 = vadd.f32 0.0, %v4569
    %v4571 = vpop.f32.mrb[0].mxu0
    %4572 = vmatprep.mubr.bf16.mxu0 %v4527
    %4573 = vmatmul.mubr.bf16.gmra.mrb[0].mxu0 %v4526
    %v4574 = vpop.f32.mrb[0].mxu0
    %v4575 = vadd.f32 0.0, %v4574
    %v4576 = vpop.f32.mrb[0].mxu0
    %v4577 = vpop.f32.mrb[0].mxu0
    %v4578 = vadd.f32 0.0, %v4577
    %v4579 = vpop.f32.mrb[0].mxu0
    %4580 = vdwg.mxu0
    %v4581 = vadd.f32 %v4135, %v4567
    %v4582 = vadd.f32 %v4136, %v4570
    %v4583 = vadd.f32 %v4137, %v4575
    %v4584 = vadd.f32 %v4138, %v4578
    %4585 = vset.pattern.permute.xlu0 5
    %4586 = vperm.xlu0 %4585, %v805
    %v4587 = vpop.permute.xlu0 %4586
    %4589 = vset.pattern.permute.xlu0 5
    %4590 = vperm.xlu0 %4589, %v806
    %v4591 = vpop.permute.xlu0 %4590
    %4593 = vset.pattern.permute.xlu0 5
    %4594 = vperm.xlu0 %4593, %v807
    %v4595 = vpop.permute.xlu0 %4594
    %4597 = vset.pattern.permute.xlu0 5
    %4598 = vperm.xlu0 %4597, %v808
    %v4599 = vpop.permute.xlu0 %4598
    %v4601 = vadd.f32 %v4581, %v4587
    %v4602 = vadd.f32 %v4582, %v4591
    %v4603 = vadd.f32 %v4583, %v4595
    %v4604 = vadd.f32 %v4584, %v4599
    %v4605 = vadd.f32 %v1010, %v4601
    %v4606 = vadd.f32 %v1011, %v4602
    %v4607 = vadd.f32 %v1012, %v4603
    %v4608 = vadd.f32 %v1013, %v4604
    %v4609 = vsel %vm930, %v4605, 0.0
    %v4610 = vsel %vm930, %v4606, 0.0
    %v4611 = vadd.f32 %v4609, %v4610
    %v4612 = vsel %vm930, %v4607, 0.0
    %v4613 = vadd.f32 %v4611, %v4612
    %v4614 = vsel %vm930, %v4608, 0.0
    %v4615 = vadd.f32 %v4613, %v4614
    %v4616 = vrot.slane %v4615, 4
    %v4617 = vadd.f32 %v4615, %v4616
    %v4618 = vrot.slane %v4617, 2
    %v4619 = vadd.f32 %v4617, %v4618
    %v4620 = vrot.slane %v4619, 1
    %v4621 = vadd.f32 %v4619, %v4620
    %v4622 = vmul.f32 %v4621, %v944
    %v4623 = vsub.f32 %v4605, %v4622
    %v4624 = vsub.f32 %v4606, %v4622
    %v4625 = vsub.f32 %v4607, %v4622
    %v4626 = vsub.f32 %v4608, %v4622
    %v4627 = vmul.f32 %v4623, %v4623
    %v4628 = vmul.f32 %v4624, %v4624
    %v4629 = vmul.f32 %v4625, %v4625
    %v4630 = vmul.f32 %v4626, %v4626
    %v4631 = vsel %vm930, %v4627, 0.0
    %v4632 = vsel %vm930, %v4628, 0.0
    %v4633 = vadd.f32 %v4631, %v4632
    %v4634 = vsel %vm930, %v4629, 0.0
    %v4635 = vadd.f32 %v4633, %v4634
    %v4636 = vsel %vm930, %v4630, 0.0
    %v4637 = vadd.f32 %v4635, %v4636
    %v4638 = vrot.slane %v4637, 4
    %v4639 = vadd.f32 %v4637, %v4638
    %v4640 = vrot.slane %v4639, 2
    %v4641 = vadd.f32 %v4639, %v4640
    %v4642 = vrot.slane %v4641, 1
    %v4643 = vadd.f32 %v4641, %v4642
    %v4644 = vmul.f32 %v4643, %v944
    %v4645 = vadd.f32 %v4644, 1e-05
    %v4646 = vrsqrt.pop %v4645
    %v4647 = vmul.f32 %v4623, %v4646
    %v4648 = vmul.f32 %v4624, %v4646
    %v4649 = vmul.f32 %v4625, %v4646
    %v4650 = vmul.f32 %v4626, %v4646
    %4651 = vset.pattern.permute.xlu0 3
    %4652 = vperm.xlu0 %4651, %v805
    %v4653 = vpop.permute.xlu0 %4652
    %4655 = vset.pattern.permute.xlu0 3
    %4656 = vperm.xlu0 %4655, %v806
    %v4657 = vpop.permute.xlu0 %4656
    %4659 = vset.pattern.permute.xlu0 3
    %4660 = vperm.xlu0 %4659, %v807
    %v4661 = vpop.permute.xlu0 %4660
    %4663 = vset.pattern.permute.xlu0 3
    %4664 = vperm.xlu0 %4663, %v808
    %v4665 = vpop.permute.xlu0 %4664
    %v4667 = vmul.f32 %v4647, %v4653
    %v4668 = vmul.f32 %v4648, %v4657
    %v4669 = vmul.f32 %v4649, %v4661
    %v4670 = vmul.f32 %v4650, %v4665
    %4671 = vset.pattern.permute.xlu0 4
    %4672 = vperm.xlu0 %4671, %v805
    %v4673 = vpop.permute.xlu0 %4672
    %4675 = vset.pattern.permute.xlu0 4
    %4676 = vperm.xlu0 %4675, %v806
    %v4677 = vpop.permute.xlu0 %4676
    %4679 = vset.pattern.permute.xlu0 4
    %4680 = vperm.xlu0 %4679, %v807
    %v4681 = vpop.permute.xlu0 %4680
    %4683 = vset.pattern.permute.xlu0 4
    %4684 = vperm.xlu0 %4683, %v808
    %v4685 = vpop.permute.xlu0 %4684
    %v4687 = vadd.f32 %v4667, %v4673
    %v4688 = vadd.f32 %v4668, %v4677
    %v4689 = vadd.f32 %v4669, %v4681
    %v4690 = vadd.f32 %v4670, %v4685
    %4691 = vst.msk [vmem:[#allocation2] sm:$0xff] %vm930, %v4687
    %4692 = vst.msk [vmem:[#allocation2 + $0x8] sm:$0xff] %vm930, %v4688
    %4693 = vst.msk [vmem:[#allocation2 + $0x10] sm:$0xff] %vm930, %v4689
    %4694 = vst.msk [vmem:[#allocation2 + $0x18] sm:$0xff] %vm930, %v4690
    // Predicated region
    $region22: #{jk_color_forward.1} parent=1 // pred_check
      _
    $region23: #{jk_color_forward.1} parent=1 // pred_check_branch
      %4696 = sbr.rel (0) target = $region25
    $region24: #{jk_color_forward.1} parent=1 // pred_region
      %s4698 = ssub.s32 512, 512
      %4699 = vsyncadd [#allocation3], %s4698
      %s4700 = sshll.u32 [#allocation2], 4
      %s4701 = int_to_ptr.vmem [resolvable:$true] %s4700
      %4706 = dma.vmem_to_hbm [thread:$0]  %s4701, 512, %s5, [#allocation3], 128, 128, 8
    $region25: #{jk_color_forward.1} parent=1 // pred_fallthru
      _
    // Predicated region
    $region26: #{jk_color_forward.1} parent=1 // pred_check
      _
    $region27: #{jk_color_forward.1} parent=1 // pred_check_branch
      %4708 = sbr.rel (0) target = $region29
    $region28: #{jk_color_forward.1} parent=1 // pred_region
      %4709 = dma.done [#allocation3], 512
    $region29: #{jk_color_forward.1} parent=1 // pred_fallthru
      _
    %4710 = vsyncpa [#allocation3], 1

</llo_original>
